<compile_context>
chip_gen: v5e
topology: v5e:2x2
jax: 0.10.0
libtpu: 0.0.40
codegen_flags: <defaults>
</compile_context>

<pallas_src>
import functools

import jax
import jax.numpy as jnp
import numpy as np
from jax.experimental import pallas as pl
from jax.experimental.pallas import tpu as pltpu

_VMEM_LIMIT = 32 * 1024 * 1024  # safe on v5e/v6e (128 MiB) and v7x (64 MiB)


# ----------------------------------------------------------------------------
# Kernel 1: fused 3x3 conv (pad=1, stride=1, no conv bias) + folded BN + ReLU.
# One grid step per image; nine shift-and-matmul accumulation steps in-kernel.
# ----------------------------------------------------------------------------
def _conv3_kernel(xp_ref, w_ref, s_ref, b_ref, o_ref, *, H, W):
    P = W + 2
    HP = H * P
    Cout = w_ref.shape[1]
    acc = jnp.zeros((Cout, HP), jnp.float32)
    for s in range(9):                      # unrolled: static lane-offset slices
        dy, dx = s // 3, s % 3
        off = dy * P + dx
        xs = xp_ref[:, off:off + HP]        # (Cin, HP) bf16, shifted view in VMEM
        acc = acc + jnp.dot(w_ref[s], xs, preferred_element_type=jnp.float32)
    y = acc * s_ref[...] + b_ref[...]       # per-channel BN affine (f32)
    o_ref[...] = jnp.maximum(y, 0.0)


def conv3x3_bn_relu(x, w_oihw, bn_scale, bn_bias, H, W):
    """x: (N, Cin, H*W) f32 -> (N, Cout, H*W) f32."""
    N, Cin, _ = x.shape
    Cout = w_oihw.shape[0]
    P = W + 2
    HP = H * P
    L = (H + 2) * P + 2                     # +2 so the largest shifted window is in-bounds

    xp = jnp.pad(x.reshape(N, Cin, H, W), ((0, 0), (0, 0), (1, 1), (1, 1)))
    xp = xp.reshape(N, Cin, (H + 2) * P)
    xp = jnp.pad(xp, ((0, 0), (0, 0), (0, 2))).astype(jnp.bfloat16)      # (N, Cin, L)

    w9 = jnp.transpose(w_oihw, (2, 3, 0, 1)).reshape(9, Cout, Cin).astype(jnp.bfloat16)
    scale = bn_scale.reshape(Cout, 1).astype(jnp.float32)
    bias = bn_bias.reshape(Cout, 1).astype(jnp.float32)

    y = pl.pallas_call(
        functools.partial(_conv3_kernel, H=H, W=W),
        out_shape=jax.ShapeDtypeStruct((N, Cout, HP), jnp.float32),
        grid=(N,),
        in_specs=[
            pl.BlockSpec((None, Cin, L), lambda n: (n, 0, 0)),
            pl.BlockSpec((9, Cout, Cin), lambda n: (0, 0, 0)),
            pl.BlockSpec((Cout, 1), lambda n: (0, 0)),
            pl.BlockSpec((Cout, 1), lambda n: (0, 0)),
        ],
        out_specs=pl.BlockSpec((None, Cout, HP), lambda n: (n, 0, 0)),
        compiler_params=pltpu.CompilerParams(
            dimension_semantics=("parallel",),
            vmem_limit_bytes=_VMEM_LIMIT),
    )(xp, w9, scale, bias)

    # Drop the 2 padded columns per row: (N, Cout, H, W+2) -> (N, Cout, H*W).
    return y.reshape(N, Cout, H, P)[:, :, :, :W].reshape(N, Cout, H * W)


# ----------------------------------------------------------------------------
# Kernel 2: Position Attention Module, one grid step per image.
# The three 1x1 convs are fused into a single projection matmul.
# ----------------------------------------------------------------------------
def _pam_kernel(x_ref, w_ref, b_ref, o_ref, *, alpha, c8p):
    x = x_ref[...]                                                    # (C, HW) f32
    proj = jnp.dot(w_ref[...], x.astype(jnp.bfloat16),
                   preferred_element_type=jnp.float32) + b_ref[...]   # (2*c8p+C, HW)
    projb = proj.astype(jnp.bfloat16)
    fb = projb[:c8p]                                                  # (c8p, HW)
    fc = projb[c8p:2 * c8p]                                           # (c8p, HW)
    fd = projb[2 * c8p:]                                              # (C,   HW)
    # energy_t[j, i] == energy[i, j] = sum_k fb[k, i] * fc[k, j]
    energy_t = jax.lax.dot_general(fc, fb, (((0,), (0,)), ((), ())),
                                   preferred_element_type=jnp.float32)  # (HW, HW)
    # softmax over j (== axis 0 of energy_t), computed transposed so the MXU
    # consumes attn_t directly in the fe matmul (no HWxHW transpose needed).
    m = jnp.max(energy_t, axis=0, keepdims=True)
    pexp = jnp.exp(energy_t - m)
    attn_t = pexp * pl.reciprocal(jnp.sum(pexp, axis=0, keepdims=True), approx=True)
    fe = jnp.dot(fd, attn_t.astype(jnp.bfloat16),
                 preferred_element_type=jnp.float32)                  # (C, HW)
    o_ref[...] = alpha * fe + x


def pam_pallas(x, p):
    """x: (N, C, HW) f32 -> (N, C, HW) f32."""
    N, C, HW = x.shape
    c8 = p["conv_b_w"].shape[0]
    c8p = ((c8 + 7) // 8) * 8            # pad query/key channels to a full sublane group

    def pad_rows(w, b):
        wr = w.reshape(w.shape[0], C)
        return (jnp.pad(wr, ((0, c8p - wr.shape[0]), (0, 0))),
                jnp.pad(b, (0, c8p - b.shape[0])))

    wb, bb = pad_rows(p["conv_b_w"], p["conv_b_b"])
    wc, bc = pad_rows(p["conv_c_w"], p["conv_c_b"])
    wd = p["conv_d_w"].reshape(C, C)
    bd = p["conv_d_b"]
    w_all = jnp.concatenate([wb, wc, wd], axis=0).astype(jnp.bfloat16)  # (2*c8p+C, C)
    b_all = jnp.concatenate([bb, bc, bd]).reshape(-1, 1).astype(jnp.float32)
    m3 = 2 * c8p + C

    return pl.pallas_call(
        functools.partial(_pam_kernel, alpha=p["alpha"], c8p=c8p),
        out_shape=jax.ShapeDtypeStruct((N, C, HW), jnp.float32),
        grid=(N,),
        in_specs=[
            pl.BlockSpec((None, C, HW), lambda n: (n, 0, 0)),
            pl.BlockSpec((m3, C), lambda n: (0, 0)),
            pl.BlockSpec((m3, 1), lambda n: (0, 0)),
        ],
        out_specs=pl.BlockSpec((None, C, HW), lambda n: (n, 0, 0)),
        compiler_params=pltpu.CompilerParams(
            dimension_semantics=("parallel",),
            vmem_limit_bytes=_VMEM_LIMIT),
    )(x, w_all, b_all)


# ----------------------------------------------------------------------------
# Kernel 3: Channel Attention Module, one grid step per image.
# ----------------------------------------------------------------------------
def _cam_kernel(x_ref, o_ref, *, beta):
    x = x_ref[...]                                                    # (C, HW) f32
    xb = x.astype(jnp.bfloat16)
    energy = jax.lax.dot_general(xb, xb, (((1,), (1,)), ((), ())),
                                 preferred_element_type=jnp.float32)  # (C, C)
    energy_new = jnp.max(energy, axis=-1, keepdims=True) - energy
    energy_new = energy_new - jnp.max(energy_new, axis=-1, keepdims=True)
    pexp = jnp.exp(energy_new)
    attn = pexp * pl.reciprocal(jnp.sum(pexp, axis=-1, keepdims=True), approx=True)
    fe = jnp.dot(attn.astype(jnp.bfloat16), xb,
                 preferred_element_type=jnp.float32)                  # (C, HW)
    o_ref[...] = beta * fe + x


def cam_pallas(x, beta):
    """x: (N, C, HW) f32 -> (N, C, HW) f32."""
    N, C, HW = x.shape
    return pl.pallas_call(
        functools.partial(_cam_kernel, beta=beta),
        out_shape=jax.ShapeDtypeStruct((N, C, HW), jnp.float32),
        grid=(N,),
        in_specs=[pl.BlockSpec((None, C, HW), lambda n: (n, 0, 0))],
        out_specs=pl.BlockSpec((None, C, HW), lambda n: (n, 0, 0)),
        compiler_params=pltpu.CompilerParams(
            dimension_semantics=("parallel",),
            vmem_limit_bytes=_VMEM_LIMIT),
    )(x)


# ----------------------------------------------------------------------------
# Full DualAttention forward (Pallas version).
# ----------------------------------------------------------------------------
def _bn_fold(bn, eps=1e-5):
    scale = bn["gamma"] / jnp.sqrt(bn["var"] + eps)
    bias = bn["beta"] - bn["mean"] * scale
    return scale, bias


def dual_attention_pallas(x_nchw, p):
    N, Cin, H, W = x_nchw.shape
    x = x_nchw.reshape(N, Cin, H * W)                       # channels-first, HW last

    s, b = _bn_fold(p["bn_p1"])
    feat_p = conv3x3_bn_relu(x, p["conv_p1_w"], s, b, H, W)
    feat_p = pam_pallas(feat_p, p["pam"])
    s, b = _bn_fold(p["bn_p2"])
    feat_p = conv3x3_bn_relu(feat_p, p["conv_p2_w"], s, b, H, W)

    s, b = _bn_fold(p["bn_c1"])
    feat_c = conv3x3_bn_relu(x, p["conv_c1_w"], s, b, H, W)
    feat_c = cam_pallas(feat_c, p["cam_beta"])
    s, b = _bn_fold(p["bn_c2"])
    feat_c = conv3x3_bn_relu(feat_c, p["conv_c2_w"], s, b, H, W)

    fusion = feat_p + feat_c                                # elementwise glue
    s, b = _bn_fold(p["bn_out"])
    out = conv3x3_bn_relu(fusion, p["out_w"], s, b, H, W)
    Cout = out.shape[1]
    return out.reshape(N, Cout, H, W)


# ----------------------------------------------------------------------------
# Pure-JAX reference (numerical sanity check).
# ----------------------------------------------------------------------------
def _conv_ref(x, w, pad):
    return jax.lax.conv_general_dilated(
        x, w, (1, 1), pad, dimension_numbers=("NCHW", "OIHW", "NCHW"))


def _conv_bn_relu_ref(x, w, bn):
    s, b = _bn_fold(bn)
    y = _conv_ref(x, w, "SAME")
    return jnp.maximum(y * s[None, :, None, None] + b[None, :, None, None], 0.0)


def _conv1x1_ref(x, w, b):
    return _conv_ref(x, w, "VALID") + b[None, :, None, None]


def _pam_ref(x, p):
    N, C, H, W = x.shape
    HW = H * W
    fb = _conv1x1_ref(x, p["conv_b_w"], p["conv_b_b"]).reshape(N, -1, HW).transpose(0, 2, 1)
    fc = _conv1x1_ref(x, p["conv_c_w"], p["conv_c_b"]).reshape(N, -1, HW)
    attn = jax.nn.softmax(jnp.einsum("bik,bkj->bij", fb, fc), axis=-1)
    fd = _conv1x1_ref(x, p["conv_d_w"], p["conv_d_b"]).reshape(N, -1, HW)
    fe = jnp.einsum("bck,bik->bci", fd, attn).reshape(N, C, H, W)
    return p["alpha"] * fe + x


def _cam_ref(x, beta):
    N, C, H, W = x.shape
    fa = x.reshape(N, C, H * W)
    attn = jnp.einsum("bik,bjk->bij", fa, fa)
    attn_new = jnp.max(attn, axis=-1, keepdims=True) - attn
    attn_sm = jax.nn.softmax(attn_new, axis=-1)
    fe = jnp.einsum("bij,bjk->bik", attn_sm, fa).reshape(N, C, H, W)
    return beta * fe + x


def dual_attention_ref(x, p):
    feat_p = _conv_bn_relu_ref(x, p["conv_p1_w"], p["bn_p1"])
    feat_p = _pam_ref(feat_p, p["pam"])
    feat_p = _conv_bn_relu_ref(feat_p, p["conv_p2_w"], p["bn_p2"])
    feat_c = _conv_bn_relu_ref(x, p["conv_c1_w"], p["bn_c1"])
    feat_c = _cam_ref(feat_c, p["cam_beta"])
    feat_c = _conv_bn_relu_ref(feat_c, p["conv_c2_w"], p["bn_c2"])
    return _conv_bn_relu_ref(feat_p + feat_c, p["out_w"], p["bn_out"])


# ----------------------------------------------------------------------------
# Deterministic synthetic parameters (shapes follow the module's __init__).
# ----------------------------------------------------------------------------
def init_params(key, in_ch, out_ch):
    inter = in_ch // 4
    keys = iter(jax.random.split(key, 48))

    def w(shape, scale=0.1):
        return scale * jax.random.normal(next(keys), shape, jnp.float32)

    def bn(c):
        return {
            "gamma": 1.0 + 0.1 * jax.random.normal(next(keys), (c,), jnp.float32),
            "beta": 0.05 * jax.random.normal(next(keys), (c,), jnp.float32),
            "mean": 0.05 * jax.random.normal(next(keys), (c,), jnp.float32),
            "var": 1.0 + 0.1 * jax.random.uniform(next(keys), (c,), jnp.float32),
        }

    return {
        "conv_p1_w": w((inter, in_ch, 3, 3)), "bn_p1": bn(inter),
        "conv_c1_w": w((inter, in_ch, 3, 3)), "bn_c1": bn(inter),
        "pam": {
            "conv_b_w": w((inter // 8, inter, 1, 1)), "conv_b_b": w((inter // 8,)),
            "conv_c_w": w((inter // 8, inter, 1, 1)), "conv_c_b": w((inter // 8,)),
            "conv_d_w": w((inter, inter, 1, 1)), "conv_d_b": w((inter,)),
            "alpha": 0.3,   # nn.Parameter(torch.zeros(1)); nonzero to exercise path
        },
        "cam_beta": 0.1,    # nn.Parameter(torch.zeros(1)); nonzero to exercise path
        "conv_p2_w": w((out_ch, inter, 3, 3)), "bn_p2": bn(out_ch),
        "conv_c2_w": w((out_ch, inter, 3, 3)), "bn_c2": bn(out_ch),
        "out_w": w((out_ch, out_ch, 3, 3)), "bn_out": bn(out_ch),
    }


if __name__ == "__main__":
    key = jax.random.PRNGKey(0)
    kx, kp = jax.random.split(key)
    B, Cin, Cout, H, W = 2, 32, 16, 16, 16          # inter=8, inter//8=1, HW=256
    x = jax.random.normal(kx, (B, Cin, H, W), jnp.float32)
    params = init_params(kp, Cin, Cout)

    fwd = jax.jit(lambda inp: dual_attention_pallas(inp, params))
    out = jax.block_until_ready(fwd(x))
    assert out.shape == (B, Cout, H, W)
    assert bool(jnp.all(jnp.isfinite(out)))

    ref = jax.block_until_ready(dual_attention_ref(x, params))
    np.testing.assert_allclose(np.asarray(out), np.asarray(ref), rtol=0.1, atol=0.1)

    print("KERNEL_OK")
</pallas_src>

<mosaic_0001>
module attributes {stable_mosaic.version = 11 : i64} {
  func.func @_conv3_kernel(%arg0: i32, %arg1: memref<1x32x326xbf16, #tpu.memory_space<vmem>>, %arg2: memref<9x8x32xbf16, #tpu.memory_space<vmem>>, %arg3: memref<8x1xf32, #tpu.memory_space<vmem>>, %arg4: memref<8x1xf32, #tpu.memory_space<vmem>>, %arg5: memref<1x8x288xf32, #tpu.memory_space<vmem>>) attributes {dimension_semantics = [#tpu.dimension_semantics<parallel>], iteration_bounds = array<i64: 2>, scalar_prefetch = 0 : i64, scratch_operands = 0 : i64, tpu.core_type = #tpu.core_type<tc>, window_params = [{transform_indices = @transform_0, window_bounds = array<i64: 1, 32, 326>}, {pipeline_mode = #tpu.pipeline_mode<synchronous>, transform_indices = @transform_1, window_bounds = array<i64: 9, 8, 32>}, {pipeline_mode = #tpu.pipeline_mode<synchronous>, transform_indices = @transform_2, window_bounds = array<i64: 8, 1>}, {pipeline_mode = #tpu.pipeline_mode<synchronous>, transform_indices = @transform_3, window_bounds = array<i64: 8, 1>}, {transform_indices = @transform_4, window_bounds = array<i64: 1, 8, 288>}]} {
    %cst = arith.constant 0.000000e+00 : f32
    %0 = vector.broadcast %cst : f32 to vector<8x288xf32>
    %c0 = arith.constant 0 : index
    %c0_0 = arith.constant 0 : index
    %c0_1 = arith.constant 0 : index
    %1 = vector.load %arg1[%c0, %c0_0, %c0_1] : memref<1x32x326xbf16, #tpu.memory_space<vmem>>, vector<1x32x288xbf16>
    %2 = vector.shape_cast %1 : vector<1x32x288xbf16> to vector<32x288xbf16>
    %c0_2 = arith.constant 0 : index
    %c0_3 = arith.constant 0 : index
    %c0_4 = arith.constant 0 : index
    %3 = vector.load %arg2[%c0_2, %c0_3, %c0_4] : memref<9x8x32xbf16, #tpu.memory_space<vmem>>, vector<1x8x32xbf16>
    %4 = vector.shape_cast %3 : vector<1x8x32xbf16> to vector<8x32xbf16>
    %cst_5 = arith.constant dense<0.000000e+00> : vector<8x288xf32>
    %5 = tpu.matmul %4, %2, %cst_5 {dimension_numbers = #tpu.dot_dimension_numbers<[1], [0], [0], [1], [0, 0, 1, 1], [], []>} : vector<8x32xbf16>, vector<32x288xbf16>, vector<8x288xf32> -> vector<8x288xf32>
    %6 = arith.addf %0, %5 : vector<8x288xf32>
    %c0_6 = arith.constant 0 : index
    %c0_7 = arith.constant 0 : index
    %c1 = arith.constant 1 : index
    %7 = vector.load %arg1[%c0_6, %c0_7, %c1] : memref<1x32x326xbf16, #tpu.memory_space<vmem>>, vector<1x32x288xbf16>
    %8 = vector.shape_cast %7 : vector<1x32x288xbf16> to vector<32x288xbf16>
    %c1_8 = arith.constant 1 : index
    %c0_9 = arith.constant 0 : index
    %c0_10 = arith.constant 0 : index
    %9 = vector.load %arg2[%c1_8, %c0_9, %c0_10] : memref<9x8x32xbf16, #tpu.memory_space<vmem>>, vector<1x8x32xbf16>
    %10 = vector.shape_cast %9 : vector<1x8x32xbf16> to vector<8x32xbf16>
    %cst_11 = arith.constant dense<0.000000e+00> : vector<8x288xf32>
    %11 = tpu.matmul %10, %8, %cst_11 {dimension_numbers = #tpu.dot_dimension_numbers<[1], [0], [0], [1], [0, 0, 1, 1], [], []>} : vector<8x32xbf16>, vector<32x288xbf16>, vector<8x288xf32> -> vector<8x288xf32>
    %12 = arith.addf %6, %11 : vector<8x288xf32>
    %c0_12 = arith.constant 0 : index
    %c0_13 = arith.constant 0 : index
    %c2 = arith.constant 2 : index
    %13 = vector.load %arg1[%c0_12, %c0_13, %c2] : memref<1x32x326xbf16, #tpu.memory_space<vmem>>, vector<1x32x288xbf16>
    %14 = vector.shape_cast %13 : vector<1x32x288xbf16> to vector<32x288xbf16>
    %c2_14 = arith.constant 2 : index
    %c0_15 = arith.constant 0 : index
    %c0_16 = arith.constant 0 : index
    %15 = vector.load %arg2[%c2_14, %c0_15, %c0_16] : memref<9x8x32xbf16, #tpu.memory_space<vmem>>, vector<1x8x32xbf16>
    %16 = vector.shape_cast %15 : vector<1x8x32xbf16> to vector<8x32xbf16>
    %cst_17 = arith.constant dense<0.000000e+00> : vector<8x288xf32>
    %17 = tpu.matmul %16, %14, %cst_17 {dimension_numbers = #tpu.dot_dimension_numbers<[1], [0], [0], [1], [0, 0, 1, 1], [], []>} : vector<8x32xbf16>, vector<32x288xbf16>, vector<8x288xf32> -> vector<8x288xf32>
    %18 = arith.addf %12, %17 : vector<8x288xf32>
    %c0_18 = arith.constant 0 : index
    %c0_19 = arith.constant 0 : index
    %c18 = arith.constant 18 : index
    %19 = vector.load %arg1[%c0_18, %c0_19, %c18] : memref<1x32x326xbf16, #tpu.memory_space<vmem>>, vector<1x32x288xbf16>
    %20 = vector.shape_cast %19 : vector<1x32x288xbf16> to vector<32x288xbf16>
    %c3 = arith.constant 3 : index
    %c0_20 = arith.constant 0 : index
    %c0_21 = arith.constant 0 : index
    %21 = vector.load %arg2[%c3, %c0_20, %c0_21] : memref<9x8x32xbf16, #tpu.memory_space<vmem>>, vector<1x8x32xbf16>
    %22 = vector.shape_cast %21 : vector<1x8x32xbf16> to vector<8x32xbf16>
    %cst_22 = arith.constant dense<0.000000e+00> : vector<8x288xf32>
    %23 = tpu.matmul %22, %20, %cst_22 {dimension_numbers = #tpu.dot_dimension_numbers<[1], [0], [0], [1], [0, 0, 1, 1], [], []>} : vector<8x32xbf16>, vector<32x288xbf16>, vector<8x288xf32> -> vector<8x288xf32>
    %24 = arith.addf %18, %23 : vector<8x288xf32>
    %c0_23 = arith.constant 0 : index
    %c0_24 = arith.constant 0 : index
    %c19 = arith.constant 19 : index
    %25 = vector.load %arg1[%c0_23, %c0_24, %c19] : memref<1x32x326xbf16, #tpu.memory_space<vmem>>, vector<1x32x288xbf16>
    %26 = vector.shape_cast %25 : vector<1x32x288xbf16> to vector<32x288xbf16>
    %c4 = arith.constant 4 : index
    %c0_25 = arith.constant 0 : index
    %c0_26 = arith.constant 0 : index
    %27 = vector.load %arg2[%c4, %c0_25, %c0_26] : memref<9x8x32xbf16, #tpu.memory_space<vmem>>, vector<1x8x32xbf16>
    %28 = vector.shape_cast %27 : vector<1x8x32xbf16> to vector<8x32xbf16>
    %cst_27 = arith.constant dense<0.000000e+00> : vector<8x288xf32>
    %29 = tpu.matmul %28, %26, %cst_27 {dimension_numbers = #tpu.dot_dimension_numbers<[1], [0], [0], [1], [0, 0, 1, 1], [], []>} : vector<8x32xbf16>, vector<32x288xbf16>, vector<8x288xf32> -> vector<8x288xf32>
    %30 = arith.addf %24, %29 : vector<8x288xf32>
    %c0_28 = arith.constant 0 : index
    %c0_29 = arith.constant 0 : index
    %c20 = arith.constant 20 : index
    %31 = vector.load %arg1[%c0_28, %c0_29, %c20] : memref<1x32x326xbf16, #tpu.memory_space<vmem>>, vector<1x32x288xbf16>
    %32 = vector.shape_cast %31 : vector<1x32x288xbf16> to vector<32x288xbf16>
    %c5 = arith.constant 5 : index
    %c0_30 = arith.constant 0 : index
    %c0_31 = arith.constant 0 : index
    %33 = vector.load %arg2[%c5, %c0_30, %c0_31] : memref<9x8x32xbf16, #tpu.memory_space<vmem>>, vector<1x8x32xbf16>
    %34 = vector.shape_cast %33 : vector<1x8x32xbf16> to vector<8x32xbf16>
    %cst_32 = arith.constant dense<0.000000e+00> : vector<8x288xf32>
    %35 = tpu.matmul %34, %32, %cst_32 {dimension_numbers = #tpu.dot_dimension_numbers<[1], [0], [0], [1], [0, 0, 1, 1], [], []>} : vector<8x32xbf16>, vector<32x288xbf16>, vector<8x288xf32> -> vector<8x288xf32>
    %36 = arith.addf %30, %35 : vector<8x288xf32>
    %c0_33 = arith.constant 0 : index
    %c0_34 = arith.constant 0 : index
    %c36 = arith.constant 36 : index
    %37 = vector.load %arg1[%c0_33, %c0_34, %c36] : memref<1x32x326xbf16, #tpu.memory_space<vmem>>, vector<1x32x288xbf16>
    %38 = vector.shape_cast %37 : vector<1x32x288xbf16> to vector<32x288xbf16>
    %c6 = arith.constant 6 : index
    %c0_35 = arith.constant 0 : index
    %c0_36 = arith.constant 0 : index
    %39 = vector.load %arg2[%c6, %c0_35, %c0_36] : memref<9x8x32xbf16, #tpu.memory_space<vmem>>, vector<1x8x32xbf16>
    %40 = vector.shape_cast %39 : vector<1x8x32xbf16> to vector<8x32xbf16>
    %cst_37 = arith.constant dense<0.000000e+00> : vector<8x288xf32>
    %41 = tpu.matmul %40, %38, %cst_37 {dimension_numbers = #tpu.dot_dimension_numbers<[1], [0], [0], [1], [0, 0, 1, 1], [], []>} : vector<8x32xbf16>, vector<32x288xbf16>, vector<8x288xf32> -> vector<8x288xf32>
    %42 = arith.addf %36, %41 : vector<8x288xf32>
    %c0_38 = arith.constant 0 : index
    %c0_39 = arith.constant 0 : index
    %c37 = arith.constant 37 : index
    %43 = vector.load %arg1[%c0_38, %c0_39, %c37] : memref<1x32x326xbf16, #tpu.memory_space<vmem>>, vector<1x32x288xbf16>
    %44 = vector.shape_cast %43 : vector<1x32x288xbf16> to vector<32x288xbf16>
    %c7 = arith.constant 7 : index
    %c0_40 = arith.constant 0 : index
    %c0_41 = arith.constant 0 : index
    %45 = vector.load %arg2[%c7, %c0_40, %c0_41] : memref<9x8x32xbf16, #tpu.memory_space<vmem>>, vector<1x8x32xbf16>
    %46 = vector.shape_cast %45 : vector<1x8x32xbf16> to vector<8x32xbf16>
    %cst_42 = arith.constant dense<0.000000e+00> : vector<8x288xf32>
    %47 = tpu.matmul %46, %44, %cst_42 {dimension_numbers = #tpu.dot_dimension_numbers<[1], [0], [0], [1], [0, 0, 1, 1], [], []>} : vector<8x32xbf16>, vector<32x288xbf16>, vector<8x288xf32> -> vector<8x288xf32>
    %48 = arith.addf %42, %47 : vector<8x288xf32>
    %c0_43 = arith.constant 0 : index
    %c0_44 = arith.constant 0 : index
    %c38 = arith.constant 38 : index
    %49 = vector.load %arg1[%c0_43, %c0_44, %c38] : memref<1x32x326xbf16, #tpu.memory_space<vmem>>, vector<1x32x288xbf16>
    %50 = vector.shape_cast %49 : vector<1x32x288xbf16> to vector<32x288xbf16>
    %c8 = arith.constant 8 : index
    %c0_45 = arith.constant 0 : index
    %c0_46 = arith.constant 0 : index
    %51 = vector.load %arg2[%c8, %c0_45, %c0_46] : memref<9x8x32xbf16, #tpu.memory_space<vmem>>, vector<1x8x32xbf16>
    %52 = vector.shape_cast %51 : vector<1x8x32xbf16> to vector<8x32xbf16>
    %cst_47 = arith.constant dense<0.000000e+00> : vector<8x288xf32>
    %53 = tpu.matmul %52, %50, %cst_47 {dimension_numbers = #tpu.dot_dimension_numbers<[1], [0], [0], [1], [0, 0, 1, 1], [], []>} : vector<8x32xbf16>, vector<32x288xbf16>, vector<8x288xf32> -> vector<8x288xf32>
    %54 = arith.addf %48, %53 : vector<8x288xf32>
    %c0_48 = arith.constant 0 : index
    %c0_49 = arith.constant 0 : index
    %55 = vector.load %arg3[%c0_48, %c0_49] : memref<8x1xf32, #tpu.memory_space<vmem>>, vector<8x1xf32>
    %56 = vector.broadcast %55 : vector<8x1xf32> to vector<8x288xf32>
    %57 = arith.mulf %54, %56 : vector<8x288xf32>
    %c0_50 = arith.constant 0 : index
    %c0_51 = arith.constant 0 : index
    %58 = vector.load %arg4[%c0_50, %c0_51] : memref<8x1xf32, #tpu.memory_space<vmem>>, vector<8x1xf32>
    %59 = vector.broadcast %58 : vector<8x1xf32> to vector<8x288xf32>
    %60 = arith.addf %57, %59 : vector<8x288xf32>
    %cst_52 = arith.constant 0.000000e+00 : f32
    %61 = vector.broadcast %cst_52 : f32 to vector<8x288xf32>
    %62 = arith.maximumf %60, %61 : vector<8x288xf32>
    %c0_53 = arith.constant 0 : index
    %c0_54 = arith.constant 0 : index
    %c0_55 = arith.constant 0 : index
    %63 = vector.load %arg5[%c0_53, %c0_54, %c0_55] : memref<1x8x288xf32, #tpu.memory_space<vmem>>, vector<1x8x288xf32>
    %64 = vector.shape_cast %63 : vector<1x8x288xf32> to vector<8x288xf32>
    %65 = vector.shape_cast %62 : vector<8x288xf32> to vector<1x8x288xf32>
    tpu.vector_store %arg5[%c0_53, %c0_54, %c0_55], %65 {strides = array<i32>} : memref<1x8x288xf32, #tpu.memory_space<vmem>>, vector<1x8x288xf32>,
    return
  }
  func.func @transform_0(%arg0: i32) -> (i32, i32, i32) {
    %c0_i32 = arith.constant 0 : i32
    %c0_i32_0 = arith.constant 0 : i32
    %c0_i32_1 = arith.constant 0 : i32
    return %arg0, %c0_i32, %c0_i32_0 : i32, i32, i32
  }
  func.func @transform_1(%arg0: i32) -> (i32, i32, i32) {
    %c0_i32 = arith.constant 0 : i32
    %c0_i32_0 = arith.constant 0 : i32
    %c0_i32_1 = arith.constant 0 : i32
    %c0_i32_2 = arith.constant 0 : i32
    return %c0_i32, %c0_i32_0, %c0_i32_1 : i32, i32, i32
  }
  func.func @transform_2(%arg0: i32) -> (i32, i32) {
    %c0_i32 = arith.constant 0 : i32
    %c0_i32_0 = arith.constant 0 : i32
    %c0_i32_1 = arith.constant 0 : i32
    return %c0_i32, %c0_i32_0 : i32, i32
  }
  func.func @transform_3(%arg0: i32) -> (i32, i32) {
    %c0_i32 = arith.constant 0 : i32
    %c0_i32_0 = arith.constant 0 : i32
    %c0_i32_1 = arith.constant 0 : i32
    return %c0_i32, %c0_i32_0 : i32, i32
  }
  func.func @transform_4(%arg0: i32) -> (i32, i32, i32) {
    %c0_i32 = arith.constant 0 : i32
    %c0_i32_0 = arith.constant 0 : i32
    %c0_i32_1 = arith.constant 0 : i32
    return %arg0, %c0_i32, %c0_i32_0 : i32, i32, i32
  }
}

module attributes {stable_mosaic.version = 11 : i64} {
  func.func @_pam_kernel(%arg0: i32, %arg1: memref<1x8x256xf32, #tpu.memory_space<vmem>>, %arg2: memref<24x8xbf16, #tpu.memory_space<vmem>>, %arg3: memref<24x1xf32, #tpu.memory_space<vmem>>, %arg4: memref<1x8x256xf32, #tpu.memory_space<vmem>>) attributes {dimension_semantics = [#tpu.dimension_semantics<parallel>], iteration_bounds = array<i64: 2>, scalar_prefetch = 0 : i64, scratch_operands = 0 : i64, tpu.core_type = #tpu.core_type<tc>, window_params = [{transform_indices = @transform_0, window_bounds = array<i64: 1, 8, 256>}, {pipeline_mode = #tpu.pipeline_mode<synchronous>, transform_indices = @transform_1, window_bounds = array<i64: 24, 8>}, {pipeline_mode = #tpu.pipeline_mode<synchronous>, transform_indices = @transform_2, window_bounds = array<i64: 24, 1>}, {transform_indices = @transform_3, window_bounds = array<i64: 1, 8, 256>}]} {
    %c0 = arith.constant 0 : index
    %c0_0 = arith.constant 0 : index
    %c0_1 = arith.constant 0 : index
    %0 = vector.load %arg1[%c0, %c0_0, %c0_1] : memref<1x8x256xf32, #tpu.memory_space<vmem>>, vector<1x8x256xf32>
    %1 = vector.shape_cast %0 : vector<1x8x256xf32> to vector<8x256xf32>
    %c0_2 = arith.constant 0 : index
    %c0_3 = arith.constant 0 : index
    %2 = vector.load %arg2[%c0_2, %c0_3] : memref<24x8xbf16, #tpu.memory_space<vmem>>, vector<24x8xbf16>
    %3 = arith.truncf %1 : vector<8x256xf32> to vector<8x256xbf16>
    %cst = arith.constant dense<0.000000e+00> : vector<24x256xf32>
    %4 = tpu.matmul %2, %3, %cst {dimension_numbers = #tpu.dot_dimension_numbers<[1], [0], [0], [1], [0, 0, 1, 1], [], []>} : vector<24x8xbf16>, vector<8x256xbf16>, vector<24x256xf32> -> vector<24x256xf32>
    %c0_4 = arith.constant 0 : index
    %c0_5 = arith.constant 0 : index
    %5 = vector.load %arg3[%c0_4, %c0_5] : memref<24x1xf32, #tpu.memory_space<vmem>>, vector<24x1xf32>
    %6 = vector.broadcast %5 : vector<24x1xf32> to vector<24x256xf32>
    %7 = arith.addf %4, %6 : vector<24x256xf32>
    %8 = arith.truncf %7 : vector<24x256xf32> to vector<24x256xbf16>
    %9 = vector.extract_strided_slice %8 {offsets = [0, 0], sizes = [8, 256], strides = [1, 1]} : vector<24x256xbf16> to vector<8x256xbf16>
    %10 = vector.extract_strided_slice %8 {offsets = [8, 0], sizes = [8, 256], strides = [1, 1]} : vector<24x256xbf16> to vector<8x256xbf16>
    %11 = vector.extract_strided_slice %8 {offsets = [16, 0], sizes = [8, 256], strides = [1, 1]} : vector<24x256xbf16> to vector<8x256xbf16>
    %cst_6 = arith.constant dense<0.000000e+00> : vector<256x256xf32>
    %12 = tpu.matmul %10, %9, %cst_6 {dimension_numbers = #tpu.dot_dimension_numbers<[0], [0], [1], [1], [0, 1, 1, 1], [], []>} : vector<8x256xbf16>, vector<8x256xbf16>, vector<256x256xf32> -> vector<256x256xf32>
    %cst_7 = arith.constant dense<0xFF800000> : vector<256xf32>
    %13 = vector.multi_reduction <maximumf>, %12, %cst_7 [0] : vector<256x256xf32> to vector<256xf32>
    %14 = vector.shape_cast %13 : vector<256xf32> to vector<1x256xf32>
    %15 = vector.broadcast %14 : vector<1x256xf32> to vector<256x256xf32>
    %16 = arith.subf %12, %15 : vector<256x256xf32>
    %17 = math.exp %16 : vector<256x256xf32>
    %cst_8 = arith.constant dense<0.000000e+00> : vector<256xf32>
    %18 = vector.multi_reduction <add>, %17, %cst_8 [0] : vector<256x256xf32> to vector<256xf32>
    %19 = vector.shape_cast %18 : vector<256xf32> to vector<1x256xf32>
    %20 = tpu.reciprocal %19 {approx = true} : vector<1x256xf32> -> vector<1x256xf32>
    %21 = vector.broadcast %20 : vector<1x256xf32> to vector<256x256xf32>
    %22 = arith.mulf %17, %21 : vector<256x256xf32>
    %23 = arith.truncf %22 : vector<256x256xf32> to vector<256x256xbf16>
    %cst_9 = arith.constant dense<0.000000e+00> : vector<8x256xf32>
    %24 = tpu.matmul %11, %23, %cst_9 {dimension_numbers = #tpu.dot_dimension_numbers<[1], [0], [0], [1], [0, 0, 1, 1], [], []>} : vector<8x256xbf16>, vector<256x256xbf16>, vector<8x256xf32> -> vector<8x256xf32>
    %cst_10 = arith.constant 3.000000e-01 : f32
    %25 = vector.broadcast %cst_10 : f32 to vector<8x256xf32>
    %26 = arith.mulf %25, %24 : vector<8x256xf32>
    %27 = arith.addf %26, %1 : vector<8x256xf32>
    %c0_11 = arith.constant 0 : index
    %c0_12 = arith.constant 0 : index
    %c0_13 = arith.constant 0 : index
    %28 = vector.load %arg4[%c0_11, %c0_12, %c0_13] : memref<1x8x256xf32, #tpu.memory_space<vmem>>, vector<1x8x256xf32>
    %29 = vector.shape_cast %28 : vector<1x8x256xf32> to vector<8x256xf32>
    %30 = vector.shape_cast %27 : vector<8x256xf32> to vector<1x8x256xf32>
    tpu.vector_store %arg4[%c0_11, %c0_12, %c0_13], %30 {strides = array<i32>} : memref<1x8x256xf32, #tpu.memory_space<vmem>>, vector<1x8x256xf32>,
    return
  }
  func.func @transform_0(%arg0: i32) -> (i32, i32, i32) {
    %c0_i32 = arith.constant 0 : i32
    %c0_i32_0 = arith.constant 0 : i32
    %c0_i32_1 = arith.constant 0 : i32
    return %arg0, %c0_i32, %c0_i32_0 : i32, i32, i32
  }
  func.func @transform_1(%arg0: i32) -> (i32, i32) {
    %c0_i32 = arith.constant 0 : i32
    %c0_i32_0 = arith.constant 0 : i32
    %c0_i32_1 = arith.constant 0 : i32
    return %c0_i32, %c0_i32_0 : i32, i32
  }
  func.func @transform_2(%arg0: i32) -> (i32, i32) {
    %c0_i32 = arith.constant 0 : i32
    %c0_i32_0 = arith.constant 0 : i32
    %c0_i32_1 = arith.constant 0 : i32
    return %c0_i32, %c0_i32_0 : i32, i32
  }
  func.func @transform_3(%arg0: i32) -> (i32, i32, i32) {
    %c0_i32 = arith.constant 0 : i32
    %c0_i32_0 = arith.constant 0 : i32
    %c0_i32_1 = arith.constant 0 : i32
    return %arg0, %c0_i32, %c0_i32_0 : i32, i32, i32
  }
}

module attributes {stable_mosaic.version = 11 : i64} {
  func.func @_cam_kernel(%arg0: i32, %arg1: memref<1x8x256xf32, #tpu.memory_space<vmem>>, %arg2: memref<1x8x256xf32, #tpu.memory_space<vmem>>) attributes {dimension_semantics = [#tpu.dimension_semantics<parallel>], iteration_bounds = array<i64: 2>, scalar_prefetch = 0 : i64, scratch_operands = 0 : i64, tpu.core_type = #tpu.core_type<tc>, window_params = [{transform_indices = @transform_0, window_bounds = array<i64: 1, 8, 256>}, {transform_indices = @transform_1, window_bounds = array<i64: 1, 8, 256>}]} {
    %c0 = arith.constant 0 : index
    %c0_0 = arith.constant 0 : index
    %c0_1 = arith.constant 0 : index
    %0 = vector.load %arg1[%c0, %c0_0, %c0_1] : memref<1x8x256xf32, #tpu.memory_space<vmem>>, vector<1x8x256xf32>
    %1 = vector.shape_cast %0 : vector<1x8x256xf32> to vector<8x256xf32>
    %2 = arith.truncf %1 : vector<8x256xf32> to vector<8x256xbf16>
    %cst = arith.constant dense<0.000000e+00> : vector<8x8xf32>
    %3 = tpu.matmul %2, %2, %cst {dimension_numbers = #tpu.dot_dimension_numbers<[1], [1], [0], [0], [0, 0, 1, 0], [], []>} : vector<8x256xbf16>, vector<8x256xbf16>, vector<8x8xf32> -> vector<8x8xf32>
    %cst_2 = arith.constant dense<0xFF800000> : vector<8xf32>
    %4 = vector.multi_reduction <maximumf>, %3, %cst_2 [1] : vector<8x8xf32> to vector<8xf32>
    %5 = vector.shape_cast %4 : vector<8xf32> to vector<8x1xf32>
    %6 = vector.broadcast %5 : vector<8x1xf32> to vector<8x8xf32>
    %7 = arith.subf %6, %3 : vector<8x8xf32>
    %cst_3 = arith.constant dense<0xFF800000> : vector<8xf32>
    %8 = vector.multi_reduction <maximumf>, %7, %cst_3 [1] : vector<8x8xf32> to vector<8xf32>
    %9 = vector.shape_cast %8 : vector<8xf32> to vector<8x1xf32>
    %10 = vector.broadcast %9 : vector<8x1xf32> to vector<8x8xf32>
    %11 = arith.subf %7, %10 : vector<8x8xf32>
    %12 = math.exp %11 : vector<8x8xf32>
    %cst_4 = arith.constant dense<0.000000e+00> : vector<8xf32>
    %13 = vector.multi_reduction <add>, %12, %cst_4 [1] : vector<8x8xf32> to vector<8xf32>
    %14 = vector.shape_cast %13 : vector<8xf32> to vector<8x1xf32>
    %15 = tpu.reciprocal %14 {approx = true} : vector<8x1xf32> -> vector<8x1xf32>
    %16 = vector.broadcast %15 : vector<8x1xf32> to vector<8x8xf32>
    %17 = arith.mulf %12, %16 : vector<8x8xf32>
    %18 = arith.truncf %17 : vector<8x8xf32> to vector<8x8xbf16>
    %cst_5 = arith.constant dense<0.000000e+00> : vector<8x256xf32>
    %19 = tpu.matmul %18, %2, %cst_5 {dimension_numbers = #tpu.dot_dimension_numbers<[1], [0], [0], [1], [0, 0, 1, 1], [], []>} : vector<8x8xbf16>, vector<8x256xbf16>, vector<8x256xf32> -> vector<8x256xf32>
    %cst_6 = arith.constant 1.000000e-01 : f32
    %20 = vector.broadcast %cst_6 : f32 to vector<8x256xf32>
    %21 = arith.mulf %20, %19 : vector<8x256xf32>
    %22 = arith.addf %21, %1 : vector<8x256xf32>
    %c0_7 = arith.constant 0 : index
    %c0_8 = arith.constant 0 : index
    %c0_9 = arith.constant 0 : index
    %23 = vector.load %arg2[%c0_7, %c0_8, %c0_9] : memref<1x8x256xf32, #tpu.memory_space<vmem>>, vector<1x8x256xf32>
    %24 = vector.shape_cast %23 : vector<1x8x256xf32> to vector<8x256xf32>
    %25 = vector.shape_cast %22 : vector<8x256xf32> to vector<1x8x256xf32>
    tpu.vector_store %arg2[%c0_7, %c0_8, %c0_9], %25 {strides = array<i32>} : memref<1x8x256xf32, #tpu.memory_space<vmem>>, vector<1x8x256xf32>,
    return
  }
  func.func @transform_0(%arg0: i32) -> (i32, i32, i32) {
    %c0_i32 = arith.constant 0 : i32
    %c0_i32_0 = arith.constant 0 : i32
    %c0_i32_1 = arith.constant 0 : i32
    return %arg0, %c0_i32, %c0_i32_0 : i32, i32, i32
  }
  func.func @transform_1(%arg0: i32) -> (i32, i32, i32) {
    %c0_i32 = arith.constant 0 : i32
    %c0_i32_0 = arith.constant 0 : i32
    %c0_i32_1 = arith.constant 0 : i32
    return %arg0, %c0_i32, %c0_i32_0 : i32, i32, i32
  }
}

module attributes {stable_mosaic.version = 11 : i64} {
  func.func @_conv3_kernel(%arg0: i32, %arg1: memref<1x8x326xbf16, #tpu.memory_space<vmem>>, %arg2: memref<9x16x8xbf16, #tpu.memory_space<vmem>>, %arg3: memref<16x1xf32, #tpu.memory_space<vmem>>, %arg4: memref<16x1xf32, #tpu.memory_space<vmem>>, %arg5: memref<1x16x288xf32, #tpu.memory_space<vmem>>) attributes {dimension_semantics = [#tpu.dimension_semantics<parallel>], iteration_bounds = array<i64: 2>, scalar_prefetch = 0 : i64, scratch_operands = 0 : i64, tpu.core_type = #tpu.core_type<tc>, window_params = [{transform_indices = @transform_0, window_bounds = array<i64: 1, 8, 326>}, {pipeline_mode = #tpu.pipeline_mode<synchronous>, transform_indices = @transform_1, window_bounds = array<i64: 9, 16, 8>}, {pipeline_mode = #tpu.pipeline_mode<synchronous>, transform_indices = @transform_2, window_bounds = array<i64: 16, 1>}, {pipeline_mode = #tpu.pipeline_mode<synchronous>, transform_indices = @transform_3, window_bounds = array<i64: 16, 1>}, {transform_indices = @transform_4, window_bounds = array<i64: 1, 16, 288>}]} {
    %cst = arith.constant 0.000000e+00 : f32
    %0 = vector.broadcast %cst : f32 to vector<16x288xf32>
    %c0 = arith.constant 0 : index
    %c0_0 = arith.constant 0 : index
    %c0_1 = arith.constant 0 : index
    %1 = vector.load %arg1[%c0, %c0_0, %c0_1] : memref<1x8x326xbf16, #tpu.memory_space<vmem>>, vector<1x8x288xbf16>
    %2 = vector.shape_cast %1 : vector<1x8x288xbf16> to vector<8x288xbf16>
    %c0_2 = arith.constant 0 : index
    %c0_3 = arith.constant 0 : index
    %c0_4 = arith.constant 0 : index
    %3 = vector.load %arg2[%c0_2, %c0_3, %c0_4] : memref<9x16x8xbf16, #tpu.memory_space<vmem>>, vector<1x16x8xbf16>
    %4 = vector.shape_cast %3 : vector<1x16x8xbf16> to vector<16x8xbf16>
    %cst_5 = arith.constant dense<0.000000e+00> : vector<16x288xf32>
    %5 = tpu.matmul %4, %2, %cst_5 {dimension_numbers = #tpu.dot_dimension_numbers<[1], [0], [0], [1], [0, 0, 1, 1], [], []>} : vector<16x8xbf16>, vector<8x288xbf16>, vector<16x288xf32> -> vector<16x288xf32>
    %6 = arith.addf %0, %5 : vector<16x288xf32>
    %c0_6 = arith.constant 0 : index
    %c0_7 = arith.constant 0 : index
    %c1 = arith.constant 1 : index
    %7 = vector.load %arg1[%c0_6, %c0_7, %c1] : memref<1x8x326xbf16, #tpu.memory_space<vmem>>, vector<1x8x288xbf16>
    %8 = vector.shape_cast %7 : vector<1x8x288xbf16> to vector<8x288xbf16>
    %c1_8 = arith.constant 1 : index
    %c0_9 = arith.constant 0 : index
    %c0_10 = arith.constant 0 : index
    %9 = vector.load %arg2[%c1_8, %c0_9, %c0_10] : memref<9x16x8xbf16, #tpu.memory_space<vmem>>, vector<1x16x8xbf16>
    %10 = vector.shape_cast %9 : vector<1x16x8xbf16> to vector<16x8xbf16>
    %cst_11 = arith.constant dense<0.000000e+00> : vector<16x288xf32>
    %11 = tpu.matmul %10, %8, %cst_11 {dimension_numbers = #tpu.dot_dimension_numbers<[1], [0], [0], [1], [0, 0, 1, 1], [], []>} : vector<16x8xbf16>, vector<8x288xbf16>, vector<16x288xf32> -> vector<16x288xf32>
    %12 = arith.addf %6, %11 : vector<16x288xf32>
    %c0_12 = arith.constant 0 : index
    %c0_13 = arith.constant 0 : index
    %c2 = arith.constant 2 : index
    %13 = vector.load %arg1[%c0_12, %c0_13, %c2] : memref<1x8x326xbf16, #tpu.memory_space<vmem>>, vector<1x8x288xbf16>
    %14 = vector.shape_cast %13 : vector<1x8x288xbf16> to vector<8x288xbf16>
    %c2_14 = arith.constant 2 : index
    %c0_15 = arith.constant 0 : index
    %c0_16 = arith.constant 0 : index
    %15 = vector.load %arg2[%c2_14, %c0_15, %c0_16] : memref<9x16x8xbf16, #tpu.memory_space<vmem>>, vector<1x16x8xbf16>
    %16 = vector.shape_cast %15 : vector<1x16x8xbf16> to vector<16x8xbf16>
    %cst_17 = arith.constant dense<0.000000e+00> : vector<16x288xf32>
    %17 = tpu.matmul %16, %14, %cst_17 {dimension_numbers = #tpu.dot_dimension_numbers<[1], [0], [0], [1], [0, 0, 1, 1], [], []>} : vector<16x8xbf16>, vector<8x288xbf16>, vector<16x288xf32> -> vector<16x288xf32>
    %18 = arith.addf %12, %17 : vector<16x288xf32>
    %c0_18 = arith.constant 0 : index
    %c0_19 = arith.constant 0 : index
    %c18 = arith.constant 18 : index
    %19 = vector.load %arg1[%c0_18, %c0_19, %c18] : memref<1x8x326xbf16, #tpu.memory_space<vmem>>, vector<1x8x288xbf16>
    %20 = vector.shape_cast %19 : vector<1x8x288xbf16> to vector<8x288xbf16>
    %c3 = arith.constant 3 : index
    %c0_20 = arith.constant 0 : index
    %c0_21 = arith.constant 0 : index
    %21 = vector.load %arg2[%c3, %c0_20, %c0_21] : memref<9x16x8xbf16, #tpu.memory_space<vmem>>, vector<1x16x8xbf16>
    %22 = vector.shape_cast %21 : vector<1x16x8xbf16> to vector<16x8xbf16>
    %cst_22 = arith.constant dense<0.000000e+00> : vector<16x288xf32>
    %23 = tpu.matmul %22, %20, %cst_22 {dimension_numbers = #tpu.dot_dimension_numbers<[1], [0], [0], [1], [0, 0, 1, 1], [], []>} : vector<16x8xbf16>, vector<8x288xbf16>, vector<16x288xf32> -> vector<16x288xf32>
    %24 = arith.addf %18, %23 : vector<16x288xf32>
    %c0_23 = arith.constant 0 : index
    %c0_24 = arith.constant 0 : index
    %c19 = arith.constant 19 : index
    %25 = vector.load %arg1[%c0_23, %c0_24, %c19] : memref<1x8x326xbf16, #tpu.memory_space<vmem>>, vector<1x8x288xbf16>
    %26 = vector.shape_cast %25 : vector<1x8x288xbf16> to vector<8x288xbf16>
    %c4 = arith.constant 4 : index
    %c0_25 = arith.constant 0 : index
    %c0_26 = arith.constant 0 : index
    %27 = vector.load %arg2[%c4, %c0_25, %c0_26] : memref<9x16x8xbf16, #tpu.memory_space<vmem>>, vector<1x16x8xbf16>
    %28 = vector.shape_cast %27 : vector<1x16x8xbf16> to vector<16x8xbf16>
    %cst_27 = arith.constant dense<0.000000e+00> : vector<16x288xf32>
    %29 = tpu.matmul %28, %26, %cst_27 {dimension_numbers = #tpu.dot_dimension_numbers<[1], [0], [0], [1], [0, 0, 1, 1], [], []>} : vector<16x8xbf16>, vector<8x288xbf16>, vector<16x288xf32> -> vector<16x288xf32>
    %30 = arith.addf %24, %29 : vector<16x288xf32>
    %c0_28 = arith.constant 0 : index
    %c0_29 = arith.constant 0 : index
    %c20 = arith.constant 20 : index
    %31 = vector.load %arg1[%c0_28, %c0_29, %c20] : memref<1x8x326xbf16, #tpu.memory_space<vmem>>, vector<1x8x288xbf16>
    %32 = vector.shape_cast %31 : vector<1x8x288xbf16> to vector<8x288xbf16>
    %c5 = arith.constant 5 : index
    %c0_30 = arith.constant 0 : index
    %c0_31 = arith.constant 0 : index
    %33 = vector.load %arg2[%c5, %c0_30, %c0_31] : memref<9x16x8xbf16, #tpu.memory_space<vmem>>, vector<1x16x8xbf16>
    %34 = vector.shape_cast %33 : vector<1x16x8xbf16> to vector<16x8xbf16>
    %cst_32 = arith.constant dense<0.000000e+00> : vector<16x288xf32>
    %35 = tpu.matmul %34, %32, %cst_32 {dimension_numbers = #tpu.dot_dimension_numbers<[1], [0], [0], [1], [0, 0, 1, 1], [], []>} : vector<16x8xbf16>, vector<8x288xbf16>, vector<16x288xf32> -> vector<16x288xf32>
    %36 = arith.addf %30, %35 : vector<16x288xf32>
    %c0_33 = arith.constant 0 : index
    %c0_34 = arith.constant 0 : index
    %c36 = arith.constant 36 : index
    %37 = vector.load %arg1[%c0_33, %c0_34, %c36] : memref<1x8x326xbf16, #tpu.memory_space<vmem>>, vector<1x8x288xbf16>
    %38 = vector.shape_cast %37 : vector<1x8x288xbf16> to vector<8x288xbf16>
    %c6 = arith.constant 6 : index
    %c0_35 = arith.constant 0 : index
    %c0_36 = arith.constant 0 : index
    %39 = vector.load %arg2[%c6, %c0_35, %c0_36] : memref<9x16x8xbf16, #tpu.memory_space<vmem>>, vector<1x16x8xbf16>
    %40 = vector.shape_cast %39 : vector<1x16x8xbf16> to vector<16x8xbf16>
    %cst_37 = arith.constant dense<0.000000e+00> : vector<16x288xf32>
    %41 = tpu.matmul %40, %38, %cst_37 {dimension_numbers = #tpu.dot_dimension_numbers<[1], [0], [0], [1], [0, 0, 1, 1], [], []>} : vector<16x8xbf16>, vector<8x288xbf16>, vector<16x288xf32> -> vector<16x288xf32>
    %42 = arith.addf %36, %41 : vector<16x288xf32>
    %c0_38 = arith.constant 0 : index
    %c0_39 = arith.constant 0 : index
    %c37 = arith.constant 37 : index
    %43 = vector.load %arg1[%c0_38, %c0_39, %c37] : memref<1x8x326xbf16, #tpu.memory_space<vmem>>, vector<1x8x288xbf16>
    %44 = vector.shape_cast %43 : vector<1x8x288xbf16> to vector<8x288xbf16>
    %c7 = arith.constant 7 : index
    %c0_40 = arith.constant 0 : index
    %c0_41 = arith.constant 0 : index
    %45 = vector.load %arg2[%c7, %c0_40, %c0_41] : memref<9x16x8xbf16, #tpu.memory_space<vmem>>, vector<1x16x8xbf16>
    %46 = vector.shape_cast %45 : vector<1x16x8xbf16> to vector<16x8xbf16>
    %cst_42 = arith.constant dense<0.000000e+00> : vector<16x288xf32>
    %47 = tpu.matmul %46, %44, %cst_42 {dimension_numbers = #tpu.dot_dimension_numbers<[1], [0], [0], [1], [0, 0, 1, 1], [], []>} : vector<16x8xbf16>, vector<8x288xbf16>, vector<16x288xf32> -> vector<16x288xf32>
    %48 = arith.addf %42, %47 : vector<16x288xf32>
    %c0_43 = arith.constant 0 : index
    %c0_44 = arith.constant 0 : index
    %c38 = arith.constant 38 : index
    %49 = vector.load %arg1[%c0_43, %c0_44, %c38] : memref<1x8x326xbf16, #tpu.memory_space<vmem>>, vector<1x8x288xbf16>
    %50 = vector.shape_cast %49 : vector<1x8x288xbf16> to vector<8x288xbf16>
    %c8 = arith.constant 8 : index
    %c0_45 = arith.constant 0 : index
    %c0_46 = arith.constant 0 : index
    %51 = vector.load %arg2[%c8, %c0_45, %c0_46] : memref<9x16x8xbf16, #tpu.memory_space<vmem>>, vector<1x16x8xbf16>
    %52 = vector.shape_cast %51 : vector<1x16x8xbf16> to vector<16x8xbf16>
    %cst_47 = arith.constant dense<0.000000e+00> : vector<16x288xf32>
    %53 = tpu.matmul %52, %50, %cst_47 {dimension_numbers = #tpu.dot_dimension_numbers<[1], [0], [0], [1], [0, 0, 1, 1], [], []>} : vector<16x8xbf16>, vector<8x288xbf16>, vector<16x288xf32> -> vector<16x288xf32>
    %54 = arith.addf %48, %53 : vector<16x288xf32>
    %c0_48 = arith.constant 0 : index
    %c0_49 = arith.constant 0 : index
    %55 = vector.load %arg3[%c0_48, %c0_49] : memref<16x1xf32, #tpu.memory_space<vmem>>, vector<16x1xf32>
    %56 = vector.broadcast %55 : vector<16x1xf32> to vector<16x288xf32>
    %57 = arith.mulf %54, %56 : vector<16x288xf32>
    %c0_50 = arith.constant 0 : index
    %c0_51 = arith.constant 0 : index
    %58 = vector.load %arg4[%c0_50, %c0_51] : memref<16x1xf32, #tpu.memory_space<vmem>>, vector<16x1xf32>
    %59 = vector.broadcast %58 : vector<16x1xf32> to vector<16x288xf32>
    %60 = arith.addf %57, %59 : vector<16x288xf32>
    %cst_52 = arith.constant 0.000000e+00 : f32
    %61 = vector.broadcast %cst_52 : f32 to vector<16x288xf32>
    %62 = arith.maximumf %60, %61 : vector<16x288xf32>
    %c0_53 = arith.constant 0 : index
    %c0_54 = arith.constant 0 : index
    %c0_55 = arith.constant 0 : index
    %63 = vector.load %arg5[%c0_53, %c0_54, %c0_55] : memref<1x16x288xf32, #tpu.memory_space<vmem>>, vector<1x16x288xf32>
    %64 = vector.shape_cast %63 : vector<1x16x288xf32> to vector<16x288xf32>
    %65 = vector.shape_cast %62 : vector<16x288xf32> to vector<1x16x288xf32>
    tpu.vector_store %arg5[%c0_53, %c0_54, %c0_55], %65 {strides = array<i32>} : memref<1x16x288xf32, #tpu.memory_space<vmem>>, vector<1x16x288xf32>,
    return
  }
  func.func @transform_0(%arg0: i32) -> (i32, i32, i32) {
    %c0_i32 = arith.constant 0 : i32
    %c0_i32_0 = arith.constant 0 : i32
    %c0_i32_1 = arith.constant 0 : i32
    return %arg0, %c0_i32, %c0_i32_0 : i32, i32, i32
  }
  func.func @transform_1(%arg0: i32) -> (i32, i32, i32) {
    %c0_i32 = arith.constant 0 : i32
    %c0_i32_0 = arith.constant 0 : i32
    %c0_i32_1 = arith.constant 0 : i32
    %c0_i32_2 = arith.constant 0 : i32
    return %c0_i32, %c0_i32_0, %c0_i32_1 : i32, i32, i32
  }
  func.func @transform_2(%arg0: i32) -> (i32, i32) {
    %c0_i32 = arith.constant 0 : i32
    %c0_i32_0 = arith.constant 0 : i32
    %c0_i32_1 = arith.constant 0 : i32
    return %c0_i32, %c0_i32_0 : i32, i32
  }
  func.func @transform_3(%arg0: i32) -> (i32, i32) {
    %c0_i32 = arith.constant 0 : i32
    %c0_i32_0 = arith.constant 0 : i32
    %c0_i32_1 = arith.constant 0 : i32
    return %c0_i32, %c0_i32_0 : i32, i32
  }
  func.func @transform_4(%arg0: i32) -> (i32, i32, i32) {
    %c0_i32 = arith.constant 0 : i32
    %c0_i32_0 = arith.constant 0 : i32
    %c0_i32_1 = arith.constant 0 : i32
    return %arg0, %c0_i32, %c0_i32_0 : i32, i32, i32
  }
}

module attributes {stable_mosaic.version = 11 : i64} {
  func.func @_conv3_kernel(%arg0: i32, %arg1: memref<1x16x326xbf16, #tpu.memory_space<vmem>>, %arg2: memref<9x16x16xbf16, #tpu.memory_space<vmem>>, %arg3: memref<16x1xf32, #tpu.memory_space<vmem>>, %arg4: memref<16x1xf32, #tpu.memory_space<vmem>>, %arg5: memref<1x16x288xf32, #tpu.memory_space<vmem>>) attributes {dimension_semantics = [#tpu.dimension_semantics<parallel>], iteration_bounds = array<i64: 2>, scalar_prefetch = 0 : i64, scratch_operands = 0 : i64, tpu.core_type = #tpu.core_type<tc>, window_params = [{transform_indices = @transform_0, window_bounds = array<i64: 1, 16, 326>}, {pipeline_mode = #tpu.pipeline_mode<synchronous>, transform_indices = @transform_1, window_bounds = array<i64: 9, 16, 16>}, {pipeline_mode = #tpu.pipeline_mode<synchronous>, transform_indices = @transform_2, window_bounds = array<i64: 16, 1>}, {pipeline_mode = #tpu.pipeline_mode<synchronous>, transform_indices = @transform_3, window_bounds = array<i64: 16, 1>}, {transform_indices = @transform_4, window_bounds = array<i64: 1, 16, 288>}]} {
    %cst = arith.constant 0.000000e+00 : f32
    %0 = vector.broadcast %cst : f32 to vector<16x288xf32>
    %c0 = arith.constant 0 : index
    %c0_0 = arith.constant 0 : index
    %c0_1 = arith.constant 0 : index
    %1 = vector.load %arg1[%c0, %c0_0, %c0_1] : memref<1x16x326xbf16, #tpu.memory_space<vmem>>, vector<1x16x288xbf16>
    %2 = vector.shape_cast %1 : vector<1x16x288xbf16> to vector<16x288xbf16>
    %c0_2 = arith.constant 0 : index
    %c0_3 = arith.constant 0 : index
    %c0_4 = arith.constant 0 : index
    %3 = vector.load %arg2[%c0_2, %c0_3, %c0_4] : memref<9x16x16xbf16, #tpu.memory_space<vmem>>, vector<1x16x16xbf16>
    %4 = vector.shape_cast %3 : vector<1x16x16xbf16> to vector<16x16xbf16>
    %cst_5 = arith.constant dense<0.000000e+00> : vector<16x288xf32>
    %5 = tpu.matmul %4, %2, %cst_5 {dimension_numbers = #tpu.dot_dimension_numbers<[1], [0], [0], [1], [0, 0, 1, 1], [], []>} : vector<16x16xbf16>, vector<16x288xbf16>, vector<16x288xf32> -> vector<16x288xf32>
    %6 = arith.addf %0, %5 : vector<16x288xf32>
    %c0_6 = arith.constant 0 : index
    %c0_7 = arith.constant 0 : index
    %c1 = arith.constant 1 : index
    %7 = vector.load %arg1[%c0_6, %c0_7, %c1] : memref<1x16x326xbf16, #tpu.memory_space<vmem>>, vector<1x16x288xbf16>
    %8 = vector.shape_cast %7 : vector<1x16x288xbf16> to vector<16x288xbf16>
    %c1_8 = arith.constant 1 : index
    %c0_9 = arith.constant 0 : index
    %c0_10 = arith.constant 0 : index
    %9 = vector.load %arg2[%c1_8, %c0_9, %c0_10] : memref<9x16x16xbf16, #tpu.memory_space<vmem>>, vector<1x16x16xbf16>
    %10 = vector.shape_cast %9 : vector<1x16x16xbf16> to vector<16x16xbf16>
    %cst_11 = arith.constant dense<0.000000e+00> : vector<16x288xf32>
    %11 = tpu.matmul %10, %8, %cst_11 {dimension_numbers = #tpu.dot_dimension_numbers<[1], [0], [0], [1], [0, 0, 1, 1], [], []>} : vector<16x16xbf16>, vector<16x288xbf16>, vector<16x288xf32> -> vector<16x288xf32>
    %12 = arith.addf %6, %11 : vector<16x288xf32>
    %c0_12 = arith.constant 0 : index
    %c0_13 = arith.constant 0 : index
    %c2 = arith.constant 2 : index
    %13 = vector.load %arg1[%c0_12, %c0_13, %c2] : memref<1x16x326xbf16, #tpu.memory_space<vmem>>, vector<1x16x288xbf16>
    %14 = vector.shape_cast %13 : vector<1x16x288xbf16> to vector<16x288xbf16>
    %c2_14 = arith.constant 2 : index
    %c0_15 = arith.constant 0 : index
    %c0_16 = arith.constant 0 : index
    %15 = vector.load %arg2[%c2_14, %c0_15, %c0_16] : memref<9x16x16xbf16, #tpu.memory_space<vmem>>, vector<1x16x16xbf16>
    %16 = vector.shape_cast %15 : vector<1x16x16xbf16> to vector<16x16xbf16>
    %cst_17 = arith.constant dense<0.000000e+00> : vector<16x288xf32>
    %17 = tpu.matmul %16, %14, %cst_17 {dimension_numbers = #tpu.dot_dimension_numbers<[1], [0], [0], [1], [0, 0, 1, 1], [], []>} : vector<16x16xbf16>, vector<16x288xbf16>, vector<16x288xf32> -> vector<16x288xf32>
    %18 = arith.addf %12, %17 : vector<16x288xf32>
    %c0_18 = arith.constant 0 : index
    %c0_19 = arith.constant 0 : index
    %c18 = arith.constant 18 : index
    %19 = vector.load %arg1[%c0_18, %c0_19, %c18] : memref<1x16x326xbf16, #tpu.memory_space<vmem>>, vector<1x16x288xbf16>
    %20 = vector.shape_cast %19 : vector<1x16x288xbf16> to vector<16x288xbf16>
    %c3 = arith.constant 3 : index
    %c0_20 = arith.constant 0 : index
    %c0_21 = arith.constant 0 : index
    %21 = vector.load %arg2[%c3, %c0_20, %c0_21] : memref<9x16x16xbf16, #tpu.memory_space<vmem>>, vector<1x16x16xbf16>
    %22 = vector.shape_cast %21 : vector<1x16x16xbf16> to vector<16x16xbf16>
    %cst_22 = arith.constant dense<0.000000e+00> : vector<16x288xf32>
    %23 = tpu.matmul %22, %20, %cst_22 {dimension_numbers = #tpu.dot_dimension_numbers<[1], [0], [0], [1], [0, 0, 1, 1], [], []>} : vector<16x16xbf16>, vector<16x288xbf16>, vector<16x288xf32> -> vector<16x288xf32>
    %24 = arith.addf %18, %23 : vector<16x288xf32>
    %c0_23 = arith.constant 0 : index
    %c0_24 = arith.constant 0 : index
    %c19 = arith.constant 19 : index
    %25 = vector.load %arg1[%c0_23, %c0_24, %c19] : memref<1x16x326xbf16, #tpu.memory_space<vmem>>, vector<1x16x288xbf16>
    %26 = vector.shape_cast %25 : vector<1x16x288xbf16> to vector<16x288xbf16>
    %c4 = arith.constant 4 : index
    %c0_25 = arith.constant 0 : index
    %c0_26 = arith.constant 0 : index
    %27 = vector.load %arg2[%c4, %c0_25, %c0_26] : memref<9x16x16xbf16, #tpu.memory_space<vmem>>, vector<1x16x16xbf16>
    %28 = vector.shape_cast %27 : vector<1x16x16xbf16> to vector<16x16xbf16>
    %cst_27 = arith.constant dense<0.000000e+00> : vector<16x288xf32>
    %29 = tpu.matmul %28, %26, %cst_27 {dimension_numbers = #tpu.dot_dimension_numbers<[1], [0], [0], [1], [0, 0, 1, 1], [], []>} : vector<16x16xbf16>, vector<16x288xbf16>, vector<16x288xf32> -> vector<16x288xf32>
    %30 = arith.addf %24, %29 : vector<16x288xf32>
    %c0_28 = arith.constant 0 : index
    %c0_29 = arith.constant 0 : index
    %c20 = arith.constant 20 : index
    %31 = vector.load %arg1[%c0_28, %c0_29, %c20] : memref<1x16x326xbf16, #tpu.memory_space<vmem>>, vector<1x16x288xbf16>
    %32 = vector.shape_cast %31 : vector<1x16x288xbf16> to vector<16x288xbf16>
    %c5 = arith.constant 5 : index
    %c0_30 = arith.constant 0 : index
    %c0_31 = arith.constant 0 : index
    %33 = vector.load %arg2[%c5, %c0_30, %c0_31] : memref<9x16x16xbf16, #tpu.memory_space<vmem>>, vector<1x16x16xbf16>
    %34 = vector.shape_cast %33 : vector<1x16x16xbf16> to vector<16x16xbf16>
    %cst_32 = arith.constant dense<0.000000e+00> : vector<16x288xf32>
    %35 = tpu.matmul %34, %32, %cst_32 {dimension_numbers = #tpu.dot_dimension_numbers<[1], [0], [0], [1], [0, 0, 1, 1], [], []>} : vector<16x16xbf16>, vector<16x288xbf16>, vector<16x288xf32> -> vector<16x288xf32>
    %36 = arith.addf %30, %35 : vector<16x288xf32>
    %c0_33 = arith.constant 0 : index
    %c0_34 = arith.constant 0 : index
    %c36 = arith.constant 36 : index
    %37 = vector.load %arg1[%c0_33, %c0_34, %c36] : memref<1x16x326xbf16, #tpu.memory_space<vmem>>, vector<1x16x288xbf16>
    %38 = vector.shape_cast %37 : vector<1x16x288xbf16> to vector<16x288xbf16>
    %c6 = arith.constant 6 : index
    %c0_35 = arith.constant 0 : index
    %c0_36 = arith.constant 0 : index
    %39 = vector.load %arg2[%c6, %c0_35, %c0_36] : memref<9x16x16xbf16, #tpu.memory_space<vmem>>, vector<1x16x16xbf16>
    %40 = vector.shape_cast %39 : vector<1x16x16xbf16> to vector<16x16xbf16>
    %cst_37 = arith.constant dense<0.000000e+00> : vector<16x288xf32>
    %41 = tpu.matmul %40, %38, %cst_37 {dimension_numbers = #tpu.dot_dimension_numbers<[1], [0], [0], [1], [0, 0, 1, 1], [], []>} : vector<16x16xbf16>, vector<16x288xbf16>, vector<16x288xf32> -> vector<16x288xf32>
    %42 = arith.addf %36, %41 : vector<16x288xf32>
    %c0_38 = arith.constant 0 : index
    %c0_39 = arith.constant 0 : index
    %c37 = arith.constant 37 : index
    %43 = vector.load %arg1[%c0_38, %c0_39, %c37] : memref<1x16x326xbf16, #tpu.memory_space<vmem>>, vector<1x16x288xbf16>
    %44 = vector.shape_cast %43 : vector<1x16x288xbf16> to vector<16x288xbf16>
    %c7 = arith.constant 7 : index
    %c0_40 = arith.constant 0 : index
    %c0_41 = arith.constant 0 : index
    %45 = vector.load %arg2[%c7, %c0_40, %c0_41] : memref<9x16x16xbf16, #tpu.memory_space<vmem>>, vector<1x16x16xbf16>
    %46 = vector.shape_cast %45 : vector<1x16x16xbf16> to vector<16x16xbf16>
    %cst_42 = arith.constant dense<0.000000e+00> : vector<16x288xf32>
    %47 = tpu.matmul %46, %44, %cst_42 {dimension_numbers = #tpu.dot_dimension_numbers<[1], [0], [0], [1], [0, 0, 1, 1], [], []>} : vector<16x16xbf16>, vector<16x288xbf16>, vector<16x288xf32> -> vector<16x288xf32>
    %48 = arith.addf %42, %47 : vector<16x288xf32>
    %c0_43 = arith.constant 0 : index
    %c0_44 = arith.constant 0 : index
    %c38 = arith.constant 38 : index
    %49 = vector.load %arg1[%c0_43, %c0_44, %c38] : memref<1x16x326xbf16, #tpu.memory_space<vmem>>, vector<1x16x288xbf16>
    %50 = vector.shape_cast %49 : vector<1x16x288xbf16> to vector<16x288xbf16>
    %c8 = arith.constant 8 : index
    %c0_45 = arith.constant 0 : index
    %c0_46 = arith.constant 0 : index
    %51 = vector.load %arg2[%c8, %c0_45, %c0_46] : memref<9x16x16xbf16, #tpu.memory_space<vmem>>, vector<1x16x16xbf16>
    %52 = vector.shape_cast %51 : vector<1x16x16xbf16> to vector<16x16xbf16>
    %cst_47 = arith.constant dense<0.000000e+00> : vector<16x288xf32>
    %53 = tpu.matmul %52, %50, %cst_47 {dimension_numbers = #tpu.dot_dimension_numbers<[1], [0], [0], [1], [0, 0, 1, 1], [], []>} : vector<16x16xbf16>, vector<16x288xbf16>, vector<16x288xf32> -> vector<16x288xf32>
    %54 = arith.addf %48, %53 : vector<16x288xf32>
    %c0_48 = arith.constant 0 : index
    %c0_49 = arith.constant 0 : index
    %55 = vector.load %arg3[%c0_48, %c0_49] : memref<16x1xf32, #tpu.memory_space<vmem>>, vector<16x1xf32>
    %56 = vector.broadcast %55 : vector<16x1xf32> to vector<16x288xf32>
    %57 = arith.mulf %54, %56 : vector<16x288xf32>
    %c0_50 = arith.constant 0 : index
    %c0_51 = arith.constant 0 : index
    %58 = vector.load %arg4[%c0_50, %c0_51] : memref<16x1xf32, #tpu.memory_space<vmem>>, vector<16x1xf32>
    %59 = vector.broadcast %58 : vector<16x1xf32> to vector<16x288xf32>
    %60 = arith.addf %57, %59 : vector<16x288xf32>
    %cst_52 = arith.constant 0.000000e+00 : f32
    %61 = vector.broadcast %cst_52 : f32 to vector<16x288xf32>
    %62 = arith.maximumf %60, %61 : vector<16x288xf32>
    %c0_53 = arith.constant 0 : index
    %c0_54 = arith.constant 0 : index
    %c0_55 = arith.constant 0 : index
    %63 = vector.load %arg5[%c0_53, %c0_54, %c0_55] : memref<1x16x288xf32, #tpu.memory_space<vmem>>, vector<1x16x288xf32>
    %64 = vector.shape_cast %63 : vector<1x16x288xf32> to vector<16x288xf32>
    %65 = vector.shape_cast %62 : vector<16x288xf32> to vector<1x16x288xf32>
    tpu.vector_store %arg5[%c0_53, %c0_54, %c0_55], %65 {strides = array<i32>} : memref<1x16x288xf32, #tpu.memory_space<vmem>>, vector<1x16x288xf32>,
    return
  }
  func.func @transform_0(%arg0: i32) -> (i32, i32, i32) {
    %c0_i32 = arith.constant 0 : i32
    %c0_i32_0 = arith.constant 0 : i32
    %c0_i32_1 = arith.constant 0 : i32
    return %arg0, %c0_i32, %c0_i32_0 : i32, i32, i32
  }
  func.func @transform_1(%arg0: i32) -> (i32, i32, i32) {
    %c0_i32 = arith.constant 0 : i32
    %c0_i32_0 = arith.constant 0 : i32
    %c0_i32_1 = arith.constant 0 : i32
    %c0_i32_2 = arith.constant 0 : i32
    return %c0_i32, %c0_i32_0, %c0_i32_1 : i32, i32, i32
  }
  func.func @transform_2(%arg0: i32) -> (i32, i32) {
    %c0_i32 = arith.constant 0 : i32
    %c0_i32_0 = arith.constant 0 : i32
    %c0_i32_1 = arith.constant 0 : i32
    return %c0_i32, %c0_i32_0 : i32, i32
  }
  func.func @transform_3(%arg0: i32) -> (i32, i32) {
    %c0_i32 = arith.constant 0 : i32
    %c0_i32_0 = arith.constant 0 : i32
    %c0_i32_1 = arith.constant 0 : i32
    return %c0_i32, %c0_i32_0 : i32, i32
  }
  func.func @transform_4(%arg0: i32) -> (i32, i32, i32) {
    %c0_i32 = arith.constant 0 : i32
    %c0_i32_0 = arith.constant 0 : i32
    %c0_i32_1 = arith.constant 0 : i32
    return %arg0, %c0_i32, %c0_i32_0 : i32, i32, i32
  }
}

</mosaic_0001>

<llo_original>
// kernel: _lambda_.10
$region0: #{_lambda_.10}
  #allocation0 [shape = 'u32[]', space=smem, size = 0x4, offset = 0x4, fixed_abs, tag = 'smem constant byte address 0x4 - core index']
  #allocation1 [shape = 'u32[72,128]{1,0:T(1,128)}', space=vmem, size = 0x9000, scoped, tag = 'internal scratch']
  %s0 = inlined_call_operand.vmem [shape: bf16[2,32,326], index: 0, kind: input, shape index: {}]
  %s1 = inlined_call_operand.vmem [shape: bf16[9,8,32], index: 1, kind: input, shape index: {}]
  %s2 = inlined_call_operand.vmem [shape: f32[8,1], index: 2, kind: input, shape index: {}]
  %s3 = inlined_call_operand.vmem [shape: f32[8,1], index: 3, kind: input, shape index: {}]
  %s4 = inlined_call_operand.vmem [shape: f32[2,8,288], index: 4, kind: output, shape index: {}]
  %s5 = sld [smem:[#allocation0]]
  $region49: #{_lambda_.10} parent=0
    _
  %s7 = ssub.s32 1, %s5
  %s8 = scalar_select 0, %s7, %s5
  loop: start=0, step=1, limit=4
  $region2: #{_lambda_.10} parent=0 // loop_pre_header
    _
  $region3: #{_lambda_.10} parent=0 // loop_header
    %s10 = sphi 0, %s14
    %p11 = scmp.ge.s32.totalorder %s10, 4
    %s20 = sphi 0, %s22
    %s23 = sphi 0, %s20
    %s24 = sphi 0, %s23
    %s40 = sphi 0, %s24
    %s44 = sphi 0, %s44
    %s46 = sphi 0, %s44
    %s47 = sphi 0, %s46
    %s61 = sphi 0, %s47
    %s65 = sphi 0, %s65
    %s67 = sphi 0, %s65
    %s68 = sphi 0, %s67
    %s82 = sphi 0, %s68
    %s86 = sphi 0, %s86
    %s88 = sphi 0, %s86
    %s89 = sphi 0, %s88
    %s103 = sphi 0, %s89
    %s109 = sphi 0, %s111
    %s112 = sphi 0, %s109
    %s113 = sphi 0, %s112
    %s129 = sphi 0, %s113
  $region4: #{_lambda_.10} parent=0 // loop_header_branch
    %13 = sbr.rel (%p11) target = $region8
  $region5: #{_lambda_.10} parent=0 // loop_body
    %s15 = ssub.s32 %s10, 1
    %s16 = ssub.s32 %s10, 2
    %s17 = sadd.s32 %s10, 1
    %s18 = ssub.s32 %s10, %s17
    %p19 = scmp.eq.s32.totalorder %s18, 0
    %s21 = sadd.s32 %s20, 1
    %s22 = scalar_select %p19, %s20, %s21
    %p25 = pneg %p19
    %p26 = scmp.eq.s32.totalorder %s10, 1
    %p27 = por %p25, %p26
    %p28 = scmp.ne.s32.totalorder %s20, %s23
    %p29 = scmp.eq.s32.totalorder %s10, 0
    %p30 = por %p28, %p29
    %p31 = scmp.ne.s32.totalorder %s20, %s23
    %p32 = scmp.eq.s32.totalorder %s15, 1
    %p33 = por %p31, %p32
    %p34 = scmp.ne.s32.totalorder %s23, %s24
    %p35 = scmp.eq.s32.totalorder %s15, 0
    %p36 = por %p34, %p35
    %p37 = scmp.ne.s32.totalorder %s23, %s24
    %p38 = scmp.eq.s32.totalorder %s16, 1
    %p39 = por %p37, %p38
    %p41 = scmp.ne.s32.totalorder %s24, %s40
    %p42 = scmp.eq.s32.totalorder %s16, 0
    %p43 = por %p41, %p42
    %s45 = sadd.s32 %s44, 1
    %p48 = scmp.eq.s32.totalorder %s10, 1
    %p49 = scmp.ne.s32.totalorder %s44, %s46
    %p50 = scmp.eq.s32.totalorder %s10, 0
    %p51 = por %p49, %p50
    %p52 = scmp.ne.s32.totalorder %s44, %s46
    %p53 = scmp.eq.s32.totalorder %s15, 1
    %p54 = por %p52, %p53
    %p55 = scmp.ne.s32.totalorder %s46, %s47
    %p56 = scmp.eq.s32.totalorder %s15, 0
    %p57 = por %p55, %p56
    %p58 = scmp.ne.s32.totalorder %s46, %s47
    %p59 = scmp.eq.s32.totalorder %s16, 1
    %p60 = por %p58, %p59
    %p62 = scmp.ne.s32.totalorder %s47, %s61
    %p63 = scmp.eq.s32.totalorder %s16, 0
    %p64 = por %p62, %p63
    %s66 = sadd.s32 %s65, 1
    %p69 = scmp.eq.s32.totalorder %s10, 1
    %p70 = scmp.ne.s32.totalorder %s65, %s67
    %p71 = scmp.eq.s32.totalorder %s10, 0
    %p72 = por %p70, %p71
    %p73 = scmp.ne.s32.totalorder %s65, %s67
    %p74 = scmp.eq.s32.totalorder %s15, 1
    %p75 = por %p73, %p74
    %p76 = scmp.ne.s32.totalorder %s67, %s68
    %p77 = scmp.eq.s32.totalorder %s15, 0
    %p78 = por %p76, %p77
    %p79 = scmp.ne.s32.totalorder %s67, %s68
    %p80 = scmp.eq.s32.totalorder %s16, 1
    %p81 = por %p79, %p80
    %p83 = scmp.ne.s32.totalorder %s68, %s82
    %p84 = scmp.eq.s32.totalorder %s16, 0
    %p85 = por %p83, %p84
    %s87 = sadd.s32 %s86, 1
    %p90 = scmp.eq.s32.totalorder %s10, 1
    %p91 = scmp.ne.s32.totalorder %s86, %s88
    %p92 = scmp.eq.s32.totalorder %s10, 0
    %p93 = por %p91, %p92
    %p94 = scmp.ne.s32.totalorder %s86, %s88
    %p95 = scmp.eq.s32.totalorder %s15, 1
    %p96 = por %p94, %p95
    %p97 = scmp.ne.s32.totalorder %s88, %s89
    %p98 = scmp.eq.s32.totalorder %s15, 0
    %p99 = por %p97, %p98
    %p100 = scmp.ne.s32.totalorder %s88, %s89
    %p101 = scmp.eq.s32.totalorder %s16, 1
    %p102 = por %p100, %p101
    %p104 = scmp.ne.s32.totalorder %s89, %s103
    %p105 = scmp.eq.s32.totalorder %s16, 0
    %p106 = por %p104, %p105
    %s107 = ssub.s32 %s10, %s17
    %p108 = scmp.eq.s32.totalorder %s107, 0
    %s110 = sadd.s32 %s109, 1
    %s111 = scalar_select %p108, %s109, %s110
    %p114 = pneg %p108
    %p115 = scmp.eq.s32.totalorder %s10, 1
    %p116 = por %p114, %p115
    %p117 = scmp.ne.s32.totalorder %s109, %s112
    %p118 = scmp.eq.s32.totalorder %s10, 0
    %p119 = por %p117, %p118
    %p120 = scmp.ne.s32.totalorder %s109, %s112
    %p121 = scmp.eq.s32.totalorder %s15, 1
    %p122 = por %p120, %p121
    %p123 = scmp.ne.s32.totalorder %s112, %s113
    %p124 = scmp.eq.s32.totalorder %s15, 0
    %p125 = por %p123, %p124
    %p126 = scmp.ne.s32.totalorder %s112, %s113
    %p127 = scmp.eq.s32.totalorder %s16, 1
    %p128 = por %p126, %p127
    %p130 = scmp.ne.s32.totalorder %s113, %s129
    %p131 = scmp.eq.s32.totalorder %s16, 0
    %p132 = por %p130, %p131
    %p133 = scmp.le.s32.totalorder 1, %s10
    %p134 = scmp.lt.s32.totalorder %s10, 3
    %p135 = pnand %p133, %p134
    %p136 = pneg %p135
    // Predicated region
    $region9: #{_lambda_.10} parent=5 // pred_check
      _
    $region10: #{_lambda_.10} parent=5 // pred_check_branch
      %138 = sbr.rel (%p135) target = $region12
    $region11: #{_lambda_.10} parent=5 // pred_region
      %s139 = ssub.s32 %s10, 1
      // Predicated region
      $region13: #{_lambda_.10} parent=11 // pred_check
        %p140 = pneg %p57
      $region14: #{_lambda_.10} parent=11 // pred_check_branch
        %142 = sbr.rel (%p140) target = $region16
      $region15: #{_lambda_.10} parent=11 // pred_region
        _
      $region16: #{_lambda_.10} parent=11 // pred_fallthru
        _
      // Predicated region
      $region17: #{_lambda_.10} parent=11 // pred_check
        %p143 = pneg %p78
      $region18: #{_lambda_.10} parent=11 // pred_check_branch
        %145 = sbr.rel (%p143) target = $region20
      $region19: #{_lambda_.10} parent=11 // pred_region
        _
      $region20: #{_lambda_.10} parent=11 // pred_fallthru
        _
      // Predicated region
      $region21: #{_lambda_.10} parent=11 // pred_check
        %p146 = pneg %p99
      $region22: #{_lambda_.10} parent=11 // pred_check_branch
        %148 = sbr.rel (%p146) target = $region24
      $region23: #{_lambda_.10} parent=11 // pred_region
        _
      $region24: #{_lambda_.10} parent=11 // pred_fallthru
        _
    $region12: #{_lambda_.10} parent=5 // pred_fallthru
      _
    %p149 = scmp.lt.s32.totalorder %s10, 2
    // Predicated region
    $region25: #{_lambda_.10} parent=5 // pred_check
      %p150 = pneg %p149
    $region26: #{_lambda_.10} parent=5 // pred_check_branch
      %152 = sbr.rel (%p150) target = $region28
    $region27: #{_lambda_.10} parent=5 // pred_region
      // Predicated region
      $region29: #{_lambda_.10} parent=27 // pred_check
        %p153 = pneg %p30
      $region30: #{_lambda_.10} parent=27 // pred_check_branch
        %155 = sbr.rel (%p153) target = $region32
      $region31: #{_lambda_.10} parent=27 // pred_region
        %p156 = scmp.lt.s32.totalorder %s10, 1
        %s157 = scalar_select %p156, %s10, 1
        %s158 = smul.addr %s157, 12
        %s159 = smul.addr %s158, 4
        %s160 = scalar_lea.vmem %s0, %s159
      $region32: #{_lambda_.10} parent=27 // pred_fallthru
        _
    $region28: #{_lambda_.10} parent=5 // pred_fallthru
      _
    %p161 = scmp.le.s32.totalorder 1, %s10
    %p162 = scmp.lt.s32.totalorder %s10, 3
    %p163 = pnand %p161, %p162
    %p164 = pneg %p163
    // Predicated region
    $region33: #{_lambda_.10} parent=5 // pred_check
      _
    $region34: #{_lambda_.10} parent=5 // pred_check_branch
      %166 = sbr.rel (%p163) target = $region36
    $region35: #{_lambda_.10} parent=5 // pred_region
      %s167 = ssub.s32 %s10, 1
      %p168 = scmp.lt.s32.totalorder %s15, 1
      %s169 = scalar_select %p168, %s15, 1
      %s170 = smul.addr %s169, 12
      %s171 = smul.addr %s170, 4
      %s172 = scalar_lea.vmem %s0, %s171
      %p173 = pneg %p36
      %p174 = pneg %p33
      %p175 = pneg %p57
      %p176 = pneg %p54
      %p177 = pneg %p78
      %p178 = pneg %p75
      %p179 = pneg %p99
      %p180 = pneg %p96
      %p181 = pneg %p125
      %p182 = pneg %p122
      %p183 = scmp.lt.s32.totalorder %s15, 1
      %s184 = scalar_select %p183, %s15, 1
      %s185 = smul.addr %s184, 3
      %s186 = smul.addr %s185, 8
      %s187 = scalar_lea.vmem %s4, %s186
      %p188 = scmp.lt.s32.totalorder %s15, 1
      %s189 = scalar_select %p188, %s15, 1
      %s190 = smul.addr %s189, 12
      %s191 = smul.addr %s190, 4
      %s192 = scalar_lea.vmem %s0, %s191
      %p193 = scmp.lt.s32.totalorder %s15, 1
      %s194 = scalar_select %p193, %s15, 1
      %s195 = smul.addr %s194, 3
      %s196 = smul.addr %s195, 8
      %s197 = scalar_lea.vmem %s4, %s196
      %v199 = vld [vmem:[%s192] sm:$0xff]
      %v200 = vld [vmem:[%s192 + $0x8] sm:$0xf]
      %v201 = vld [vmem:[%s192 + $0xc] sm:$0xff]
      %v202 = vld [vmem:[%s192 + $0x14] sm:$0xf]
      %v203 = vld [vmem:[%s192 + $0x18] sm:$0xff]
      %v204 = vld [vmem:[%s192 + $0x20] sm:$0xf]
      %v205 = vld [vmem:[%s192 + $0x24] sm:$0xff]
      %v206 = vld [vmem:[%s192 + $0x2c] sm:$0xf]
      %v207 = vld [vmem:[%s1] sm:$0xf]
      %s208 = scalar_lea.vmem %s1, 4
      %v209 = vld [vmem:[%s208] sm:$0xf]
      %v218 = vunpack.c.l.b16 %v199
      %v219 = vunpack.c.h.b16 %v199
      %v220 = vunpack.c.l.b16 %v200
      %v221 = vunpack.c.l.b16 %v201
      %v222 = vunpack.c.h.b16 %v201
      %v223 = vunpack.c.l.b16 %v202
      %v224 = vunpack.c.l.b16 %v203
      %v225 = vunpack.c.h.b16 %v203
      %v226 = vunpack.c.l.b16 %v204
      %v227 = vunpack.c.l.b16 %v205
      %v228 = vunpack.c.h.b16 %v205
      %v229 = vunpack.c.l.b16 %v206
      %v230 = vpack.c.b16 %v221, %v218
      %v231 = vpack.c.b16 %v222, %v219
      %v232 = vpack.c.b16 %v223, %v220
      %v233 = vpack.c.b16 %v227, %v224
      %v234 = vpack.c.b16 %v228, %v225
      %v235 = vpack.c.b16 %v229, %v226
      %236 = vrot.lane.b32.xlu0 %v230, 127
      %v237 = vpop.permute.xlu0 %236
      %238 = vrot.lane.b32.xlu0 %v231, 127
      %v239 = vpop.permute.xlu0 %238
      %240 = vrot.lane.b32.xlu0 %v232, 127
      %v241 = vpop.permute.xlu0 %240
      %242 = vrot.lane.b32.xlu0 %v233, 127
      %v243 = vpop.permute.xlu0 %242
      %244 = vrot.lane.b32.xlu0 %v234, 127
      %v245 = vpop.permute.xlu0 %244
      %246 = vrot.lane.b32.xlu0 %v235, 127
      %v247 = vpop.permute.xlu0 %246
      %vm248 = vcmask 1039360
      %v249 = vsel %vm248, %v237, %v239
      %v250 = vsel %vm248, %v239, %v241
      %v251 = vsel %vm248, %v243, %v245
      %v252 = vsel %vm248, %v245, %v247
      %vm259 = vcmask 261120
      %v261 = vsel %vm259, %v209, 0
      %263 = vmatpush.bf16.msra.mxu0 0
      %264 = vmatpush.bf16.msra.mxu0 0
      %265 = vmatpush.bf16.msra.mxu0 0
      %266 = vmatpush.bf16.msra.mxu0 0
      %267 = vmatpush.bf16.msra.mxu0 0
      %268 = vmatpush.bf16.msra.mxu0 0
      %269 = vmatpush.bf16.msra.mxu0 %v251
      %270 = vmatpush.bf16.msra.mxu0 %v249
      %271 = vmatmul.bf16.gmra.mxu0 %v261
      %v272 = vpop.f32.mrf.mxu0
      %v273 = vadd.f32 0.0, %v272
      %v274 = vpop.f32.mrf.mxu0
      %275 = vdwg.mxu0
      %276 = vmatpush.bf16.msra.mxu0 0
      %277 = vmatpush.bf16.msra.mxu0 0
      %278 = vmatpush.bf16.msra.mxu0 0
      %279 = vmatpush.bf16.msra.mxu0 0
      %280 = vmatpush.bf16.msra.mxu0 0
      %281 = vmatpush.bf16.msra.mxu0 0
      %282 = vmatpush.bf16.msra.mxu0 %v252
      %283 = vmatpush.bf16.msra.mxu0 %v250
      %284 = vmatmul.bf16.gmra.mxu0 %v261
      %v285 = vpop.f32.mrf.mxu0
      %v286 = vadd.f32 0.0, %v285
      %v287 = vpop.f32.mrf.mxu0
      %288 = vdwg.mxu0
      %289 = vmatpush.bf16.msra.mxu0 0
      %290 = vmatpush.bf16.msra.mxu0 0
      %291 = vmatpush.bf16.msra.mxu0 0
      %292 = vmatpush.bf16.msra.mxu0 0
      %293 = vmatpush.bf16.msra.mxu0 0
      %294 = vmatpush.bf16.msra.mxu0 0
      %295 = vmatpush.bf16.msra.mxu0 %v247
      %296 = vmatpush.bf16.msra.mxu0 %v241
      %297 = vmatmul.bf16.gmra.mxu0 %v261
      %v298 = vpop.f32.mrf.mxu0
      %v299 = vadd.f32 0.0, %v298
      %v300 = vpop.f32.mrf.mxu0
      %301 = vdwg.mxu0
      %v309 = vsel %vm259, %v207, 0
      %311 = vmatpush.bf16.msra.mxu0 0
      %312 = vmatpush.bf16.msra.mxu0 0
      %313 = vmatpush.bf16.msra.mxu0 0
      %314 = vmatpush.bf16.msra.mxu0 0
      %315 = vmatpush.bf16.msra.mxu0 0
      %316 = vmatpush.bf16.msra.mxu0 0
      %317 = vmatpush.bf16.msra.mxu0 %v233
      %318 = vmatpush.bf16.msra.mxu0 %v230
      %319 = vmatmul.bf16.gmra.mxu0 %v309
      %v320 = vpop.f32.mrf.mxu0
      %v321 = vadd.f32 %v273, %v320
      %v322 = vpop.f32.mrf.mxu0
      %323 = vdwg.mxu0
      %324 = vmatpush.bf16.msra.mxu0 0
      %325 = vmatpush.bf16.msra.mxu0 0
      %326 = vmatpush.bf16.msra.mxu0 0
      %327 = vmatpush.bf16.msra.mxu0 0
      %328 = vmatpush.bf16.msra.mxu0 0
      %329 = vmatpush.bf16.msra.mxu0 0
      %330 = vmatpush.bf16.msra.mxu0 %v234
      %331 = vmatpush.bf16.msra.mxu0 %v231
      %332 = vmatmul.bf16.gmra.mxu0 %v309
      %v333 = vpop.f32.mrf.mxu0
      %v334 = vadd.f32 %v286, %v333
      %v335 = vpop.f32.mrf.mxu0
      %336 = vdwg.mxu0
      %337 = vmatpush.bf16.msra.mxu0 0
      %338 = vmatpush.bf16.msra.mxu0 0
      %339 = vmatpush.bf16.msra.mxu0 0
      %340 = vmatpush.bf16.msra.mxu0 0
      %341 = vmatpush.bf16.msra.mxu0 0
      %342 = vmatpush.bf16.msra.mxu0 0
      %343 = vmatpush.bf16.msra.mxu0 %v235
      %344 = vmatpush.bf16.msra.mxu0 %v232
      %345 = vmatmul.bf16.gmra.mxu0 %v309
      %v346 = vpop.f32.mrf.mxu0
      %v347 = vadd.f32 %v299, %v346
      %v348 = vpop.f32.mrf.mxu0
      %349 = vdwg.mxu0
      %s350 = scalar_lea.vmem %s1, 8
      %v351 = vld [vmem:[%s350] sm:$0xf]
      %352 = vrot.lane.b32.xlu0 %v230, 126
      %v353 = vpop.permute.xlu0 %352
      %354 = vrot.lane.b32.xlu0 %v231, 126
      %v355 = vpop.permute.xlu0 %354
      %356 = vrot.lane.b32.xlu0 %v232, 126
      %v357 = vpop.permute.xlu0 %356
      %358 = vrot.lane.b32.xlu0 %v233, 126
      %v359 = vpop.permute.xlu0 %358
      %360 = vrot.lane.b32.xlu0 %v234, 126
      %v361 = vpop.permute.xlu0 %360
      %362 = vrot.lane.b32.xlu0 %v235, 126
      %v363 = vpop.permute.xlu0 %362
      %vm364 = vcmask 1031168
      %v365 = vsel %vm364, %v353, %v355
      %v366 = vsel %vm364, %v355, %v357
      %v367 = vsel %vm364, %v359, %v361
      %v368 = vsel %vm364, %v361, %v363
      %v376 = vsel %vm259, %v351, 0
      %378 = vmatpush.bf16.msra.mxu0 0
      %379 = vmatpush.bf16.msra.mxu0 0
      %380 = vmatpush.bf16.msra.mxu0 0
      %381 = vmatpush.bf16.msra.mxu0 0
      %382 = vmatpush.bf16.msra.mxu0 0
      %383 = vmatpush.bf16.msra.mxu0 0
      %384 = vmatpush.bf16.msra.mxu0 %v367
      %385 = vmatpush.bf16.msra.mxu0 %v365
      %386 = vmatmul.bf16.gmra.mxu0 %v376
      %v387 = vpop.f32.mrf.mxu0
      %v388 = vadd.f32 0.0, %v387
      %v389 = vpop.f32.mrf.mxu0
      %390 = vdwg.mxu0
      %391 = vmatpush.bf16.msra.mxu0 0
      %392 = vmatpush.bf16.msra.mxu0 0
      %393 = vmatpush.bf16.msra.mxu0 0
      %394 = vmatpush.bf16.msra.mxu0 0
      %395 = vmatpush.bf16.msra.mxu0 0
      %396 = vmatpush.bf16.msra.mxu0 0
      %397 = vmatpush.bf16.msra.mxu0 %v368
      %398 = vmatpush.bf16.msra.mxu0 %v366
      %399 = vmatmul.bf16.gmra.mxu0 %v376
      %v400 = vpop.f32.mrf.mxu0
      %v401 = vadd.f32 0.0, %v400
      %v402 = vpop.f32.mrf.mxu0
      %403 = vdwg.mxu0
      %404 = vmatpush.bf16.msra.mxu0 0
      %405 = vmatpush.bf16.msra.mxu0 0
      %406 = vmatpush.bf16.msra.mxu0 0
      %407 = vmatpush.bf16.msra.mxu0 0
      %408 = vmatpush.bf16.msra.mxu0 0
      %409 = vmatpush.bf16.msra.mxu0 0
      %410 = vmatpush.bf16.msra.mxu0 %v363
      %411 = vmatpush.bf16.msra.mxu0 %v357
      %412 = vmatmul.bf16.gmra.mxu0 %v376
      %v413 = vpop.f32.mrf.mxu0
      %v414 = vadd.f32 0.0, %v413
      %v415 = vpop.f32.mrf.mxu0
      %416 = vdwg.mxu0
      %v417 = vadd.f32 %v321, %v388
      %v418 = vadd.f32 %v334, %v401
      %v419 = vadd.f32 %v347, %v414
      %s420 = scalar_lea.vmem %s1, 12
      %v421 = vld [vmem:[%s420] sm:$0xf]
      %422 = vrot.lane.b32.xlu0 %v230, 110
      %v423 = vpop.permute.xlu0 %422
      %424 = vrot.lane.b32.xlu0 %v231, 110
      %v425 = vpop.permute.xlu0 %424
      %426 = vrot.lane.b32.xlu0 %v232, 110
      %v427 = vpop.permute.xlu0 %426
      %428 = vrot.lane.b32.xlu0 %v233, 110
      %v429 = vpop.permute.xlu0 %428
      %430 = vrot.lane.b32.xlu0 %v234, 110
      %v431 = vpop.permute.xlu0 %430
      %432 = vrot.lane.b32.xlu0 %v235, 110
      %v433 = vpop.permute.xlu0 %432
      %vm434 = vcmask 900096
      %v435 = vsel %vm434, %v423, %v425
      %v436 = vsel %vm434, %v425, %v427
      %v437 = vsel %vm434, %v429, %v431
      %v438 = vsel %vm434, %v431, %v433
      %v446 = vsel %vm259, %v421, 0
      %448 = vmatpush.bf16.msra.mxu0 0
      %449 = vmatpush.bf16.msra.mxu0 0
      %450 = vmatpush.bf16.msra.mxu0 0
      %451 = vmatpush.bf16.msra.mxu0 0
      %452 = vmatpush.bf16.msra.mxu0 0
      %453 = vmatpush.bf16.msra.mxu0 0
      %454 = vmatpush.bf16.msra.mxu0 %v437
      %455 = vmatpush.bf16.msra.mxu0 %v435
      %456 = vmatmul.bf16.gmra.mxu0 %v446
      %v457 = vpop.f32.mrf.mxu0
      %v458 = vadd.f32 0.0, %v457
      %v459 = vpop.f32.mrf.mxu0
      %460 = vdwg.mxu0
      %461 = vmatpush.bf16.msra.mxu0 0
      %462 = vmatpush.bf16.msra.mxu0 0
      %463 = vmatpush.bf16.msra.mxu0 0
      %464 = vmatpush.bf16.msra.mxu0 0
      %465 = vmatpush.bf16.msra.mxu0 0
      %466 = vmatpush.bf16.msra.mxu0 0
      %467 = vmatpush.bf16.msra.mxu0 %v438
      %468 = vmatpush.bf16.msra.mxu0 %v436
      %469 = vmatmul.bf16.gmra.mxu0 %v446
      %v470 = vpop.f32.mrf.mxu0
      %v471 = vadd.f32 0.0, %v470
      %v472 = vpop.f32.mrf.mxu0
      %473 = vdwg.mxu0
      %474 = vmatpush.bf16.msra.mxu0 0
      %475 = vmatpush.bf16.msra.mxu0 0
      %476 = vmatpush.bf16.msra.mxu0 0
      %477 = vmatpush.bf16.msra.mxu0 0
      %478 = vmatpush.bf16.msra.mxu0 0
      %479 = vmatpush.bf16.msra.mxu0 0
      %480 = vmatpush.bf16.msra.mxu0 %v433
      %481 = vmatpush.bf16.msra.mxu0 %v427
      %482 = vmatmul.bf16.gmra.mxu0 %v446
      %v483 = vpop.f32.mrf.mxu0
      %v484 = vadd.f32 0.0, %v483
      %v485 = vpop.f32.mrf.mxu0
      %486 = vdwg.mxu0
      %v487 = vadd.f32 %v417, %v458
      %v488 = vadd.f32 %v418, %v471
      %v489 = vadd.f32 %v419, %v484
      %s490 = scalar_lea.vmem %s1, 16
      %v491 = vld [vmem:[%s490] sm:$0xf]
      %492 = vrot.lane.b32.xlu0 %v230, 109
      %v493 = vpop.permute.xlu0 %492
      %494 = vrot.lane.b32.xlu0 %v231, 109
      %v495 = vpop.permute.xlu0 %494
      %496 = vrot.lane.b32.xlu0 %v232, 109
      %v497 = vpop.permute.xlu0 %496
      %498 = vrot.lane.b32.xlu0 %v233, 109
      %v499 = vpop.permute.xlu0 %498
      %500 = vrot.lane.b32.xlu0 %v234, 109
      %v501 = vpop.permute.xlu0 %500
      %502 = vrot.lane.b32.xlu0 %v235, 109
      %v503 = vpop.permute.xlu0 %502
      %vm504 = vcmask 891904
      %v505 = vsel %vm504, %v493, %v495
      %v506 = vsel %vm504, %v495, %v497
      %v507 = vsel %vm504, %v499, %v501
      %v508 = vsel %vm504, %v501, %v503
      %v516 = vsel %vm259, %v491, 0
      %518 = vmatpush.bf16.msra.mxu0 0
      %519 = vmatpush.bf16.msra.mxu0 0
      %520 = vmatpush.bf16.msra.mxu0 0
      %521 = vmatpush.bf16.msra.mxu0 0
      %522 = vmatpush.bf16.msra.mxu0 0
      %523 = vmatpush.bf16.msra.mxu0 0
      %524 = vmatpush.bf16.msra.mxu0 %v507
      %525 = vmatpush.bf16.msra.mxu0 %v505
      %526 = vmatmul.bf16.gmra.mxu0 %v516
      %v527 = vpop.f32.mrf.mxu0
      %v528 = vadd.f32 0.0, %v527
      %v529 = vpop.f32.mrf.mxu0
      %530 = vdwg.mxu0
      %531 = vmatpush.bf16.msra.mxu0 0
      %532 = vmatpush.bf16.msra.mxu0 0
      %533 = vmatpush.bf16.msra.mxu0 0
      %534 = vmatpush.bf16.msra.mxu0 0
      %535 = vmatpush.bf16.msra.mxu0 0
      %536 = vmatpush.bf16.msra.mxu0 0
      %537 = vmatpush.bf16.msra.mxu0 %v508
      %538 = vmatpush.bf16.msra.mxu0 %v506
      %539 = vmatmul.bf16.gmra.mxu0 %v516
      %v540 = vpop.f32.mrf.mxu0
      %v541 = vadd.f32 0.0, %v540
      %v542 = vpop.f32.mrf.mxu0
      %543 = vdwg.mxu0
      %544 = vmatpush.bf16.msra.mxu0 0
      %545 = vmatpush.bf16.msra.mxu0 0
      %546 = vmatpush.bf16.msra.mxu0 0
      %547 = vmatpush.bf16.msra.mxu0 0
      %548 = vmatpush.bf16.msra.mxu0 0
      %549 = vmatpush.bf16.msra.mxu0 0
      %550 = vmatpush.bf16.msra.mxu0 %v503
      %551 = vmatpush.bf16.msra.mxu0 %v497
      %552 = vmatmul.bf16.gmra.mxu0 %v516
      %v553 = vpop.f32.mrf.mxu0
      %v554 = vadd.f32 0.0, %v553
      %v555 = vpop.f32.mrf.mxu0
      %556 = vdwg.mxu0
      %v557 = vadd.f32 %v487, %v528
      %v558 = vadd.f32 %v488, %v541
      %v559 = vadd.f32 %v489, %v554
      %s560 = scalar_lea.vmem %s1, 20
      %v561 = vld [vmem:[%s560] sm:$0xf]
      %562 = vrot.lane.b32.xlu0 %v230, 108
      %v563 = vpop.permute.xlu0 %562
      %564 = vrot.lane.b32.xlu0 %v231, 108
      %v565 = vpop.permute.xlu0 %564
      %566 = vrot.lane.b32.xlu0 %v232, 108
      %v567 = vpop.permute.xlu0 %566
      %568 = vrot.lane.b32.xlu0 %v233, 108
      %v569 = vpop.permute.xlu0 %568
      %570 = vrot.lane.b32.xlu0 %v234, 108
      %v571 = vpop.permute.xlu0 %570
      %572 = vrot.lane.b32.xlu0 %v235, 108
      %v573 = vpop.permute.xlu0 %572
      %vm574 = vcmask 883712
      %v575 = vsel %vm574, %v563, %v565
      %v576 = vsel %vm574, %v565, %v567
      %v577 = vsel %vm574, %v569, %v571
      %v578 = vsel %vm574, %v571, %v573
      %v586 = vsel %vm259, %v561, 0
      %588 = vmatpush.bf16.msra.mxu0 0
      %589 = vmatpush.bf16.msra.mxu0 0
      %590 = vmatpush.bf16.msra.mxu0 0
      %591 = vmatpush.bf16.msra.mxu0 0
      %592 = vmatpush.bf16.msra.mxu0 0
      %593 = vmatpush.bf16.msra.mxu0 0
      %594 = vmatpush.bf16.msra.mxu0 %v577
      %595 = vmatpush.bf16.msra.mxu0 %v575
      %596 = vmatmul.bf16.gmra.mxu0 %v586
      %v597 = vpop.f32.mrf.mxu0
      %v598 = vadd.f32 0.0, %v597
      %v599 = vpop.f32.mrf.mxu0
      %600 = vdwg.mxu0
      %601 = vmatpush.bf16.msra.mxu0 0
      %602 = vmatpush.bf16.msra.mxu0 0
      %603 = vmatpush.bf16.msra.mxu0 0
      %604 = vmatpush.bf16.msra.mxu0 0
      %605 = vmatpush.bf16.msra.mxu0 0
      %606 = vmatpush.bf16.msra.mxu0 0
      %607 = vmatpush.bf16.msra.mxu0 %v578
      %608 = vmatpush.bf16.msra.mxu0 %v576
      %609 = vmatmul.bf16.gmra.mxu0 %v586
      %v610 = vpop.f32.mrf.mxu0
      %v611 = vadd.f32 0.0, %v610
      %v612 = vpop.f32.mrf.mxu0
      %613 = vdwg.mxu0
      %614 = vmatpush.bf16.msra.mxu0 0
      %615 = vmatpush.bf16.msra.mxu0 0
      %616 = vmatpush.bf16.msra.mxu0 0
      %617 = vmatpush.bf16.msra.mxu0 0
      %618 = vmatpush.bf16.msra.mxu0 0
      %619 = vmatpush.bf16.msra.mxu0 0
      %620 = vmatpush.bf16.msra.mxu0 %v573
      %621 = vmatpush.bf16.msra.mxu0 %v567
      %622 = vmatmul.bf16.gmra.mxu0 %v586
      %v623 = vpop.f32.mrf.mxu0
      %v624 = vadd.f32 0.0, %v623
      %v625 = vpop.f32.mrf.mxu0
      %626 = vdwg.mxu0
      %v627 = vadd.f32 %v557, %v598
      %v628 = vadd.f32 %v558, %v611
      %v629 = vadd.f32 %v559, %v624
      %s630 = scalar_lea.vmem %s1, 24
      %v631 = vld [vmem:[%s630] sm:$0xf]
      %632 = vrot.lane.b32.xlu0 %v230, 92
      %v633 = vpop.permute.xlu0 %632
      %634 = vrot.lane.b32.xlu0 %v231, 92
      %v635 = vpop.permute.xlu0 %634
      %636 = vrot.lane.b32.xlu0 %v232, 92
      %v637 = vpop.permute.xlu0 %636
      %638 = vrot.lane.b32.xlu0 %v233, 92
      %v639 = vpop.permute.xlu0 %638
      %640 = vrot.lane.b32.xlu0 %v234, 92
      %v641 = vpop.permute.xlu0 %640
      %642 = vrot.lane.b32.xlu0 %v235, 92
      %v643 = vpop.permute.xlu0 %642
      %vm644 = vcmask 752640
      %v645 = vsel %vm644, %v633, %v635
      %v646 = vsel %vm644, %v635, %v637
      %v647 = vsel %vm644, %v639, %v641
      %v648 = vsel %vm644, %v641, %v643
      %v656 = vsel %vm259, %v631, 0
      %658 = vmatpush.bf16.msra.mxu0 0
      %659 = vmatpush.bf16.msra.mxu0 0
      %660 = vmatpush.bf16.msra.mxu0 0
      %661 = vmatpush.bf16.msra.mxu0 0
      %662 = vmatpush.bf16.msra.mxu0 0
      %663 = vmatpush.bf16.msra.mxu0 0
      %664 = vmatpush.bf16.msra.mxu0 %v647
      %665 = vmatpush.bf16.msra.mxu0 %v645
      %666 = vmatmul.bf16.gmra.mxu0 %v656
      %v667 = vpop.f32.mrf.mxu0
      %v668 = vadd.f32 0.0, %v667
      %v669 = vpop.f32.mrf.mxu0
      %670 = vdwg.mxu0
      %671 = vmatpush.bf16.msra.mxu0 0
      %672 = vmatpush.bf16.msra.mxu0 0
      %673 = vmatpush.bf16.msra.mxu0 0
      %674 = vmatpush.bf16.msra.mxu0 0
      %675 = vmatpush.bf16.msra.mxu0 0
      %676 = vmatpush.bf16.msra.mxu0 0
      %677 = vmatpush.bf16.msra.mxu0 %v648
      %678 = vmatpush.bf16.msra.mxu0 %v646
      %679 = vmatmul.bf16.gmra.mxu0 %v656
      %v680 = vpop.f32.mrf.mxu0
      %v681 = vadd.f32 0.0, %v680
      %v682 = vpop.f32.mrf.mxu0
      %683 = vdwg.mxu0
      %684 = vmatpush.bf16.msra.mxu0 0
      %685 = vmatpush.bf16.msra.mxu0 0
      %686 = vmatpush.bf16.msra.mxu0 0
      %687 = vmatpush.bf16.msra.mxu0 0
      %688 = vmatpush.bf16.msra.mxu0 0
      %689 = vmatpush.bf16.msra.mxu0 0
      %690 = vmatpush.bf16.msra.mxu0 %v643
      %691 = vmatpush.bf16.msra.mxu0 %v637
      %692 = vmatmul.bf16.gmra.mxu0 %v656
      %v693 = vpop.f32.mrf.mxu0
      %v694 = vadd.f32 0.0, %v693
      %v695 = vpop.f32.mrf.mxu0
      %696 = vdwg.mxu0
      %v697 = vadd.f32 %v627, %v668
      %v698 = vadd.f32 %v628, %v681
      %v699 = vadd.f32 %v629, %v694
      %s700 = scalar_lea.vmem %s1, 28
      %v701 = vld [vmem:[%s700] sm:$0xf]
      %702 = vrot.lane.b32.xlu0 %v230, 91
      %v703 = vpop.permute.xlu0 %702
      %704 = vrot.lane.b32.xlu0 %v231, 91
      %v705 = vpop.permute.xlu0 %704
      %706 = vrot.lane.b32.xlu0 %v232, 91
      %v707 = vpop.permute.xlu0 %706
      %708 = vrot.lane.b32.xlu0 %v233, 91
      %v709 = vpop.permute.xlu0 %708
      %710 = vrot.lane.b32.xlu0 %v234, 91
      %v711 = vpop.permute.xlu0 %710
      %712 = vrot.lane.b32.xlu0 %v235, 91
      %v713 = vpop.permute.xlu0 %712
      %vm714 = vcmask 744448
      %v715 = vsel %vm714, %v703, %v705
      %v716 = vsel %vm714, %v705, %v707
      %v717 = vsel %vm714, %v709, %v711
      %v718 = vsel %vm714, %v711, %v713
      %v726 = vsel %vm259, %v701, 0
      %728 = vmatpush.bf16.msra.mxu0 0
      %729 = vmatpush.bf16.msra.mxu0 0
      %730 = vmatpush.bf16.msra.mxu0 0
      %731 = vmatpush.bf16.msra.mxu0 0
      %732 = vmatpush.bf16.msra.mxu0 0
      %733 = vmatpush.bf16.msra.mxu0 0
      %734 = vmatpush.bf16.msra.mxu0 %v717
      %735 = vmatpush.bf16.msra.mxu0 %v715
      %736 = vmatmul.bf16.gmra.mxu0 %v726
      %v737 = vpop.f32.mrf.mxu0
      %v738 = vadd.f32 0.0, %v737
      %v739 = vpop.f32.mrf.mxu0
      %740 = vdwg.mxu0
      %741 = vmatpush.bf16.msra.mxu0 0
      %742 = vmatpush.bf16.msra.mxu0 0
      %743 = vmatpush.bf16.msra.mxu0 0
      %744 = vmatpush.bf16.msra.mxu0 0
      %745 = vmatpush.bf16.msra.mxu0 0
      %746 = vmatpush.bf16.msra.mxu0 0
      %747 = vmatpush.bf16.msra.mxu0 %v718
      %748 = vmatpush.bf16.msra.mxu0 %v716
      %749 = vmatmul.bf16.gmra.mxu0 %v726
      %v750 = vpop.f32.mrf.mxu0
      %v751 = vadd.f32 0.0, %v750
      %v752 = vpop.f32.mrf.mxu0
      %753 = vdwg.mxu0
      %754 = vmatpush.bf16.msra.mxu0 0
      %755 = vmatpush.bf16.msra.mxu0 0
      %756 = vmatpush.bf16.msra.mxu0 0
      %757 = vmatpush.bf16.msra.mxu0 0
      %758 = vmatpush.bf16.msra.mxu0 0
      %759 = vmatpush.bf16.msra.mxu0 0
      %760 = vmatpush.bf16.msra.mxu0 %v713
      %761 = vmatpush.bf16.msra.mxu0 %v707
      %762 = vmatmul.bf16.gmra.mxu0 %v726
      %v763 = vpop.f32.mrf.mxu0
      %v764 = vadd.f32 0.0, %v763
      %v765 = vpop.f32.mrf.mxu0
      %766 = vdwg.mxu0
      %v767 = vadd.f32 %v697, %v738
      %v768 = vadd.f32 %v698, %v751
      %v769 = vadd.f32 %v699, %v764
      %s770 = scalar_lea.vmem %s1, 32
      %v771 = vld [vmem:[%s770] sm:$0xf]
      %772 = vrot.lane.b32.xlu0 %v230, 90
      %v773 = vpop.permute.xlu0 %772
      %774 = vrot.lane.b32.xlu0 %v231, 90
      %v775 = vpop.permute.xlu0 %774
      %776 = vrot.lane.b32.xlu0 %v232, 90
      %v777 = vpop.permute.xlu0 %776
      %778 = vrot.lane.b32.xlu0 %v233, 90
      %v779 = vpop.permute.xlu0 %778
      %780 = vrot.lane.b32.xlu0 %v234, 90
      %v781 = vpop.permute.xlu0 %780
      %782 = vrot.lane.b32.xlu0 %v235, 90
      %v783 = vpop.permute.xlu0 %782
      %vm784 = vcmask 736256
      %v785 = vsel %vm784, %v773, %v775
      %v786 = vsel %vm784, %v775, %v777
      %v787 = vsel %vm784, %v779, %v781
      %v788 = vsel %vm784, %v781, %v783
      %v796 = vsel %vm259, %v771, 0
      %798 = vmatpush.bf16.msra.mxu0 0
      %799 = vmatpush.bf16.msra.mxu0 0
      %800 = vmatpush.bf16.msra.mxu0 0
      %801 = vmatpush.bf16.msra.mxu0 0
      %802 = vmatpush.bf16.msra.mxu0 0
      %803 = vmatpush.bf16.msra.mxu0 0
      %804 = vmatpush.bf16.msra.mxu0 %v787
      %805 = vmatpush.bf16.msra.mxu0 %v785
      %806 = vmatmul.bf16.gmra.mxu0 %v796
      %v807 = vpop.f32.mrf.mxu0
      %v808 = vadd.f32 0.0, %v807
      %v809 = vpop.f32.mrf.mxu0
      %810 = vdwg.mxu0
      %811 = vmatpush.bf16.msra.mxu0 0
      %812 = vmatpush.bf16.msra.mxu0 0
      %813 = vmatpush.bf16.msra.mxu0 0
      %814 = vmatpush.bf16.msra.mxu0 0
      %815 = vmatpush.bf16.msra.mxu0 0
      %816 = vmatpush.bf16.msra.mxu0 0
      %817 = vmatpush.bf16.msra.mxu0 %v788
      %818 = vmatpush.bf16.msra.mxu0 %v786
      %819 = vmatmul.bf16.gmra.mxu0 %v796
      %v820 = vpop.f32.mrf.mxu0
      %v821 = vadd.f32 0.0, %v820
      %v822 = vpop.f32.mrf.mxu0
      %823 = vdwg.mxu0
      %824 = vmatpush.bf16.msra.mxu0 0
      %825 = vmatpush.bf16.msra.mxu0 0
      %826 = vmatpush.bf16.msra.mxu0 0
      %827 = vmatpush.bf16.msra.mxu0 0
      %828 = vmatpush.bf16.msra.mxu0 0
      %829 = vmatpush.bf16.msra.mxu0 0
      %830 = vmatpush.bf16.msra.mxu0 %v783
      %831 = vmatpush.bf16.msra.mxu0 %v777
      %832 = vmatmul.bf16.gmra.mxu0 %v796
      %v833 = vpop.f32.mrf.mxu0
      %v834 = vadd.f32 0.0, %v833
      %v835 = vpop.f32.mrf.mxu0
      %836 = vdwg.mxu0
      %v837 = vadd.f32 %v767, %v808
      %v838 = vadd.f32 %v768, %v821
      %v839 = vadd.f32 %v769, %v834
      %v840 = vld [vmem:[%s2] sm:$0xff]
      %842 = vset.pattern.permute.xlu0 0
      %843 = vperm.xlu0 %842, %v840
      %v844 = vpop.permute.xlu0 %843
      %v846 = vmul.f32 %v837, %v844
      %v847 = vmul.f32 %v838, %v844
      %v848 = vmul.f32 %v839, %v844
      %v849 = vld [vmem:[%s3] sm:$0xff]
      %851 = vset.pattern.permute.xlu0 0
      %852 = vperm.xlu0 %851, %v849
      %v853 = vpop.permute.xlu0 %852
      %v855 = vadd.f32 %v846, %v853
      %v856 = vadd.f32 %v847, %v853
      %v857 = vadd.f32 %v848, %v853
      %v858 = vmax.f32 %v855, 0.0
      %v859 = vmax.f32 %v856, 0.0
      %v860 = vmax.f32 %v857, 0.0
      %861 = vst [vmem:[%s197] sm:$0xff] %v858
      %862 = vst [vmem:[%s197 + $0x8] sm:$0xff] %v859
      %863 = vst.msk [vmem:[%s197 + $0x10] sm:$0xff] %vm259, %v860
      %p864 = scmp.lt.s32.totalorder %s15, 1
      %s865 = scalar_select %p864, %s15, 1
      %s866 = smul.addr %s865, 3
      %s867 = smul.addr %s866, 8
      %s868 = scalar_lea.vmem %s4, %s867
      // Predicated region
      $region37: #{_lambda_.10} parent=35 // pred_check
        %p869 = pneg %p122
      $region38: #{_lambda_.10} parent=35 // pred_check_branch
        %871 = sbr.rel (%p869) target = $region40
      $region39: #{_lambda_.10} parent=35 // pred_region
        _
      $region40: #{_lambda_.10} parent=35 // pred_fallthru
        _
    $region36: #{_lambda_.10} parent=5 // pred_fallthru
      _
    %p872 = scmp.le.s32.totalorder 2, %s10
    // Predicated region
    $region41: #{_lambda_.10} parent=5 // pred_check
      %p873 = pneg %p872
    $region42: #{_lambda_.10} parent=5 // pred_check_branch
      %875 = sbr.rel (%p873) target = $region44
    $region43: #{_lambda_.10} parent=5 // pred_region
      %s876 = ssub.s32 %s10, 2
      // Predicated region
      $region45: #{_lambda_.10} parent=43 // pred_check
        %p877 = pneg %p128
      $region46: #{_lambda_.10} parent=43 // pred_check_branch
        %879 = sbr.rel (%p877) target = $region48
      $region47: #{_lambda_.10} parent=43 // pred_region
        %p880 = scmp.lt.s32.totalorder %s16, 1
        %s881 = scalar_select %p880, %s16, 1
        %s882 = smul.addr %s881, 3
        %s883 = smul.addr %s882, 8
        %s884 = scalar_lea.vmem %s4, %s883
      $region48: #{_lambda_.10} parent=43 // pred_fallthru
        _
    $region44: #{_lambda_.10} parent=5 // pred_fallthru
      _
  $region6: #{_lambda_.10} parent=0 // loop_footer
    %s14 = sadd.s32 1, %s10
  $region7: #{_lambda_.10} parent=0 // loop_footer_branch
    %9 = sbr.rel target = $region3
  $region8: #{_lambda_.10} parent=0 // loop_exit
    _

// kernel: _lambda_.8
$region0: #{_lambda_.8}
  #allocation0 [shape = 'u32[]', space=smem, size = 0x4, offset = 0x4, fixed_abs, tag = 'smem constant byte address 0x4 - core index']
  #allocation1 [shape = 'u32[72,128]{1,0:T(1,128)}', space=vmem, size = 0x9000, scoped, tag = 'internal scratch']
  %s0 = inlined_call_operand.vmem [shape: f32[2,8,256], index: 0, kind: input, shape index: {}]
  %s1 = inlined_call_operand.vmem [shape: bf16[24,8], index: 1, kind: input, shape index: {}]
  %s2 = inlined_call_operand.vmem [shape: f32[24,1], index: 2, kind: input, shape index: {}]
  %s3 = inlined_call_operand.vmem [shape: f32[2,8,256], index: 3, kind: output, shape index: {}]
  %s4 = sld [smem:[#allocation0]]
  $region45: #{_lambda_.8} parent=0
    _
  %s6 = ssub.s32 1, %s4
  %s7 = scalar_select 0, %s6, %s4
  loop: start=0, step=1, limit=4
  $region2: #{_lambda_.8} parent=0 // loop_pre_header
    _
  $region3: #{_lambda_.8} parent=0 // loop_header
    %s9 = sphi 0, %s13
    %p10 = scmp.ge.s32.totalorder %s9, 4
    %s19 = sphi 0, %s21
    %s22 = sphi 0, %s19
    %s23 = sphi 0, %s22
    %s39 = sphi 0, %s23
    %s43 = sphi 0, %s43
    %s45 = sphi 0, %s43
    %s46 = sphi 0, %s45
    %s60 = sphi 0, %s46
    %s64 = sphi 0, %s64
    %s66 = sphi 0, %s64
    %s67 = sphi 0, %s66
    %s81 = sphi 0, %s67
    %s87 = sphi 0, %s89
    %s90 = sphi 0, %s87
    %s91 = sphi 0, %s90
    %s107 = sphi 0, %s91
  $region4: #{_lambda_.8} parent=0 // loop_header_branch
    %12 = sbr.rel (%p10) target = $region8
  $region5: #{_lambda_.8} parent=0 // loop_body
    %s14 = ssub.s32 %s9, 1
    %s15 = ssub.s32 %s9, 2
    %s16 = sadd.s32 %s9, 1
    %s17 = ssub.s32 %s9, %s16
    %p18 = scmp.eq.s32.totalorder %s17, 0
    %s20 = sadd.s32 %s19, 1
    %s21 = scalar_select %p18, %s19, %s20
    %p24 = pneg %p18
    %p25 = scmp.eq.s32.totalorder %s9, 1
    %p26 = por %p24, %p25
    %p27 = scmp.ne.s32.totalorder %s19, %s22
    %p28 = scmp.eq.s32.totalorder %s9, 0
    %p29 = por %p27, %p28
    %p30 = scmp.ne.s32.totalorder %s19, %s22
    %p31 = scmp.eq.s32.totalorder %s14, 1
    %p32 = por %p30, %p31
    %p33 = scmp.ne.s32.totalorder %s22, %s23
    %p34 = scmp.eq.s32.totalorder %s14, 0
    %p35 = por %p33, %p34
    %p36 = scmp.ne.s32.totalorder %s22, %s23
    %p37 = scmp.eq.s32.totalorder %s15, 1
    %p38 = por %p36, %p37
    %p40 = scmp.ne.s32.totalorder %s23, %s39
    %p41 = scmp.eq.s32.totalorder %s15, 0
    %p42 = por %p40, %p41
    %s44 = sadd.s32 %s43, 1
    %p47 = scmp.eq.s32.totalorder %s9, 1
    %p48 = scmp.ne.s32.totalorder %s43, %s45
    %p49 = scmp.eq.s32.totalorder %s9, 0
    %p50 = por %p48, %p49
    %p51 = scmp.ne.s32.totalorder %s43, %s45
    %p52 = scmp.eq.s32.totalorder %s14, 1
    %p53 = por %p51, %p52
    %p54 = scmp.ne.s32.totalorder %s45, %s46
    %p55 = scmp.eq.s32.totalorder %s14, 0
    %p56 = por %p54, %p55
    %p57 = scmp.ne.s32.totalorder %s45, %s46
    %p58 = scmp.eq.s32.totalorder %s15, 1
    %p59 = por %p57, %p58
    %p61 = scmp.ne.s32.totalorder %s46, %s60
    %p62 = scmp.eq.s32.totalorder %s15, 0
    %p63 = por %p61, %p62
    %s65 = sadd.s32 %s64, 1
    %p68 = scmp.eq.s32.totalorder %s9, 1
    %p69 = scmp.ne.s32.totalorder %s64, %s66
    %p70 = scmp.eq.s32.totalorder %s9, 0
    %p71 = por %p69, %p70
    %p72 = scmp.ne.s32.totalorder %s64, %s66
    %p73 = scmp.eq.s32.totalorder %s14, 1
    %p74 = por %p72, %p73
    %p75 = scmp.ne.s32.totalorder %s66, %s67
    %p76 = scmp.eq.s32.totalorder %s14, 0
    %p77 = por %p75, %p76
    %p78 = scmp.ne.s32.totalorder %s66, %s67
    %p79 = scmp.eq.s32.totalorder %s15, 1
    %p80 = por %p78, %p79
    %p82 = scmp.ne.s32.totalorder %s67, %s81
    %p83 = scmp.eq.s32.totalorder %s15, 0
    %p84 = por %p82, %p83
    %s85 = ssub.s32 %s9, %s16
    %p86 = scmp.eq.s32.totalorder %s85, 0
    %s88 = sadd.s32 %s87, 1
    %s89 = scalar_select %p86, %s87, %s88
    %p92 = pneg %p86
    %p93 = scmp.eq.s32.totalorder %s9, 1
    %p94 = por %p92, %p93
    %p95 = scmp.ne.s32.totalorder %s87, %s90
    %p96 = scmp.eq.s32.totalorder %s9, 0
    %p97 = por %p95, %p96
    %p98 = scmp.ne.s32.totalorder %s87, %s90
    %p99 = scmp.eq.s32.totalorder %s14, 1
    %p100 = por %p98, %p99
    %p101 = scmp.ne.s32.totalorder %s90, %s91
    %p102 = scmp.eq.s32.totalorder %s14, 0
    %p103 = por %p101, %p102
    %p104 = scmp.ne.s32.totalorder %s90, %s91
    %p105 = scmp.eq.s32.totalorder %s15, 1
    %p106 = por %p104, %p105
    %p108 = scmp.ne.s32.totalorder %s91, %s107
    %p109 = scmp.eq.s32.totalorder %s15, 0
    %p110 = por %p108, %p109
    %p111 = scmp.le.s32.totalorder 1, %s9
    %p112 = scmp.lt.s32.totalorder %s9, 3
    %p113 = pnand %p111, %p112
    %p114 = pneg %p113
    // Predicated region
    $region9: #{_lambda_.8} parent=5 // pred_check
      _
    $region10: #{_lambda_.8} parent=5 // pred_check_branch
      %116 = sbr.rel (%p113) target = $region12
    $region11: #{_lambda_.8} parent=5 // pred_region
      %s117 = ssub.s32 %s9, 1
      // Predicated region
      $region13: #{_lambda_.8} parent=11 // pred_check
        %p118 = pneg %p56
      $region14: #{_lambda_.8} parent=11 // pred_check_branch
        %120 = sbr.rel (%p118) target = $region16
      $region15: #{_lambda_.8} parent=11 // pred_region
        _
      $region16: #{_lambda_.8} parent=11 // pred_fallthru
        _
      // Predicated region
      $region17: #{_lambda_.8} parent=11 // pred_check
        %p121 = pneg %p77
      $region18: #{_lambda_.8} parent=11 // pred_check_branch
        %123 = sbr.rel (%p121) target = $region20
      $region19: #{_lambda_.8} parent=11 // pred_region
        _
      $region20: #{_lambda_.8} parent=11 // pred_fallthru
        _
    $region12: #{_lambda_.8} parent=5 // pred_fallthru
      _
    %p124 = scmp.lt.s32.totalorder %s9, 2
    // Predicated region
    $region21: #{_lambda_.8} parent=5 // pred_check
      %p125 = pneg %p124
    $region22: #{_lambda_.8} parent=5 // pred_check_branch
      %127 = sbr.rel (%p125) target = $region24
    $region23: #{_lambda_.8} parent=5 // pred_region
      // Predicated region
      $region25: #{_lambda_.8} parent=23 // pred_check
        %p128 = pneg %p29
      $region26: #{_lambda_.8} parent=23 // pred_check_branch
        %130 = sbr.rel (%p128) target = $region28
      $region27: #{_lambda_.8} parent=23 // pred_region
        %p131 = scmp.lt.s32.totalorder %s9, 1
        %s132 = scalar_select %p131, %s9, 1
        %s133 = smul.addr %s132, 2
        %s134 = smul.addr %s133, 8
        %s135 = scalar_lea.vmem %s0, %s134
      $region28: #{_lambda_.8} parent=23 // pred_fallthru
        _
    $region24: #{_lambda_.8} parent=5 // pred_fallthru
      _
    %p136 = scmp.le.s32.totalorder 1, %s9
    %p137 = scmp.lt.s32.totalorder %s9, 3
    %p138 = pnand %p136, %p137
    %p139 = pneg %p138
    // Predicated region
    $region29: #{_lambda_.8} parent=5 // pred_check
      _
    $region30: #{_lambda_.8} parent=5 // pred_check_branch
      %141 = sbr.rel (%p138) target = $region32
    $region31: #{_lambda_.8} parent=5 // pred_region
      %s142 = ssub.s32 %s9, 1
      %p143 = scmp.lt.s32.totalorder %s14, 1
      %s144 = scalar_select %p143, %s14, 1
      %s145 = smul.addr %s144, 2
      %s146 = smul.addr %s145, 8
      %s147 = scalar_lea.vmem %s0, %s146
      %p148 = pneg %p35
      %p149 = pneg %p32
      %p150 = pneg %p56
      %p151 = pneg %p53
      %p152 = pneg %p77
      %p153 = pneg %p74
      %p154 = pneg %p103
      %p155 = pneg %p100
      %p156 = scmp.lt.s32.totalorder %s14, 1
      %s157 = scalar_select %p156, %s14, 1
      %s158 = smul.addr %s157, 2
      %s159 = smul.addr %s158, 8
      %s160 = scalar_lea.vmem %s3, %s159
      %p161 = scmp.lt.s32.totalorder %s14, 1
      %s162 = scalar_select %p161, %s14, 1
      %s163 = smul.addr %s162, 2
      %s164 = smul.addr %s163, 8
      %s165 = scalar_lea.vmem %s0, %s164
      %p166 = scmp.lt.s32.totalorder %s14, 1
      %s167 = scalar_select %p166, %s14, 1
      %s168 = smul.addr %s167, 2
      %s169 = smul.addr %s168, 8
      %s170 = scalar_lea.vmem %s3, %s169
      %v172 = vld [vmem:[%s165] sm:$0xff]
      %v173 = vld [vmem:[%s165 + $0x8] sm:$0xff]
      %v174 = vld [vmem:[%s1] sm:$0xf]
      %v175 = vld [vmem:[%s1 + $0x4] sm:$0xf]
      %v176 = vld [vmem:[%s1 + $0x8] sm:$0xf]
      %v177 = vpack.c.bf16 %v172, %v172
      %v178 = vpack.c.bf16 %v173, %v173
      %v179 = vld [vmem:[%s2] sm:$0xff]
      %v180 = vld [vmem:[%s2 + $0x8] sm:$0xff]
      %v181 = vld [vmem:[%s2 + $0x10] sm:$0xff]
      %183 = vset.pattern.permute.xlu0 0
      %184 = vperm.xlu0 %183, %v179
      %v185 = vpop.permute.xlu0 %184
      %188 = vset.pattern.permute.xlu0 0
      %189 = vperm.xlu0 %188, %v180
      %v190 = vpop.permute.xlu0 %189
      %193 = vset.pattern.permute.xlu0 0
      %194 = vperm.xlu0 %193, %v181
      %v195 = vpop.permute.xlu0 %194
      %v200 = vunpack.c.l.b16 %v174
      %v201 = vunpack.c.l.b16 %v175
      %v202 = vunpack.c.l.b16 %v176
      %v203 = vpack.c.b16 %v201, %v200
      %v204 = vpack.c.b16 %v202, %v202
      %vm205 = vcmask 64512
      %v207 = vsel %vm205, %v203, 0
      %v210 = vsel %vm205, %v204, 0
      %vm212 = vcmask 1043456
      %v214 = vsel %vm212, %v177, 0
      %v217 = vsel %vm212, %v178, 0
      %219 = vmatpush.bf16.msra.mxu0 0
      %220 = vmatpush.bf16.msra.mxu0 0
      %221 = vmatpush.bf16.msra.mxu0 0
      %222 = vmatpush.bf16.msra.mxu0 0
      %223 = vmatpush.bf16.msra.mxu0 0
      %224 = vmatpush.bf16.msra.mxu0 0
      %225 = vmatpush.bf16.msra.mxu0 0
      %226 = vmatpush.bf16.msra.mxu0 %v214
      %227 = vmatmul.bf16.gmra.mxu0 %v207
      %v228 = vpop.f32.mrf.mxu0
      %v229 = vadd.f32 %v185, %v228
      %v230 = vpop.f32.mrf.mxu0
      %v231 = vadd.f32 %v190, %v230
      %232 = vmatmul.bf16.gmra.mxu0 %v210
      %v233 = vpop.f32.mrf.mxu0
      %v234 = vadd.f32 %v195, %v233
      %v235 = vpop.f32.mrf.mxu0
      %236 = vdwg.mxu0
      %237 = vmatpush.bf16.msra.mxu0 0
      %238 = vmatpush.bf16.msra.mxu0 0
      %239 = vmatpush.bf16.msra.mxu0 0
      %240 = vmatpush.bf16.msra.mxu0 0
      %241 = vmatpush.bf16.msra.mxu0 0
      %242 = vmatpush.bf16.msra.mxu0 0
      %243 = vmatpush.bf16.msra.mxu0 0
      %244 = vmatpush.bf16.msra.mxu0 %v217
      %245 = vmatmul.bf16.gmra.mxu0 %v207
      %v246 = vpop.f32.mrf.mxu0
      %v247 = vadd.f32 %v185, %v246
      %v248 = vpop.f32.mrf.mxu0
      %v249 = vadd.f32 %v190, %v248
      %250 = vmatmul.bf16.gmra.mxu0 %v210
      %v251 = vpop.f32.mrf.mxu0
      %v252 = vadd.f32 %v195, %v251
      %v253 = vpop.f32.mrf.mxu0
      %254 = vdwg.mxu0
      %v255 = vpack.c.bf16 %v247, %v229
      %v256 = vpack.c.bf16 %v249, %v231
      %v257 = vpack.c.bf16 %v252, %v234
      %v259 = vunpack.c.l.b16 %v256
      %v260 = vunpack.c.h.b16 %v256
      %v261 = vpack.c.b16 %v259, %v259
      %v262 = vpack.c.b16 %v260, %v260
      %265 = vxpose.binary.xlu0.c.b16.start [1/16] %v262, %v261, 128
      %266 = vxpose.binary.xlu0.c.b16.cont [2/16] 0, 0, 128
      %267 = vxpose.binary.xlu0.c.b16.cont [3/16] 0, 0, 128
      %268 = vxpose.binary.xlu0.c.b16.cont [4/16] 0, 0, 128
      %269 = vxpose.binary.xlu0.c.b16.cont [5/16] 0, 0, 128
      %270 = vxpose.binary.xlu0.c.b16.cont [6/16] 0, 0, 128
      %271 = vxpose.binary.xlu0.c.b16.cont [7/16] 0, 0, 128
      %272 = vxpose.binary.xlu0.c.b16.end [8/16] 0, 0, 128
      %v273 = vpop.trf.xlu0
      %v274 = vpop.trf.xlu0
      %v275 = vpop.trf.xlu0
      %v276 = vpop.trf.xlu0
      %v277 = vpop.trf.xlu0
      %v278 = vpop.trf.xlu0
      %v279 = vpop.trf.xlu0
      %v280 = vpop.trf.xlu0
      %v281 = vpop.trf.xlu0
      %v282 = vpop.trf.xlu0
      %v283 = vpop.trf.xlu0
      %v284 = vpop.trf.xlu0
      %v285 = vpop.trf.xlu0
      %v286 = vpop.trf.xlu0
      %v287 = vpop.trf.xlu0
      %v288 = vpop.trf.xlu0
      %v290 = vunpack.c.l.b16 %v255
      %v291 = vunpack.c.h.b16 %v255
      %v292 = vpack.c.b16 %v290, %v290
      %v293 = vpack.c.b16 %v291, %v291
      %v295 = vsel %vm205, %v273, 0
      %v298 = vsel %vm205, %v275, 0
      %v301 = vsel %vm205, %v277, 0
      %v304 = vsel %vm205, %v279, 0
      %v307 = vsel %vm205, %v281, 0
      %v310 = vsel %vm205, %v283, 0
      %v313 = vsel %vm205, %v285, 0
      %v316 = vsel %vm205, %v287, 0
      %v319 = vsel %vm205, %v274, 0
      %v322 = vsel %vm205, %v276, 0
      %v325 = vsel %vm205, %v278, 0
      %v328 = vsel %vm205, %v280, 0
      %v331 = vsel %vm205, %v282, 0
      %v334 = vsel %vm205, %v284, 0
      %v337 = vsel %vm205, %v286, 0
      %v340 = vsel %vm205, %v288, 0
      %v343 = vsel %vm212, %v292, 0
      %v346 = vsel %vm212, %v293, 0
      %348 = vmatpush.bf16.msra.mxu0 0
      %349 = vmatpush.bf16.msra.mxu0 0
      %350 = vmatpush.bf16.msra.mxu0 0
      %351 = vmatpush.bf16.msra.mxu0 0
      %352 = vmatpush.bf16.msra.mxu0 0
      %353 = vmatpush.bf16.msra.mxu0 0
      %354 = vmatpush.bf16.msra.mxu0 0
      %355 = vmatpush.bf16.msra.mxu0 %v343
      %356 = vmatmul.bf16.gmra.mxu0 %v295
      %v357 = vpop.f32.mrf.mxu0
      %v358 = vadd.f32 0.0, %v357
      %v359 = vpop.f32.mrf.mxu0
      %v360 = vadd.f32 0.0, %v359
      %361 = vmatmul.bf16.gmra.mxu0 %v298
      %v362 = vpop.f32.mrf.mxu0
      %v363 = vadd.f32 0.0, %v362
      %v364 = vpop.f32.mrf.mxu0
      %v365 = vadd.f32 0.0, %v364
      %366 = vmatmul.bf16.gmra.mxu0 %v301
      %v367 = vpop.f32.mrf.mxu0
      %v368 = vadd.f32 0.0, %v367
      %v369 = vpop.f32.mrf.mxu0
      %v370 = vadd.f32 0.0, %v369
      %371 = vmatmul.bf16.gmra.mxu0 %v304
      %v372 = vpop.f32.mrf.mxu0
      %v373 = vadd.f32 0.0, %v372
      %v374 = vpop.f32.mrf.mxu0
      %v375 = vadd.f32 0.0, %v374
      %376 = vmatmul.bf16.gmra.mxu0 %v307
      %v377 = vpop.f32.mrf.mxu0
      %v378 = vadd.f32 0.0, %v377
      %v379 = vpop.f32.mrf.mxu0
      %v380 = vadd.f32 0.0, %v379
      %381 = vmatmul.bf16.gmra.mxu0 %v310
      %v382 = vpop.f32.mrf.mxu0
      %v383 = vadd.f32 0.0, %v382
      %v384 = vpop.f32.mrf.mxu0
      %v385 = vadd.f32 0.0, %v384
      %386 = vmatmul.bf16.gmra.mxu0 %v313
      %v387 = vpop.f32.mrf.mxu0
      %v388 = vadd.f32 0.0, %v387
      %v389 = vpop.f32.mrf.mxu0
      %v390 = vadd.f32 0.0, %v389
      %391 = vmatmul.bf16.gmra.mxu0 %v316
      %v392 = vpop.f32.mrf.mxu0
      %v393 = vadd.f32 0.0, %v392
      %v394 = vpop.f32.mrf.mxu0
      %v395 = vadd.f32 0.0, %v394
      %396 = vmatmul.bf16.gmra.mxu0 %v319
      %v397 = vpop.f32.mrf.mxu0
      %v398 = vadd.f32 0.0, %v397
      %v399 = vpop.f32.mrf.mxu0
      %v400 = vadd.f32 0.0, %v399
      %401 = vmatmul.bf16.gmra.mxu0 %v322
      %v402 = vpop.f32.mrf.mxu0
      %v403 = vadd.f32 0.0, %v402
      %v404 = vpop.f32.mrf.mxu0
      %v405 = vadd.f32 0.0, %v404
      %406 = vmatmul.bf16.gmra.mxu0 %v325
      %v407 = vpop.f32.mrf.mxu0
      %v408 = vadd.f32 0.0, %v407
      %v409 = vpop.f32.mrf.mxu0
      %v410 = vadd.f32 0.0, %v409
      %411 = vmatmul.bf16.gmra.mxu0 %v328
      %v412 = vpop.f32.mrf.mxu0
      %v413 = vadd.f32 0.0, %v412
      %v414 = vpop.f32.mrf.mxu0
      %v415 = vadd.f32 0.0, %v414
      %416 = vmatmul.bf16.gmra.mxu0 %v331
      %v417 = vpop.f32.mrf.mxu0
      %v418 = vadd.f32 0.0, %v417
      %v419 = vpop.f32.mrf.mxu0
      %v420 = vadd.f32 0.0, %v419
      %421 = vmatmul.bf16.gmra.mxu0 %v334
      %v422 = vpop.f32.mrf.mxu0
      %v423 = vadd.f32 0.0, %v422
      %v424 = vpop.f32.mrf.mxu0
      %v425 = vadd.f32 0.0, %v424
      %426 = vmatmul.bf16.gmra.mxu0 %v337
      %v427 = vpop.f32.mrf.mxu0
      %v428 = vadd.f32 0.0, %v427
      %v429 = vpop.f32.mrf.mxu0
      %v430 = vadd.f32 0.0, %v429
      %431 = vmatmul.bf16.gmra.mxu0 %v340
      %v432 = vpop.f32.mrf.mxu0
      %v433 = vadd.f32 0.0, %v432
      %v434 = vpop.f32.mrf.mxu0
      %v435 = vadd.f32 0.0, %v434
      %436 = vdwg.mxu0
      %437 = vmatpush.bf16.msra.mxu0 0
      %438 = vmatpush.bf16.msra.mxu0 0
      %439 = vmatpush.bf16.msra.mxu0 0
      %440 = vmatpush.bf16.msra.mxu0 0
      %441 = vmatpush.bf16.msra.mxu0 0
      %442 = vmatpush.bf16.msra.mxu0 0
      %443 = vmatpush.bf16.msra.mxu0 0
      %444 = vmatpush.bf16.msra.mxu0 %v346
      %445 = vmatmul.bf16.gmra.mxu0 %v295
      %v446 = vpop.f32.mrf.mxu0
      %v447 = vadd.f32 0.0, %v446
      %v448 = vpop.f32.mrf.mxu0
      %v449 = vadd.f32 0.0, %v448
      %450 = vmatmul.bf16.gmra.mxu0 %v298
      %v451 = vpop.f32.mrf.mxu0
      %v452 = vadd.f32 0.0, %v451
      %v453 = vpop.f32.mrf.mxu0
      %v454 = vadd.f32 0.0, %v453
      %455 = vmatmul.bf16.gmra.mxu0 %v301
      %v456 = vpop.f32.mrf.mxu0
      %v457 = vadd.f32 0.0, %v456
      %v458 = vpop.f32.mrf.mxu0
      %v459 = vadd.f32 0.0, %v458
      %460 = vmatmul.bf16.gmra.mxu0 %v304
      %v461 = vpop.f32.mrf.mxu0
      %v462 = vadd.f32 0.0, %v461
      %v463 = vpop.f32.mrf.mxu0
      %v464 = vadd.f32 0.0, %v463
      %465 = vmatmul.bf16.gmra.mxu0 %v307
      %v466 = vpop.f32.mrf.mxu0
      %v467 = vadd.f32 0.0, %v466
      %v468 = vpop.f32.mrf.mxu0
      %v469 = vadd.f32 0.0, %v468
      %470 = vmatmul.bf16.gmra.mxu0 %v310
      %v471 = vpop.f32.mrf.mxu0
      %v472 = vadd.f32 0.0, %v471
      %v473 = vpop.f32.mrf.mxu0
      %v474 = vadd.f32 0.0, %v473
      %475 = vmatmul.bf16.gmra.mxu0 %v313
      %v476 = vpop.f32.mrf.mxu0
      %v477 = vadd.f32 0.0, %v476
      %v478 = vpop.f32.mrf.mxu0
      %v479 = vadd.f32 0.0, %v478
      %480 = vmatmul.bf16.gmra.mxu0 %v316
      %v481 = vpop.f32.mrf.mxu0
      %v482 = vadd.f32 0.0, %v481
      %v483 = vpop.f32.mrf.mxu0
      %v484 = vadd.f32 0.0, %v483
      %485 = vmatmul.bf16.gmra.mxu0 %v319
      %v486 = vpop.f32.mrf.mxu0
      %v487 = vadd.f32 0.0, %v486
      %v488 = vpop.f32.mrf.mxu0
      %v489 = vadd.f32 0.0, %v488
      %490 = vmatmul.bf16.gmra.mxu0 %v322
      %v491 = vpop.f32.mrf.mxu0
      %v492 = vadd.f32 0.0, %v491
      %v493 = vpop.f32.mrf.mxu0
      %v494 = vadd.f32 0.0, %v493
      %495 = vmatmul.bf16.gmra.mxu0 %v325
      %v496 = vpop.f32.mrf.mxu0
      %v497 = vadd.f32 0.0, %v496
      %v498 = vpop.f32.mrf.mxu0
      %v499 = vadd.f32 0.0, %v498
      %500 = vmatmul.bf16.gmra.mxu0 %v328
      %v501 = vpop.f32.mrf.mxu0
      %v502 = vadd.f32 0.0, %v501
      %v503 = vpop.f32.mrf.mxu0
      %v504 = vadd.f32 0.0, %v503
      %505 = vmatmul.bf16.gmra.mxu0 %v331
      %v506 = vpop.f32.mrf.mxu0
      %v507 = vadd.f32 0.0, %v506
      %v508 = vpop.f32.mrf.mxu0
      %v509 = vadd.f32 0.0, %v508
      %510 = vmatmul.bf16.gmra.mxu0 %v334
      %v511 = vpop.f32.mrf.mxu0
      %v512 = vadd.f32 0.0, %v511
      %v513 = vpop.f32.mrf.mxu0
      %v514 = vadd.f32 0.0, %v513
      %515 = vmatmul.bf16.gmra.mxu0 %v337
      %v516 = vpop.f32.mrf.mxu0
      %v517 = vadd.f32 0.0, %v516
      %v518 = vpop.f32.mrf.mxu0
      %v519 = vadd.f32 0.0, %v518
      %520 = vmatmul.bf16.gmra.mxu0 %v340
      %v521 = vpop.f32.mrf.mxu0
      %v522 = vadd.f32 0.0, %v521
      %v523 = vpop.f32.mrf.mxu0
      %v524 = vadd.f32 0.0, %v523
      %525 = vdwg.mxu0
      %v526 = vmax.f32 %v358, %v363
      %v527 = vmax.f32 %v360, %v365
      %v528 = vmax.f32 %v526, %v368
      %v529 = vmax.f32 %v527, %v370
      %v530 = vmax.f32 %v528, %v373
      %v531 = vmax.f32 %v529, %v375
      %v532 = vmax.f32 %v530, %v378
      %v533 = vmax.f32 %v531, %v380
      %v534 = vmax.f32 %v532, %v383
      %v535 = vmax.f32 %v533, %v385
      %v536 = vmax.f32 %v534, %v388
      %v537 = vmax.f32 %v535, %v390
      %v538 = vmax.f32 %v536, %v393
      %v539 = vmax.f32 %v537, %v395
      %v540 = vmax.f32 %v538, %v398
      %v541 = vmax.f32 %v539, %v400
      %v542 = vmax.f32 %v540, %v403
      %v543 = vmax.f32 %v541, %v405
      %v544 = vmax.f32 %v542, %v408
      %v545 = vmax.f32 %v543, %v410
      %v546 = vmax.f32 %v544, %v413
      %v547 = vmax.f32 %v545, %v415
      %v548 = vmax.f32 %v546, %v418
      %v549 = vmax.f32 %v547, %v420
      %v550 = vmax.f32 %v548, %v423
      %v551 = vmax.f32 %v549, %v425
      %v552 = vmax.f32 %v550, %v428
      %v553 = vmax.f32 %v551, %v430
      %v554 = vmax.f32 %v552, %v433
      %v555 = vmax.f32 %v553, %v435
      %v556 = vmax.f32 %v554, %v555
      %v557 = vrot.slane %v556, 4
      %v558 = vmax.f32 %v556, %v557
      %v559 = vrot.slane %v558, 2
      %v560 = vmax.f32 %v558, %v559
      %v561 = vrot.slane %v560, 1
      %v562 = vmax.f32 %v560, %v561
      %v563 = vmax.f32 %v447, %v452
      %v564 = vmax.f32 %v449, %v454
      %v565 = vmax.f32 %v563, %v457
      %v566 = vmax.f32 %v564, %v459
      %v567 = vmax.f32 %v565, %v462
      %v568 = vmax.f32 %v566, %v464
      %v569 = vmax.f32 %v567, %v467
      %v570 = vmax.f32 %v568, %v469
      %v571 = vmax.f32 %v569, %v472
      %v572 = vmax.f32 %v570, %v474
      %v573 = vmax.f32 %v571, %v477
      %v574 = vmax.f32 %v572, %v479
      %v575 = vmax.f32 %v573, %v482
      %v576 = vmax.f32 %v574, %v484
      %v577 = vmax.f32 %v575, %v487
      %v578 = vmax.f32 %v576, %v489
      %v579 = vmax.f32 %v577, %v492
      %v580 = vmax.f32 %v578, %v494
      %v581 = vmax.f32 %v579, %v497
      %v582 = vmax.f32 %v580, %v499
      %v583 = vmax.f32 %v581, %v502
      %v584 = vmax.f32 %v582, %v504
      %v585 = vmax.f32 %v583, %v507
      %v586 = vmax.f32 %v584, %v509
      %v587 = vmax.f32 %v585, %v512
      %v588 = vmax.f32 %v586, %v514
      %v589 = vmax.f32 %v587, %v517
      %v590 = vmax.f32 %v588, %v519
      %v591 = vmax.f32 %v589, %v522
      %v592 = vmax.f32 %v590, %v524
      %v593 = vmax.f32 %v591, %v592
      %v594 = vrot.slane %v593, 4
      %v595 = vmax.f32 %v593, %v594
      %v596 = vrot.slane %v595, 2
      %v597 = vmax.f32 %v595, %v596
      %v598 = vrot.slane %v597, 1
      %v599 = vmax.f32 %v597, %v598
      %v600 = vsub.f32 %v358, %v562
      %v601 = vsub.f32 %v447, %v599
      %v602 = vsub.f32 %v360, %v562
      %v603 = vsub.f32 %v449, %v599
      %v604 = vsub.f32 %v363, %v562
      %v605 = vsub.f32 %v452, %v599
      %v606 = vsub.f32 %v365, %v562
      %v607 = vsub.f32 %v454, %v599
      %v608 = vsub.f32 %v368, %v562
      %v609 = vsub.f32 %v457, %v599
      %v610 = vsub.f32 %v370, %v562
      %v611 = vsub.f32 %v459, %v599
      %v612 = vsub.f32 %v373, %v562
      %v613 = vsub.f32 %v462, %v599
      %v614 = vsub.f32 %v375, %v562
      %v615 = vsub.f32 %v464, %v599
      %v616 = vsub.f32 %v378, %v562
      %v617 = vsub.f32 %v467, %v599
      %v618 = vsub.f32 %v380, %v562
      %v619 = vsub.f32 %v469, %v599
      %v620 = vsub.f32 %v383, %v562
      %v621 = vsub.f32 %v472, %v599
      %v622 = vsub.f32 %v385, %v562
      %v623 = vsub.f32 %v474, %v599
      %v624 = vsub.f32 %v388, %v562
      %v625 = vsub.f32 %v477, %v599
      %v626 = vsub.f32 %v390, %v562
      %v627 = vsub.f32 %v479, %v599
      %v628 = vsub.f32 %v393, %v562
      %v629 = vsub.f32 %v482, %v599
      %v630 = vsub.f32 %v395, %v562
      %v631 = vsub.f32 %v484, %v599
      %v632 = vsub.f32 %v398, %v562
      %v633 = vsub.f32 %v487, %v599
      %v634 = vsub.f32 %v400, %v562
      %v635 = vsub.f32 %v489, %v599
      %v636 = vsub.f32 %v403, %v562
      %v637 = vsub.f32 %v492, %v599
      %v638 = vsub.f32 %v405, %v562
      %v639 = vsub.f32 %v494, %v599
      %v640 = vsub.f32 %v408, %v562
      %v641 = vsub.f32 %v497, %v599
      %v642 = vsub.f32 %v410, %v562
      %v643 = vsub.f32 %v499, %v599
      %v644 = vsub.f32 %v413, %v562
      %v645 = vsub.f32 %v502, %v599
      %v646 = vsub.f32 %v415, %v562
      %v647 = vsub.f32 %v504, %v599
      %v648 = vsub.f32 %v418, %v562
      %v649 = vsub.f32 %v507, %v599
      %v650 = vsub.f32 %v420, %v562
      %v651 = vsub.f32 %v509, %v599
      %v652 = vsub.f32 %v423, %v562
      %v653 = vsub.f32 %v512, %v599
      %v654 = vsub.f32 %v425, %v562
      %v655 = vsub.f32 %v514, %v599
      %v656 = vsub.f32 %v428, %v562
      %v657 = vsub.f32 %v517, %v599
      %v658 = vsub.f32 %v430, %v562
      %v659 = vsub.f32 %v519, %v599
      %v660 = vsub.f32 %v433, %v562
      %v661 = vsub.f32 %v522, %v599
      %v662 = vsub.f32 %v435, %v562
      %v663 = vsub.f32 %v524, %v599
      %v664 = vmul.f32 %v600, 1.442695
      %v665 = vpow.pop %v664
      %v666 = vmul.f32 %v601, 1.442695
      %v667 = vpow.pop %v666
      %v668 = vmul.f32 %v602, 1.442695
      %v669 = vpow.pop %v668
      %v670 = vmul.f32 %v603, 1.442695
      %v671 = vpow.pop %v670
      %v672 = vmul.f32 %v604, 1.442695
      %v673 = vpow.pop %v672
      %v674 = vmul.f32 %v605, 1.442695
      %v675 = vpow.pop %v674
      %v676 = vmul.f32 %v606, 1.442695
      %v677 = vpow.pop %v676
      %v678 = vmul.f32 %v607, 1.442695
      %v679 = vpow.pop %v678
      %v680 = vmul.f32 %v608, 1.442695
      %v681 = vpow.pop %v680
      %v682 = vmul.f32 %v609, 1.442695
      %v683 = vpow.pop %v682
      %v684 = vmul.f32 %v610, 1.442695
      %v685 = vpow.pop %v684
      %v686 = vmul.f32 %v611, 1.442695
      %v687 = vpow.pop %v686
      %v688 = vmul.f32 %v612, 1.442695
      %v689 = vpow.pop %v688
      %v690 = vmul.f32 %v613, 1.442695
      %v691 = vpow.pop %v690
      %v692 = vmul.f32 %v614, 1.442695
      %v693 = vpow.pop %v692
      %v694 = vmul.f32 %v615, 1.442695
      %v695 = vpow.pop %v694
      %v696 = vmul.f32 %v616, 1.442695
      %v697 = vpow.pop %v696
      %v698 = vmul.f32 %v617, 1.442695
      %v699 = vpow.pop %v698
      %v700 = vmul.f32 %v618, 1.442695
      %v701 = vpow.pop %v700
      %v702 = vmul.f32 %v619, 1.442695
      %v703 = vpow.pop %v702
      %v704 = vmul.f32 %v620, 1.442695
      %v705 = vpow.pop %v704
      %v706 = vmul.f32 %v621, 1.442695
      %v707 = vpow.pop %v706
      %v708 = vmul.f32 %v622, 1.442695
      %v709 = vpow.pop %v708
      %v710 = vmul.f32 %v623, 1.442695
      %v711 = vpow.pop %v710
      %v712 = vmul.f32 %v624, 1.442695
      %v713 = vpow.pop %v712
      %v714 = vmul.f32 %v625, 1.442695
      %v715 = vpow.pop %v714
      %v716 = vmul.f32 %v626, 1.442695
      %v717 = vpow.pop %v716
      %v718 = vmul.f32 %v627, 1.442695
      %v719 = vpow.pop %v718
      %v720 = vmul.f32 %v628, 1.442695
      %v721 = vpow.pop %v720
      %v722 = vmul.f32 %v629, 1.442695
      %v723 = vpow.pop %v722
      %v724 = vmul.f32 %v630, 1.442695
      %v725 = vpow.pop %v724
      %v726 = vmul.f32 %v631, 1.442695
      %v727 = vpow.pop %v726
      %v728 = vmul.f32 %v632, 1.442695
      %v729 = vpow.pop %v728
      %v730 = vmul.f32 %v633, 1.442695
      %v731 = vpow.pop %v730
      %v732 = vmul.f32 %v634, 1.442695
      %v733 = vpow.pop %v732
      %v734 = vmul.f32 %v635, 1.442695
      %v735 = vpow.pop %v734
      %v736 = vmul.f32 %v636, 1.442695
      %v737 = vpow.pop %v736
      %v738 = vmul.f32 %v637, 1.442695
      %v739 = vpow.pop %v738
      %v740 = vmul.f32 %v638, 1.442695
      %v741 = vpow.pop %v740
      %v742 = vmul.f32 %v639, 1.442695
      %v743 = vpow.pop %v742
      %v744 = vmul.f32 %v640, 1.442695
      %v745 = vpow.pop %v744
      %v746 = vmul.f32 %v641, 1.442695
      %v747 = vpow.pop %v746
      %v748 = vmul.f32 %v642, 1.442695
      %v749 = vpow.pop %v748
      %v750 = vmul.f32 %v643, 1.442695
      %v751 = vpow.pop %v750
      %v752 = vmul.f32 %v644, 1.442695
      %v753 = vpow.pop %v752
      %v754 = vmul.f32 %v645, 1.442695
      %v755 = vpow.pop %v754
      %v756 = vmul.f32 %v646, 1.442695
      %v757 = vpow.pop %v756
      %v758 = vmul.f32 %v647, 1.442695
      %v759 = vpow.pop %v758
      %v760 = vmul.f32 %v648, 1.442695
      %v761 = vpow.pop %v760
      %v762 = vmul.f32 %v649, 1.442695
      %v763 = vpow.pop %v762
      %v764 = vmul.f32 %v650, 1.442695
      %v765 = vpow.pop %v764
      %v766 = vmul.f32 %v651, 1.442695
      %v767 = vpow.pop %v766
      %v768 = vmul.f32 %v652, 1.442695
      %v769 = vpow.pop %v768
      %v770 = vmul.f32 %v653, 1.442695
      %v771 = vpow.pop %v770
      %v772 = vmul.f32 %v654, 1.442695
      %v773 = vpow.pop %v772
      %v774 = vmul.f32 %v655, 1.442695
      %v775 = vpow.pop %v774
      %v776 = vmul.f32 %v656, 1.442695
      %v777 = vpow.pop %v776
      %v778 = vmul.f32 %v657, 1.442695
      %v779 = vpow.pop %v778
      %v780 = vmul.f32 %v658, 1.442695
      %v781 = vpow.pop %v780
      %v782 = vmul.f32 %v659, 1.442695
      %v783 = vpow.pop %v782
      %v784 = vmul.f32 %v660, 1.442695
      %v785 = vpow.pop %v784
      %v786 = vmul.f32 %v661, 1.442695
      %v787 = vpow.pop %v786
      %v788 = vmul.f32 %v662, 1.442695
      %v789 = vpow.pop %v788
      %v790 = vmul.f32 %v663, 1.442695
      %v791 = vpow.pop %v790
      %v792 = vadd.f32 %v665, %v669
      %v793 = vadd.f32 %v792, %v673
      %v794 = vadd.f32 %v793, %v677
      %v795 = vadd.f32 %v794, %v681
      %v796 = vadd.f32 %v795, %v685
      %v797 = vadd.f32 %v796, %v689
      %v798 = vadd.f32 %v797, %v693
      %v799 = vadd.f32 %v798, %v697
      %v800 = vadd.f32 %v799, %v701
      %v801 = vadd.f32 %v800, %v705
      %v802 = vadd.f32 %v801, %v709
      %v803 = vadd.f32 %v802, %v713
      %v804 = vadd.f32 %v803, %v717
      %v805 = vadd.f32 %v804, %v721
      %v806 = vadd.f32 %v805, %v725
      %v807 = vadd.f32 %v806, %v729
      %v808 = vadd.f32 %v807, %v733
      %v809 = vadd.f32 %v808, %v737
      %v810 = vadd.f32 %v809, %v741
      %v811 = vadd.f32 %v810, %v745
      %v812 = vadd.f32 %v811, %v749
      %v813 = vadd.f32 %v812, %v753
      %v814 = vadd.f32 %v813, %v757
      %v815 = vadd.f32 %v814, %v761
      %v816 = vadd.f32 %v815, %v765
      %v817 = vadd.f32 %v816, %v769
      %v818 = vadd.f32 %v817, %v773
      %v819 = vadd.f32 %v818, %v777
      %v820 = vadd.f32 %v819, %v781
      %v821 = vadd.f32 %v820, %v785
      %v822 = vadd.f32 %v821, %v789
      %v823 = vrot.slane %v822, 4
      %v824 = vadd.f32 %v822, %v823
      %v825 = vrot.slane %v824, 2
      %v826 = vadd.f32 %v824, %v825
      %v827 = vrot.slane %v826, 1
      %v828 = vadd.f32 %v826, %v827
      %v829 = vadd.f32 %v667, %v671
      %v830 = vadd.f32 %v829, %v675
      %v831 = vadd.f32 %v830, %v679
      %v832 = vadd.f32 %v831, %v683
      %v833 = vadd.f32 %v832, %v687
      %v834 = vadd.f32 %v833, %v691
      %v835 = vadd.f32 %v834, %v695
      %v836 = vadd.f32 %v835, %v699
      %v837 = vadd.f32 %v836, %v703
      %v838 = vadd.f32 %v837, %v707
      %v839 = vadd.f32 %v838, %v711
      %v840 = vadd.f32 %v839, %v715
      %v841 = vadd.f32 %v840, %v719
      %v842 = vadd.f32 %v841, %v723
      %v843 = vadd.f32 %v842, %v727
      %v844 = vadd.f32 %v843, %v731
      %v845 = vadd.f32 %v844, %v735
      %v846 = vadd.f32 %v845, %v739
      %v847 = vadd.f32 %v846, %v743
      %v848 = vadd.f32 %v847, %v747
      %v849 = vadd.f32 %v848, %v751
      %v850 = vadd.f32 %v849, %v755
      %v851 = vadd.f32 %v850, %v759
      %v852 = vadd.f32 %v851, %v763
      %v853 = vadd.f32 %v852, %v767
      %v854 = vadd.f32 %v853, %v771
      %v855 = vadd.f32 %v854, %v775
      %v856 = vadd.f32 %v855, %v779
      %v857 = vadd.f32 %v856, %v783
      %v858 = vadd.f32 %v857, %v787
      %v859 = vadd.f32 %v858, %v791
      %v860 = vrot.slane %v859, 4
      %v861 = vadd.f32 %v859, %v860
      %v862 = vrot.slane %v861, 2
      %v863 = vadd.f32 %v861, %v862
      %v864 = vrot.slane %v863, 1
      %v865 = vadd.f32 %v863, %v864
      %v866 = vrcp.pop %v828
      %v867 = vrcp.pop %v865
      %v868 = vmul.f32 %v665, %v866
      %v869 = vmul.f32 %v667, %v867
      %v870 = vmul.f32 %v669, %v866
      %v871 = vmul.f32 %v671, %v867
      %v872 = vmul.f32 %v673, %v866
      %v873 = vmul.f32 %v675, %v867
      %v874 = vmul.f32 %v677, %v866
      %v875 = vmul.f32 %v679, %v867
      %v876 = vmul.f32 %v681, %v866
      %v877 = vmul.f32 %v683, %v867
      %v878 = vmul.f32 %v685, %v866
      %v879 = vmul.f32 %v687, %v867
      %v880 = vmul.f32 %v689, %v866
      %v881 = vmul.f32 %v691, %v867
      %v882 = vmul.f32 %v693, %v866
      %v883 = vmul.f32 %v695, %v867
      %v884 = vmul.f32 %v697, %v866
      %v885 = vmul.f32 %v699, %v867
      %v886 = vmul.f32 %v701, %v866
      %v887 = vmul.f32 %v703, %v867
      %v888 = vmul.f32 %v705, %v866
      %v889 = vmul.f32 %v707, %v867
      %v890 = vmul.f32 %v709, %v866
      %v891 = vmul.f32 %v711, %v867
      %v892 = vmul.f32 %v713, %v866
      %v893 = vmul.f32 %v715, %v867
      %v894 = vmul.f32 %v717, %v866
      %v895 = vmul.f32 %v719, %v867
      %v896 = vmul.f32 %v721, %v866
      %v897 = vmul.f32 %v723, %v867
      %v898 = vmul.f32 %v725, %v866
      %v899 = vmul.f32 %v727, %v867
      %v900 = vmul.f32 %v729, %v866
      %v901 = vmul.f32 %v731, %v867
      %v902 = vmul.f32 %v733, %v866
      %v903 = vmul.f32 %v735, %v867
      %v904 = vmul.f32 %v737, %v866
      %v905 = vmul.f32 %v739, %v867
      %v906 = vmul.f32 %v741, %v866
      %v907 = vmul.f32 %v743, %v867
      %v908 = vmul.f32 %v745, %v866
      %v909 = vmul.f32 %v747, %v867
      %v910 = vmul.f32 %v749, %v866
      %v911 = vmul.f32 %v751, %v867
      %v912 = vmul.f32 %v753, %v866
      %v913 = vmul.f32 %v755, %v867
      %v914 = vmul.f32 %v757, %v866
      %v915 = vmul.f32 %v759, %v867
      %v916 = vmul.f32 %v761, %v866
      %v917 = vmul.f32 %v763, %v867
      %v918 = vmul.f32 %v765, %v866
      %v919 = vmul.f32 %v767, %v867
      %v920 = vmul.f32 %v769, %v866
      %v921 = vmul.f32 %v771, %v867
      %v922 = vmul.f32 %v773, %v866
      %v923 = vmul.f32 %v775, %v867
      %v924 = vmul.f32 %v777, %v866
      %v925 = vmul.f32 %v779, %v867
      %v926 = vmul.f32 %v781, %v866
      %v927 = vmul.f32 %v783, %v867
      %v928 = vmul.f32 %v785, %v866
      %v929 = vmul.f32 %v787, %v867
      %v930 = vmul.f32 %v789, %v866
      %v931 = vmul.f32 %v791, %v867
      %v932 = vpack.c.bf16 %v870, %v868
      %v933 = vpack.c.bf16 %v871, %v869
      %v934 = vpack.c.bf16 %v874, %v872
      %v935 = vpack.c.bf16 %v875, %v873
      %v936 = vpack.c.bf16 %v878, %v876
      %v937 = vpack.c.bf16 %v879, %v877
      %v938 = vpack.c.bf16 %v882, %v880
      %v939 = vpack.c.bf16 %v883, %v881
      %v940 = vpack.c.bf16 %v886, %v884
      %v941 = vpack.c.bf16 %v887, %v885
      %v942 = vpack.c.bf16 %v890, %v888
      %v943 = vpack.c.bf16 %v891, %v889
      %v944 = vpack.c.bf16 %v894, %v892
      %v945 = vpack.c.bf16 %v895, %v893
      %v946 = vpack.c.bf16 %v898, %v896
      %v947 = vpack.c.bf16 %v899, %v897
      %v948 = vpack.c.bf16 %v902, %v900
      %v949 = vpack.c.bf16 %v903, %v901
      %v950 = vpack.c.bf16 %v906, %v904
      %v951 = vpack.c.bf16 %v907, %v905
      %v952 = vpack.c.bf16 %v910, %v908
      %v953 = vpack.c.bf16 %v911, %v909
      %v954 = vpack.c.bf16 %v914, %v912
      %v955 = vpack.c.bf16 %v915, %v913
      %v956 = vpack.c.bf16 %v918, %v916
      %v957 = vpack.c.bf16 %v919, %v917
      %v958 = vpack.c.bf16 %v922, %v920
      %v959 = vpack.c.bf16 %v923, %v921
      %v960 = vpack.c.bf16 %v926, %v924
      %v961 = vpack.c.bf16 %v927, %v925
      %v962 = vpack.c.bf16 %v930, %v928
      %v963 = vpack.c.bf16 %v931, %v929
      %v965 = vunpack.c.l.b16 %v257
      %v966 = vunpack.c.h.b16 %v257
      %v967 = vpack.c.b16 %v965, %v965
      %v968 = vpack.c.b16 %v966, %v966
      %971 = vmatpush.bf16.msra.mxu0 %v946
      %972 = vmatpush.bf16.msra.mxu0 %v944
      %973 = vmatpush.bf16.msra.mxu0 %v942
      %974 = vmatpush.bf16.msra.mxu0 %v940
      %975 = vmatpush.bf16.msra.mxu0 %v938
      %976 = vmatpush.bf16.msra.mxu0 %v936
      %977 = vmatpush.bf16.msra.mxu0 %v934
      %978 = vmatpush.bf16.msra.mxu0 %v932
      %979 = vmatmul.bf16.gmra.mxu0 %v967
      %v980 = vpop.f32.mrf.mxu0
      %v981 = vadd.f32 0.0, %v980
      %v982 = vpop.f32.mrf.mxu0
      %983 = vdwg.mxu0
      %984 = vmatpush.bf16.msra.mxu0 %v962
      %985 = vmatpush.bf16.msra.mxu0 %v960
      %986 = vmatpush.bf16.msra.mxu0 %v958
      %987 = vmatpush.bf16.msra.mxu0 %v956
      %988 = vmatpush.bf16.msra.mxu0 %v954
      %989 = vmatpush.bf16.msra.mxu0 %v952
      %990 = vmatpush.bf16.msra.mxu0 %v950
      %991 = vmatpush.bf16.msra.mxu0 %v948
      %992 = vmatmul.bf16.gmra.mxu0 %v968
      %v993 = vpop.f32.mrf.mxu0
      %v994 = vadd.f32 %v981, %v993
      %v995 = vpop.f32.mrf.mxu0
      %996 = vdwg.mxu0
      %997 = vmatpush.bf16.msra.mxu0 %v947
      %998 = vmatpush.bf16.msra.mxu0 %v945
      %999 = vmatpush.bf16.msra.mxu0 %v943
      %1000 = vmatpush.bf16.msra.mxu0 %v941
      %1001 = vmatpush.bf16.msra.mxu0 %v939
      %1002 = vmatpush.bf16.msra.mxu0 %v937
      %1003 = vmatpush.bf16.msra.mxu0 %v935
      %1004 = vmatpush.bf16.msra.mxu0 %v933
      %1005 = vmatmul.bf16.gmra.mxu0 %v967
      %v1006 = vpop.f32.mrf.mxu0
      %v1007 = vadd.f32 0.0, %v1006
      %v1008 = vpop.f32.mrf.mxu0
      %1009 = vdwg.mxu0
      %1010 = vmatpush.bf16.msra.mxu0 %v963
      %1011 = vmatpush.bf16.msra.mxu0 %v961
      %1012 = vmatpush.bf16.msra.mxu0 %v959
      %1013 = vmatpush.bf16.msra.mxu0 %v957
      %1014 = vmatpush.bf16.msra.mxu0 %v955
      %1015 = vmatpush.bf16.msra.mxu0 %v953
      %1016 = vmatpush.bf16.msra.mxu0 %v951
      %1017 = vmatpush.bf16.msra.mxu0 %v949
      %1018 = vmatmul.bf16.gmra.mxu0 %v968
      %v1019 = vpop.f32.mrf.mxu0
      %v1020 = vadd.f32 %v1007, %v1019
      %v1021 = vpop.f32.mrf.mxu0
      %1022 = vdwg.mxu0
      %v1023 = vmul.f32 %v994, 0.3
      %v1024 = vmul.f32 %v1020, 0.3
      %v1025 = vadd.f32 %v1023, %v172
      %v1026 = vadd.f32 %v1024, %v173
      %1027 = vst [vmem:[%s170] sm:$0xff] %v1025
      %1028 = vst [vmem:[%s170 + $0x8] sm:$0xff] %v1026
      %p1029 = scmp.lt.s32.totalorder %s14, 1
      %s1030 = scalar_select %p1029, %s14, 1
      %s1031 = smul.addr %s1030, 2
      %s1032 = smul.addr %s1031, 8
      %s1033 = scalar_lea.vmem %s3, %s1032
      // Predicated region
      $region33: #{_lambda_.8} parent=31 // pred_check
        %p1034 = pneg %p100
      $region34: #{_lambda_.8} parent=31 // pred_check_branch
        %1036 = sbr.rel (%p1034) target = $region36
      $region35: #{_lambda_.8} parent=31 // pred_region
        _
      $region36: #{_lambda_.8} parent=31 // pred_fallthru
        _
    $region32: #{_lambda_.8} parent=5 // pred_fallthru
      _
    %p1037 = scmp.le.s32.totalorder 2, %s9
    // Predicated region
    $region37: #{_lambda_.8} parent=5 // pred_check
      %p1038 = pneg %p1037
    $region38: #{_lambda_.8} parent=5 // pred_check_branch
      %1040 = sbr.rel (%p1038) target = $region40
    $region39: #{_lambda_.8} parent=5 // pred_region
      %s1041 = ssub.s32 %s9, 2
      // Predicated region
      $region41: #{_lambda_.8} parent=39 // pred_check
        %p1042 = pneg %p106
      $region42: #{_lambda_.8} parent=39 // pred_check_branch
        %1044 = sbr.rel (%p1042) target = $region44
      $region43: #{_lambda_.8} parent=39 // pred_region
        %p1045 = scmp.lt.s32.totalorder %s15, 1
        %s1046 = scalar_select %p1045, %s15, 1
        %s1047 = smul.addr %s1046, 2
        %s1048 = smul.addr %s1047, 8
        %s1049 = scalar_lea.vmem %s3, %s1048
      $region44: #{_lambda_.8} parent=39 // pred_fallthru
        _
    $region40: #{_lambda_.8} parent=5 // pred_fallthru
      _
  $region6: #{_lambda_.8} parent=0 // loop_footer
    %s13 = sadd.s32 1, %s9
  $region7: #{_lambda_.8} parent=0 // loop_footer_branch
    %8 = sbr.rel target = $region3
  $region8: #{_lambda_.8} parent=0 // loop_exit
    _

// kernel: _lambda_.11
$region0: #{_lambda_.11}
  #allocation0 [shape = 'u32[]', space=smem, size = 0x4, offset = 0x4, fixed_abs, tag = 'smem constant byte address 0x4 - core index']
  #allocation1 [shape = 'u32[72,128]{1,0:T(1,128)}', space=vmem, size = 0x9000, scoped, tag = 'internal scratch']
  %s0 = inlined_call_operand.vmem [shape: f32[2,8,256], index: 0, kind: input, shape index: {}]
  %s1 = inlined_call_operand.vmem [shape: f32[2,8,256], index: 1, kind: output, shape index: {}]
  %s2 = sld [smem:[#allocation0]]
  $region37: #{_lambda_.11} parent=0
    _
  %s4 = ssub.s32 1, %s2
  %s5 = scalar_select 0, %s4, %s2
  loop: start=0, step=1, limit=4
  $region2: #{_lambda_.11} parent=0 // loop_pre_header
    _
  $region3: #{_lambda_.11} parent=0 // loop_header
    %s7 = sphi 0, %s11
    %p8 = scmp.ge.s32.totalorder %s7, 4
    %s17 = sphi 0, %s19
    %s20 = sphi 0, %s17
    %s21 = sphi 0, %s20
    %s37 = sphi 0, %s21
    %s43 = sphi 0, %s45
    %s46 = sphi 0, %s43
    %s47 = sphi 0, %s46
    %s63 = sphi 0, %s47
  $region4: #{_lambda_.11} parent=0 // loop_header_branch
    %10 = sbr.rel (%p8) target = $region8
  $region5: #{_lambda_.11} parent=0 // loop_body
    %s12 = ssub.s32 %s7, 1
    %s13 = ssub.s32 %s7, 2
    %s14 = sadd.s32 %s7, 1
    %s15 = ssub.s32 %s7, %s14
    %p16 = scmp.eq.s32.totalorder %s15, 0
    %s18 = sadd.s32 %s17, 1
    %s19 = scalar_select %p16, %s17, %s18
    %p22 = pneg %p16
    %p23 = scmp.eq.s32.totalorder %s7, 1
    %p24 = por %p22, %p23
    %p25 = scmp.ne.s32.totalorder %s17, %s20
    %p26 = scmp.eq.s32.totalorder %s7, 0
    %p27 = por %p25, %p26
    %p28 = scmp.ne.s32.totalorder %s17, %s20
    %p29 = scmp.eq.s32.totalorder %s12, 1
    %p30 = por %p28, %p29
    %p31 = scmp.ne.s32.totalorder %s20, %s21
    %p32 = scmp.eq.s32.totalorder %s12, 0
    %p33 = por %p31, %p32
    %p34 = scmp.ne.s32.totalorder %s20, %s21
    %p35 = scmp.eq.s32.totalorder %s13, 1
    %p36 = por %p34, %p35
    %p38 = scmp.ne.s32.totalorder %s21, %s37
    %p39 = scmp.eq.s32.totalorder %s13, 0
    %p40 = por %p38, %p39
    %s41 = ssub.s32 %s7, %s14
    %p42 = scmp.eq.s32.totalorder %s41, 0
    %s44 = sadd.s32 %s43, 1
    %s45 = scalar_select %p42, %s43, %s44
    %p48 = pneg %p42
    %p49 = scmp.eq.s32.totalorder %s7, 1
    %p50 = por %p48, %p49
    %p51 = scmp.ne.s32.totalorder %s43, %s46
    %p52 = scmp.eq.s32.totalorder %s7, 0
    %p53 = por %p51, %p52
    %p54 = scmp.ne.s32.totalorder %s43, %s46
    %p55 = scmp.eq.s32.totalorder %s12, 1
    %p56 = por %p54, %p55
    %p57 = scmp.ne.s32.totalorder %s46, %s47
    %p58 = scmp.eq.s32.totalorder %s12, 0
    %p59 = por %p57, %p58
    %p60 = scmp.ne.s32.totalorder %s46, %s47
    %p61 = scmp.eq.s32.totalorder %s13, 1
    %p62 = por %p60, %p61
    %p64 = scmp.ne.s32.totalorder %s47, %s63
    %p65 = scmp.eq.s32.totalorder %s13, 0
    %p66 = por %p64, %p65
    %p67 = scmp.le.s32.totalorder 1, %s7
    %p68 = scmp.lt.s32.totalorder %s7, 3
    %p69 = pnand %p67, %p68
    %p70 = pneg %p69
    // Predicated region
    $region9: #{_lambda_.11} parent=5 // pred_check
      _
    $region10: #{_lambda_.11} parent=5 // pred_check_branch
      %72 = sbr.rel (%p69) target = $region12
    $region11: #{_lambda_.11} parent=5 // pred_region
      %s73 = ssub.s32 %s7, 1
    $region12: #{_lambda_.11} parent=5 // pred_fallthru
      _
    %p74 = scmp.lt.s32.totalorder %s7, 2
    // Predicated region
    $region13: #{_lambda_.11} parent=5 // pred_check
      %p75 = pneg %p74
    $region14: #{_lambda_.11} parent=5 // pred_check_branch
      %77 = sbr.rel (%p75) target = $region16
    $region15: #{_lambda_.11} parent=5 // pred_region
      // Predicated region
      $region17: #{_lambda_.11} parent=15 // pred_check
        %p78 = pneg %p27
      $region18: #{_lambda_.11} parent=15 // pred_check_branch
        %80 = sbr.rel (%p78) target = $region20
      $region19: #{_lambda_.11} parent=15 // pred_region
        %p81 = scmp.lt.s32.totalorder %s7, 1
        %s82 = scalar_select %p81, %s7, 1
        %s83 = smul.addr %s82, 2
        %s84 = smul.addr %s83, 8
        %s85 = scalar_lea.vmem %s0, %s84
      $region20: #{_lambda_.11} parent=15 // pred_fallthru
        _
    $region16: #{_lambda_.11} parent=5 // pred_fallthru
      _
    %p86 = scmp.le.s32.totalorder 1, %s7
    %p87 = scmp.lt.s32.totalorder %s7, 3
    %p88 = pnand %p86, %p87
    %p89 = pneg %p88
    // Predicated region
    $region21: #{_lambda_.11} parent=5 // pred_check
      _
    $region22: #{_lambda_.11} parent=5 // pred_check_branch
      %91 = sbr.rel (%p88) target = $region24
    $region23: #{_lambda_.11} parent=5 // pred_region
      %s92 = ssub.s32 %s7, 1
      %p93 = scmp.lt.s32.totalorder %s12, 1
      %s94 = scalar_select %p93, %s12, 1
      %s95 = smul.addr %s94, 2
      %s96 = smul.addr %s95, 8
      %s97 = scalar_lea.vmem %s0, %s96
      %p98 = pneg %p33
      %p99 = pneg %p30
      %p100 = pneg %p59
      %p101 = pneg %p56
      %p102 = scmp.lt.s32.totalorder %s12, 1
      %s103 = scalar_select %p102, %s12, 1
      %s104 = smul.addr %s103, 2
      %s105 = smul.addr %s104, 8
      %s106 = scalar_lea.vmem %s1, %s105
      %p107 = scmp.lt.s32.totalorder %s12, 1
      %s108 = scalar_select %p107, %s12, 1
      %s109 = smul.addr %s108, 2
      %s110 = smul.addr %s109, 8
      %s111 = scalar_lea.vmem %s0, %s110
      %p112 = scmp.lt.s32.totalorder %s12, 1
      %s113 = scalar_select %p112, %s12, 1
      %s114 = smul.addr %s113, 2
      %s115 = smul.addr %s114, 8
      %s116 = scalar_lea.vmem %s1, %s115
      %v118 = vld [vmem:[%s111] sm:$0xff]
      %v119 = vld [vmem:[%s111 + $0x8] sm:$0xff]
      %v120 = vpack.c.bf16 %v118, %v118
      %v121 = vpack.c.bf16 %v119, %v119
      %122 = vmatpush.bf16.xpose.msra.mxu0 0
      %123 = vmatpush.bf16.xpose.msra.mxu0 0
      %124 = vmatpush.bf16.xpose.msra.mxu0 0
      %125 = vmatpush.bf16.xpose.msra.mxu0 0
      %126 = vmatpush.bf16.xpose.msra.mxu0 0
      %127 = vmatpush.bf16.xpose.msra.mxu0 0
      %128 = vmatpush.bf16.xpose.msra.mxu0 0
      %129 = vmatpush.bf16.xpose.msra.mxu0 %v120
      %130 = vmatmul.bf16.gmra.mxu0 %v120
      %v131 = vpop.f32.mrf.mxu0
      %v132 = vadd.f32 0.0, %v131
      %v133 = vpop.f32.mrf.mxu0
      %134 = vdwg.mxu0
      %135 = vmatpush.bf16.xpose.msra.mxu0 0
      %136 = vmatpush.bf16.xpose.msra.mxu0 0
      %137 = vmatpush.bf16.xpose.msra.mxu0 0
      %138 = vmatpush.bf16.xpose.msra.mxu0 0
      %139 = vmatpush.bf16.xpose.msra.mxu0 0
      %140 = vmatpush.bf16.xpose.msra.mxu0 0
      %141 = vmatpush.bf16.xpose.msra.mxu0 0
      %142 = vmatpush.bf16.xpose.msra.mxu0 %v121
      %143 = vmatmul.bf16.gmra.mxu0 %v121
      %v144 = vpop.f32.mrf.mxu0
      %v145 = vadd.f32 %v132, %v144
      %v146 = vpop.f32.mrf.mxu0
      %147 = vdwg.mxu0
      %vm148 = vcmask 64512
      %v149 = vsel %vm148, %v145, -inf
      %150 = vmax.xlane.f32.xlu0 %v149
      %v151 = vpop.xlane.xlu0 %150
      %v152 = vsub.f32 %v151, %v145
      %v153 = vsel %vm148, %v152, -inf
      %154 = vmax.xlane.f32.xlu0 %v153
      %v155 = vpop.xlane.xlu0 %154
      %v156 = vsub.f32 %v152, %v155
      %v157 = vmul.f32 %v156, 1.442695
      %v158 = vpow.pop %v157
      %v159 = vsel %vm148, %v158, 0.0
      %160 = vadd.xlane.f32.xlu0 %v159
      %v161 = vpop.xlane.xlu0 %160
      %v162 = vrcp.pop %v161
      %v163 = vmul.f32 %v158, %v162
      %v164 = vpack.c.bf16 %v163, %v163
      %v166 = vsel %vm148, %v164, 0
      %vm168 = vcmask 1043456
      %v170 = vsel %vm168, %v120, 0
      %v173 = vsel %vm168, %v121, 0
      %175 = vmatpush.bf16.msra.mxu0 0
      %176 = vmatpush.bf16.msra.mxu0 0
      %177 = vmatpush.bf16.msra.mxu0 0
      %178 = vmatpush.bf16.msra.mxu0 0
      %179 = vmatpush.bf16.msra.mxu0 0
      %180 = vmatpush.bf16.msra.mxu0 0
      %181 = vmatpush.bf16.msra.mxu0 0
      %182 = vmatpush.bf16.msra.mxu0 %v170
      %183 = vmatmul.bf16.gmra.mxu0 %v166
      %v184 = vpop.f32.mrf.mxu0
      %v185 = vadd.f32 0.0, %v184
      %v186 = vpop.f32.mrf.mxu0
      %187 = vdwg.mxu0
      %188 = vmatpush.bf16.msra.mxu0 0
      %189 = vmatpush.bf16.msra.mxu0 0
      %190 = vmatpush.bf16.msra.mxu0 0
      %191 = vmatpush.bf16.msra.mxu0 0
      %192 = vmatpush.bf16.msra.mxu0 0
      %193 = vmatpush.bf16.msra.mxu0 0
      %194 = vmatpush.bf16.msra.mxu0 0
      %195 = vmatpush.bf16.msra.mxu0 %v173
      %196 = vmatmul.bf16.gmra.mxu0 %v166
      %v197 = vpop.f32.mrf.mxu0
      %v198 = vadd.f32 0.0, %v197
      %v199 = vpop.f32.mrf.mxu0
      %200 = vdwg.mxu0
      %v201 = vmul.f32 %v185, 0.1
      %v202 = vmul.f32 %v198, 0.1
      %v203 = vadd.f32 %v201, %v118
      %v204 = vadd.f32 %v202, %v119
      %205 = vst [vmem:[%s116] sm:$0xff] %v203
      %206 = vst [vmem:[%s116 + $0x8] sm:$0xff] %v204
      %p207 = scmp.lt.s32.totalorder %s12, 1
      %s208 = scalar_select %p207, %s12, 1
      %s209 = smul.addr %s208, 2
      %s210 = smul.addr %s209, 8
      %s211 = scalar_lea.vmem %s1, %s210
      // Predicated region
      $region25: #{_lambda_.11} parent=23 // pred_check
        %p212 = pneg %p56
      $region26: #{_lambda_.11} parent=23 // pred_check_branch
        %214 = sbr.rel (%p212) target = $region28
      $region27: #{_lambda_.11} parent=23 // pred_region
        _
      $region28: #{_lambda_.11} parent=23 // pred_fallthru
        _
    $region24: #{_lambda_.11} parent=5 // pred_fallthru
      _
    %p215 = scmp.le.s32.totalorder 2, %s7
    // Predicated region
    $region29: #{_lambda_.11} parent=5 // pred_check
      %p216 = pneg %p215
    $region30: #{_lambda_.11} parent=5 // pred_check_branch
      %218 = sbr.rel (%p216) target = $region32
    $region31: #{_lambda_.11} parent=5 // pred_region
      %s219 = ssub.s32 %s7, 2
      // Predicated region
      $region33: #{_lambda_.11} parent=31 // pred_check
        %p220 = pneg %p62
      $region34: #{_lambda_.11} parent=31 // pred_check_branch
        %222 = sbr.rel (%p220) target = $region36
      $region35: #{_lambda_.11} parent=31 // pred_region
        %p223 = scmp.lt.s32.totalorder %s13, 1
        %s224 = scalar_select %p223, %s13, 1
        %s225 = smul.addr %s224, 2
        %s226 = smul.addr %s225, 8
        %s227 = scalar_lea.vmem %s1, %s226
      $region36: #{_lambda_.11} parent=31 // pred_fallthru
        _
    $region32: #{_lambda_.11} parent=5 // pred_fallthru
      _
  $region6: #{_lambda_.11} parent=0 // loop_footer
    %s11 = sadd.s32 1, %s7
  $region7: #{_lambda_.11} parent=0 // loop_footer_branch
    %6 = sbr.rel target = $region3
  $region8: #{_lambda_.11} parent=0 // loop_exit
    _

// kernel: _lambda_.9
$region0: #{_lambda_.9}
  #allocation0 [shape = 'u32[]', space=smem, size = 0x4, offset = 0x4, fixed_abs, tag = 'smem constant byte address 0x4 - core index']
  #allocation1 [shape = 'u32[72,128]{1,0:T(1,128)}', space=vmem, size = 0x9000, scoped, tag = 'internal scratch']
  %s0 = inlined_call_operand.vmem [shape: bf16[2,8,326], index: 0, kind: input, shape index: {}]
  %s1 = inlined_call_operand.vmem [shape: bf16[9,16,8], index: 1, kind: input, shape index: {}]
  %s2 = inlined_call_operand.vmem [shape: f32[16,1], index: 2, kind: input, shape index: {}]
  %s3 = inlined_call_operand.vmem [shape: f32[16,1], index: 3, kind: input, shape index: {}]
  %s4 = inlined_call_operand.vmem [shape: f32[2,16,288], index: 4, kind: output, shape index: {}]
  %s5 = sld [smem:[#allocation0]]
  $region49: #{_lambda_.9} parent=0
    _
  %s7 = ssub.s32 1, %s5
  %s8 = scalar_select 0, %s7, %s5
  loop: start=0, step=1, limit=4
  $region2: #{_lambda_.9} parent=0 // loop_pre_header
    _
  $region3: #{_lambda_.9} parent=0 // loop_header
    %s10 = sphi 0, %s14
    %p11 = scmp.ge.s32.totalorder %s10, 4
    %s20 = sphi 0, %s22
    %s23 = sphi 0, %s20
    %s24 = sphi 0, %s23
    %s40 = sphi 0, %s24
    %s44 = sphi 0, %s44
    %s46 = sphi 0, %s44
    %s47 = sphi 0, %s46
    %s61 = sphi 0, %s47
    %s65 = sphi 0, %s65
    %s67 = sphi 0, %s65
    %s68 = sphi 0, %s67
    %s82 = sphi 0, %s68
    %s86 = sphi 0, %s86
    %s88 = sphi 0, %s86
    %s89 = sphi 0, %s88
    %s103 = sphi 0, %s89
    %s109 = sphi 0, %s111
    %s112 = sphi 0, %s109
    %s113 = sphi 0, %s112
    %s129 = sphi 0, %s113
  $region4: #{_lambda_.9} parent=0 // loop_header_branch
    %13 = sbr.rel (%p11) target = $region8
  $region5: #{_lambda_.9} parent=0 // loop_body
    %s15 = ssub.s32 %s10, 1
    %s16 = ssub.s32 %s10, 2
    %s17 = sadd.s32 %s10, 1
    %s18 = ssub.s32 %s10, %s17
    %p19 = scmp.eq.s32.totalorder %s18, 0
    %s21 = sadd.s32 %s20, 1
    %s22 = scalar_select %p19, %s20, %s21
    %p25 = pneg %p19
    %p26 = scmp.eq.s32.totalorder %s10, 1
    %p27 = por %p25, %p26
    %p28 = scmp.ne.s32.totalorder %s20, %s23
    %p29 = scmp.eq.s32.totalorder %s10, 0
    %p30 = por %p28, %p29
    %p31 = scmp.ne.s32.totalorder %s20, %s23
    %p32 = scmp.eq.s32.totalorder %s15, 1
    %p33 = por %p31, %p32
    %p34 = scmp.ne.s32.totalorder %s23, %s24
    %p35 = scmp.eq.s32.totalorder %s15, 0
    %p36 = por %p34, %p35
    %p37 = scmp.ne.s32.totalorder %s23, %s24
    %p38 = scmp.eq.s32.totalorder %s16, 1
    %p39 = por %p37, %p38
    %p41 = scmp.ne.s32.totalorder %s24, %s40
    %p42 = scmp.eq.s32.totalorder %s16, 0
    %p43 = por %p41, %p42
    %s45 = sadd.s32 %s44, 1
    %p48 = scmp.eq.s32.totalorder %s10, 1
    %p49 = scmp.ne.s32.totalorder %s44, %s46
    %p50 = scmp.eq.s32.totalorder %s10, 0
    %p51 = por %p49, %p50
    %p52 = scmp.ne.s32.totalorder %s44, %s46
    %p53 = scmp.eq.s32.totalorder %s15, 1
    %p54 = por %p52, %p53
    %p55 = scmp.ne.s32.totalorder %s46, %s47
    %p56 = scmp.eq.s32.totalorder %s15, 0
    %p57 = por %p55, %p56
    %p58 = scmp.ne.s32.totalorder %s46, %s47
    %p59 = scmp.eq.s32.totalorder %s16, 1
    %p60 = por %p58, %p59
    %p62 = scmp.ne.s32.totalorder %s47, %s61
    %p63 = scmp.eq.s32.totalorder %s16, 0
    %p64 = por %p62, %p63
    %s66 = sadd.s32 %s65, 1
    %p69 = scmp.eq.s32.totalorder %s10, 1
    %p70 = scmp.ne.s32.totalorder %s65, %s67
    %p71 = scmp.eq.s32.totalorder %s10, 0
    %p72 = por %p70, %p71
    %p73 = scmp.ne.s32.totalorder %s65, %s67
    %p74 = scmp.eq.s32.totalorder %s15, 1
    %p75 = por %p73, %p74
    %p76 = scmp.ne.s32.totalorder %s67, %s68
    %p77 = scmp.eq.s32.totalorder %s15, 0
    %p78 = por %p76, %p77
    %p79 = scmp.ne.s32.totalorder %s67, %s68
    %p80 = scmp.eq.s32.totalorder %s16, 1
    %p81 = por %p79, %p80
    %p83 = scmp.ne.s32.totalorder %s68, %s82
    %p84 = scmp.eq.s32.totalorder %s16, 0
    %p85 = por %p83, %p84
    %s87 = sadd.s32 %s86, 1
    %p90 = scmp.eq.s32.totalorder %s10, 1
    %p91 = scmp.ne.s32.totalorder %s86, %s88
    %p92 = scmp.eq.s32.totalorder %s10, 0
    %p93 = por %p91, %p92
    %p94 = scmp.ne.s32.totalorder %s86, %s88
    %p95 = scmp.eq.s32.totalorder %s15, 1
    %p96 = por %p94, %p95
    %p97 = scmp.ne.s32.totalorder %s88, %s89
    %p98 = scmp.eq.s32.totalorder %s15, 0
    %p99 = por %p97, %p98
    %p100 = scmp.ne.s32.totalorder %s88, %s89
    %p101 = scmp.eq.s32.totalorder %s16, 1
    %p102 = por %p100, %p101
    %p104 = scmp.ne.s32.totalorder %s89, %s103
    %p105 = scmp.eq.s32.totalorder %s16, 0
    %p106 = por %p104, %p105
    %s107 = ssub.s32 %s10, %s17
    %p108 = scmp.eq.s32.totalorder %s107, 0
    %s110 = sadd.s32 %s109, 1
    %s111 = scalar_select %p108, %s109, %s110
    %p114 = pneg %p108
    %p115 = scmp.eq.s32.totalorder %s10, 1
    %p116 = por %p114, %p115
    %p117 = scmp.ne.s32.totalorder %s109, %s112
    %p118 = scmp.eq.s32.totalorder %s10, 0
    %p119 = por %p117, %p118
    %p120 = scmp.ne.s32.totalorder %s109, %s112
    %p121 = scmp.eq.s32.totalorder %s15, 1
    %p122 = por %p120, %p121
    %p123 = scmp.ne.s32.totalorder %s112, %s113
    %p124 = scmp.eq.s32.totalorder %s15, 0
    %p125 = por %p123, %p124
    %p126 = scmp.ne.s32.totalorder %s112, %s113
    %p127 = scmp.eq.s32.totalorder %s16, 1
    %p128 = por %p126, %p127
    %p130 = scmp.ne.s32.totalorder %s113, %s129
    %p131 = scmp.eq.s32.totalorder %s16, 0
    %p132 = por %p130, %p131
    %p133 = scmp.le.s32.totalorder 1, %s10
    %p134 = scmp.lt.s32.totalorder %s10, 3
    %p135 = pnand %p133, %p134
    %p136 = pneg %p135
    // Predicated region
    $region9: #{_lambda_.9} parent=5 // pred_check
      _
    $region10: #{_lambda_.9} parent=5 // pred_check_branch
      %138 = sbr.rel (%p135) target = $region12
    $region11: #{_lambda_.9} parent=5 // pred_region
      %s139 = ssub.s32 %s10, 1
      // Predicated region
      $region13: #{_lambda_.9} parent=11 // pred_check
        %p140 = pneg %p57
      $region14: #{_lambda_.9} parent=11 // pred_check_branch
        %142 = sbr.rel (%p140) target = $region16
      $region15: #{_lambda_.9} parent=11 // pred_region
        _
      $region16: #{_lambda_.9} parent=11 // pred_fallthru
        _
      // Predicated region
      $region17: #{_lambda_.9} parent=11 // pred_check
        %p143 = pneg %p78
      $region18: #{_lambda_.9} parent=11 // pred_check_branch
        %145 = sbr.rel (%p143) target = $region20
      $region19: #{_lambda_.9} parent=11 // pred_region
        _
      $region20: #{_lambda_.9} parent=11 // pred_fallthru
        _
      // Predicated region
      $region21: #{_lambda_.9} parent=11 // pred_check
        %p146 = pneg %p99
      $region22: #{_lambda_.9} parent=11 // pred_check_branch
        %148 = sbr.rel (%p146) target = $region24
      $region23: #{_lambda_.9} parent=11 // pred_region
        _
      $region24: #{_lambda_.9} parent=11 // pred_fallthru
        _
    $region12: #{_lambda_.9} parent=5 // pred_fallthru
      _
    %p149 = scmp.lt.s32.totalorder %s10, 2
    // Predicated region
    $region25: #{_lambda_.9} parent=5 // pred_check
      %p150 = pneg %p149
    $region26: #{_lambda_.9} parent=5 // pred_check_branch
      %152 = sbr.rel (%p150) target = $region28
    $region27: #{_lambda_.9} parent=5 // pred_region
      // Predicated region
      $region29: #{_lambda_.9} parent=27 // pred_check
        %p153 = pneg %p30
      $region30: #{_lambda_.9} parent=27 // pred_check_branch
        %155 = sbr.rel (%p153) target = $region32
      $region31: #{_lambda_.9} parent=27 // pred_region
        %p156 = scmp.lt.s32.totalorder %s10, 1
        %s157 = scalar_select %p156, %s10, 1
        %s158 = smul.addr %s157, 3
        %s159 = smul.addr %s158, 4
        %s160 = scalar_lea.vmem %s0, %s159
      $region32: #{_lambda_.9} parent=27 // pred_fallthru
        _
    $region28: #{_lambda_.9} parent=5 // pred_fallthru
      _
    %p161 = scmp.le.s32.totalorder 1, %s10
    %p162 = scmp.lt.s32.totalorder %s10, 3
    %p163 = pnand %p161, %p162
    %p164 = pneg %p163
    // Predicated region
    $region33: #{_lambda_.9} parent=5 // pred_check
      _
    $region34: #{_lambda_.9} parent=5 // pred_check_branch
      %166 = sbr.rel (%p163) target = $region36
    $region35: #{_lambda_.9} parent=5 // pred_region
      %s167 = ssub.s32 %s10, 1
      %p168 = scmp.lt.s32.totalorder %s15, 1
      %s169 = scalar_select %p168, %s15, 1
      %s170 = smul.addr %s169, 3
      %s171 = smul.addr %s170, 4
      %s172 = scalar_lea.vmem %s0, %s171
      %p173 = pneg %p36
      %p174 = pneg %p33
      %p175 = pneg %p57
      %p176 = pneg %p54
      %p177 = pneg %p78
      %p178 = pneg %p75
      %p179 = pneg %p99
      %p180 = pneg %p96
      %p181 = pneg %p125
      %p182 = pneg %p122
      %p183 = scmp.lt.s32.totalorder %s15, 1
      %s184 = scalar_select %p183, %s15, 1
      %s185 = smul.addr %s184, 6
      %s186 = smul.addr %s185, 8
      %s187 = scalar_lea.vmem %s4, %s186
      %p188 = scmp.lt.s32.totalorder %s15, 1
      %s189 = scalar_select %p188, %s15, 1
      %s190 = smul.addr %s189, 3
      %s191 = smul.addr %s190, 4
      %s192 = scalar_lea.vmem %s0, %s191
      %p193 = scmp.lt.s32.totalorder %s15, 1
      %s194 = scalar_select %p193, %s15, 1
      %s195 = smul.addr %s194, 6
      %s196 = smul.addr %s195, 8
      %s197 = scalar_lea.vmem %s4, %s196
      %v199 = vld [vmem:[%s192] sm:$0xff]
      %v200 = vld [vmem:[%s192 + $0x8] sm:$0xf]
      %v201 = vld [vmem:[%s1] sm:$0xf]
      %v202 = vld [vmem:[%s1 + $0x4] sm:$0xf]
      %s203 = scalar_lea.vmem %s1, 8
      %v204 = vld [vmem:[%s203] sm:$0xf]
      %v205 = vld [vmem:[%s203 + $0x4] sm:$0xf]
      %v208 = vunpack.c.l.b16 %v204
      %v209 = vunpack.c.l.b16 %v205
      %v210 = vpack.c.b16 %v209, %v208
      %v213 = vunpack.c.l.b16 %v199
      %v214 = vunpack.c.h.b16 %v199
      %v215 = vunpack.c.l.b16 %v200
      %v216 = vpack.c.b16 %v213, %v213
      %v217 = vpack.c.b16 %v214, %v214
      %v218 = vpack.c.b16 %v215, %v215
      %219 = vrot.lane.b32.xlu0 %v216, 127
      %v220 = vpop.permute.xlu0 %219
      %221 = vrot.lane.b32.xlu0 %v217, 127
      %v222 = vpop.permute.xlu0 %221
      %223 = vrot.lane.b32.xlu0 %v218, 127
      %v224 = vpop.permute.xlu0 %223
      %vm225 = vcmask 1039360
      %v226 = vsel %vm225, %v220, %v222
      %v227 = vsel %vm225, %v222, %v224
      %vm228 = vcmask 64512
      %v230 = vsel %vm228, %v210, 0
      %vm232 = vcmask 1043456
      %v234 = vsel %vm232, %v226, 0
      %v237 = vsel %vm232, %v227, 0
      %v240 = vsel %vm232, %v224, 0
      %242 = vmatpush.bf16.msra.mxu0 0
      %243 = vmatpush.bf16.msra.mxu0 0
      %244 = vmatpush.bf16.msra.mxu0 0
      %245 = vmatpush.bf16.msra.mxu0 0
      %246 = vmatpush.bf16.msra.mxu0 0
      %247 = vmatpush.bf16.msra.mxu0 0
      %248 = vmatpush.bf16.msra.mxu0 0
      %249 = vmatpush.bf16.msra.mxu0 %v234
      %250 = vmatmul.bf16.gmra.mxu0 %v230
      %v251 = vpop.f32.mrf.mxu0
      %v252 = vadd.f32 0.0, %v251
      %v253 = vpop.f32.mrf.mxu0
      %v254 = vadd.f32 0.0, %v253
      %255 = vdwg.mxu0
      %256 = vmatpush.bf16.msra.mxu0 0
      %257 = vmatpush.bf16.msra.mxu0 0
      %258 = vmatpush.bf16.msra.mxu0 0
      %259 = vmatpush.bf16.msra.mxu0 0
      %260 = vmatpush.bf16.msra.mxu0 0
      %261 = vmatpush.bf16.msra.mxu0 0
      %262 = vmatpush.bf16.msra.mxu0 0
      %263 = vmatpush.bf16.msra.mxu0 %v237
      %264 = vmatmul.bf16.gmra.mxu0 %v230
      %v265 = vpop.f32.mrf.mxu0
      %v266 = vadd.f32 0.0, %v265
      %v267 = vpop.f32.mrf.mxu0
      %v268 = vadd.f32 0.0, %v267
      %269 = vdwg.mxu0
      %270 = vmatpush.bf16.msra.mxu0 0
      %271 = vmatpush.bf16.msra.mxu0 0
      %272 = vmatpush.bf16.msra.mxu0 0
      %273 = vmatpush.bf16.msra.mxu0 0
      %274 = vmatpush.bf16.msra.mxu0 0
      %275 = vmatpush.bf16.msra.mxu0 0
      %276 = vmatpush.bf16.msra.mxu0 0
      %277 = vmatpush.bf16.msra.mxu0 %v240
      %278 = vmatmul.bf16.gmra.mxu0 %v230
      %v279 = vpop.f32.mrf.mxu0
      %v280 = vadd.f32 0.0, %v279
      %v281 = vpop.f32.mrf.mxu0
      %v282 = vadd.f32 0.0, %v281
      %283 = vdwg.mxu0
      %v286 = vunpack.c.l.b16 %v201
      %v287 = vunpack.c.l.b16 %v202
      %v288 = vpack.c.b16 %v287, %v286
      %v290 = vsel %vm228, %v288, 0
      %v293 = vsel %vm232, %v216, 0
      %v296 = vsel %vm232, %v217, 0
      %v299 = vsel %vm232, %v218, 0
      %301 = vmatpush.bf16.msra.mxu0 0
      %302 = vmatpush.bf16.msra.mxu0 0
      %303 = vmatpush.bf16.msra.mxu0 0
      %304 = vmatpush.bf16.msra.mxu0 0
      %305 = vmatpush.bf16.msra.mxu0 0
      %306 = vmatpush.bf16.msra.mxu0 0
      %307 = vmatpush.bf16.msra.mxu0 0
      %308 = vmatpush.bf16.msra.mxu0 %v293
      %309 = vmatmul.bf16.gmra.mxu0 %v290
      %v310 = vpop.f32.mrf.mxu0
      %v311 = vadd.f32 %v252, %v310
      %v312 = vpop.f32.mrf.mxu0
      %v313 = vadd.f32 %v254, %v312
      %314 = vdwg.mxu0
      %315 = vmatpush.bf16.msra.mxu0 0
      %316 = vmatpush.bf16.msra.mxu0 0
      %317 = vmatpush.bf16.msra.mxu0 0
      %318 = vmatpush.bf16.msra.mxu0 0
      %319 = vmatpush.bf16.msra.mxu0 0
      %320 = vmatpush.bf16.msra.mxu0 0
      %321 = vmatpush.bf16.msra.mxu0 0
      %322 = vmatpush.bf16.msra.mxu0 %v296
      %323 = vmatmul.bf16.gmra.mxu0 %v290
      %v324 = vpop.f32.mrf.mxu0
      %v325 = vadd.f32 %v266, %v324
      %v326 = vpop.f32.mrf.mxu0
      %v327 = vadd.f32 %v268, %v326
      %328 = vdwg.mxu0
      %329 = vmatpush.bf16.msra.mxu0 0
      %330 = vmatpush.bf16.msra.mxu0 0
      %331 = vmatpush.bf16.msra.mxu0 0
      %332 = vmatpush.bf16.msra.mxu0 0
      %333 = vmatpush.bf16.msra.mxu0 0
      %334 = vmatpush.bf16.msra.mxu0 0
      %335 = vmatpush.bf16.msra.mxu0 0
      %336 = vmatpush.bf16.msra.mxu0 %v299
      %337 = vmatmul.bf16.gmra.mxu0 %v290
      %v338 = vpop.f32.mrf.mxu0
      %v339 = vadd.f32 %v280, %v338
      %v340 = vpop.f32.mrf.mxu0
      %v341 = vadd.f32 %v282, %v340
      %342 = vdwg.mxu0
      %s343 = scalar_lea.vmem %s1, 16
      %v344 = vld [vmem:[%s343] sm:$0xf]
      %v345 = vld [vmem:[%s343 + $0x4] sm:$0xf]
      %v348 = vunpack.c.l.b16 %v344
      %v349 = vunpack.c.l.b16 %v345
      %v350 = vpack.c.b16 %v349, %v348
      %351 = vrot.lane.b32.xlu0 %v216, 126
      %v352 = vpop.permute.xlu0 %351
      %353 = vrot.lane.b32.xlu0 %v217, 126
      %v354 = vpop.permute.xlu0 %353
      %355 = vrot.lane.b32.xlu0 %v218, 126
      %v356 = vpop.permute.xlu0 %355
      %vm357 = vcmask 1031168
      %v358 = vsel %vm357, %v352, %v354
      %v359 = vsel %vm357, %v354, %v356
      %v361 = vsel %vm228, %v350, 0
      %v364 = vsel %vm232, %v358, 0
      %v367 = vsel %vm232, %v359, 0
      %v370 = vsel %vm232, %v356, 0
      %372 = vmatpush.bf16.msra.mxu0 0
      %373 = vmatpush.bf16.msra.mxu0 0
      %374 = vmatpush.bf16.msra.mxu0 0
      %375 = vmatpush.bf16.msra.mxu0 0
      %376 = vmatpush.bf16.msra.mxu0 0
      %377 = vmatpush.bf16.msra.mxu0 0
      %378 = vmatpush.bf16.msra.mxu0 0
      %379 = vmatpush.bf16.msra.mxu0 %v364
      %380 = vmatmul.bf16.gmra.mxu0 %v361
      %v381 = vpop.f32.mrf.mxu0
      %v382 = vadd.f32 0.0, %v381
      %v383 = vpop.f32.mrf.mxu0
      %v384 = vadd.f32 0.0, %v383
      %385 = vdwg.mxu0
      %386 = vmatpush.bf16.msra.mxu0 0
      %387 = vmatpush.bf16.msra.mxu0 0
      %388 = vmatpush.bf16.msra.mxu0 0
      %389 = vmatpush.bf16.msra.mxu0 0
      %390 = vmatpush.bf16.msra.mxu0 0
      %391 = vmatpush.bf16.msra.mxu0 0
      %392 = vmatpush.bf16.msra.mxu0 0
      %393 = vmatpush.bf16.msra.mxu0 %v367
      %394 = vmatmul.bf16.gmra.mxu0 %v361
      %v395 = vpop.f32.mrf.mxu0
      %v396 = vadd.f32 0.0, %v395
      %v397 = vpop.f32.mrf.mxu0
      %v398 = vadd.f32 0.0, %v397
      %399 = vdwg.mxu0
      %400 = vmatpush.bf16.msra.mxu0 0
      %401 = vmatpush.bf16.msra.mxu0 0
      %402 = vmatpush.bf16.msra.mxu0 0
      %403 = vmatpush.bf16.msra.mxu0 0
      %404 = vmatpush.bf16.msra.mxu0 0
      %405 = vmatpush.bf16.msra.mxu0 0
      %406 = vmatpush.bf16.msra.mxu0 0
      %407 = vmatpush.bf16.msra.mxu0 %v370
      %408 = vmatmul.bf16.gmra.mxu0 %v361
      %v409 = vpop.f32.mrf.mxu0
      %v410 = vadd.f32 0.0, %v409
      %v411 = vpop.f32.mrf.mxu0
      %v412 = vadd.f32 0.0, %v411
      %413 = vdwg.mxu0
      %v414 = vadd.f32 %v311, %v382
      %v415 = vadd.f32 %v325, %v396
      %v416 = vadd.f32 %v339, %v410
      %v417 = vadd.f32 %v313, %v384
      %v418 = vadd.f32 %v327, %v398
      %v419 = vadd.f32 %v341, %v412
      %s420 = scalar_lea.vmem %s1, 24
      %v421 = vld [vmem:[%s420] sm:$0xf]
      %v422 = vld [vmem:[%s420 + $0x4] sm:$0xf]
      %v425 = vunpack.c.l.b16 %v421
      %v426 = vunpack.c.l.b16 %v422
      %v427 = vpack.c.b16 %v426, %v425
      %428 = vrot.lane.b32.xlu0 %v216, 110
      %v429 = vpop.permute.xlu0 %428
      %430 = vrot.lane.b32.xlu0 %v217, 110
      %v431 = vpop.permute.xlu0 %430
      %432 = vrot.lane.b32.xlu0 %v218, 110
      %v433 = vpop.permute.xlu0 %432
      %vm434 = vcmask 900096
      %v435 = vsel %vm434, %v429, %v431
      %v436 = vsel %vm434, %v431, %v433
      %v438 = vsel %vm228, %v427, 0
      %v441 = vsel %vm232, %v435, 0
      %v444 = vsel %vm232, %v436, 0
      %v447 = vsel %vm232, %v433, 0
      %449 = vmatpush.bf16.msra.mxu0 0
      %450 = vmatpush.bf16.msra.mxu0 0
      %451 = vmatpush.bf16.msra.mxu0 0
      %452 = vmatpush.bf16.msra.mxu0 0
      %453 = vmatpush.bf16.msra.mxu0 0
      %454 = vmatpush.bf16.msra.mxu0 0
      %455 = vmatpush.bf16.msra.mxu0 0
      %456 = vmatpush.bf16.msra.mxu0 %v441
      %457 = vmatmul.bf16.gmra.mxu0 %v438
      %v458 = vpop.f32.mrf.mxu0
      %v459 = vadd.f32 0.0, %v458
      %v460 = vpop.f32.mrf.mxu0
      %v461 = vadd.f32 0.0, %v460
      %462 = vdwg.mxu0
      %463 = vmatpush.bf16.msra.mxu0 0
      %464 = vmatpush.bf16.msra.mxu0 0
      %465 = vmatpush.bf16.msra.mxu0 0
      %466 = vmatpush.bf16.msra.mxu0 0
      %467 = vmatpush.bf16.msra.mxu0 0
      %468 = vmatpush.bf16.msra.mxu0 0
      %469 = vmatpush.bf16.msra.mxu0 0
      %470 = vmatpush.bf16.msra.mxu0 %v444
      %471 = vmatmul.bf16.gmra.mxu0 %v438
      %v472 = vpop.f32.mrf.mxu0
      %v473 = vadd.f32 0.0, %v472
      %v474 = vpop.f32.mrf.mxu0
      %v475 = vadd.f32 0.0, %v474
      %476 = vdwg.mxu0
      %477 = vmatpush.bf16.msra.mxu0 0
      %478 = vmatpush.bf16.msra.mxu0 0
      %479 = vmatpush.bf16.msra.mxu0 0
      %480 = vmatpush.bf16.msra.mxu0 0
      %481 = vmatpush.bf16.msra.mxu0 0
      %482 = vmatpush.bf16.msra.mxu0 0
      %483 = vmatpush.bf16.msra.mxu0 0
      %484 = vmatpush.bf16.msra.mxu0 %v447
      %485 = vmatmul.bf16.gmra.mxu0 %v438
      %v486 = vpop.f32.mrf.mxu0
      %v487 = vadd.f32 0.0, %v486
      %v488 = vpop.f32.mrf.mxu0
      %v489 = vadd.f32 0.0, %v488
      %490 = vdwg.mxu0
      %v491 = vadd.f32 %v414, %v459
      %v492 = vadd.f32 %v415, %v473
      %v493 = vadd.f32 %v416, %v487
      %v494 = vadd.f32 %v417, %v461
      %v495 = vadd.f32 %v418, %v475
      %v496 = vadd.f32 %v419, %v489
      %s497 = scalar_lea.vmem %s1, 32
      %v498 = vld [vmem:[%s497] sm:$0xf]
      %v499 = vld [vmem:[%s497 + $0x4] sm:$0xf]
      %v502 = vunpack.c.l.b16 %v498
      %v503 = vunpack.c.l.b16 %v499
      %v504 = vpack.c.b16 %v503, %v502
      %505 = vrot.lane.b32.xlu0 %v216, 109
      %v506 = vpop.permute.xlu0 %505
      %507 = vrot.lane.b32.xlu0 %v217, 109
      %v508 = vpop.permute.xlu0 %507
      %509 = vrot.lane.b32.xlu0 %v218, 109
      %v510 = vpop.permute.xlu0 %509
      %vm511 = vcmask 891904
      %v512 = vsel %vm511, %v506, %v508
      %v513 = vsel %vm511, %v508, %v510
      %v515 = vsel %vm228, %v504, 0
      %v518 = vsel %vm232, %v512, 0
      %v521 = vsel %vm232, %v513, 0
      %v524 = vsel %vm232, %v510, 0
      %526 = vmatpush.bf16.msra.mxu0 0
      %527 = vmatpush.bf16.msra.mxu0 0
      %528 = vmatpush.bf16.msra.mxu0 0
      %529 = vmatpush.bf16.msra.mxu0 0
      %530 = vmatpush.bf16.msra.mxu0 0
      %531 = vmatpush.bf16.msra.mxu0 0
      %532 = vmatpush.bf16.msra.mxu0 0
      %533 = vmatpush.bf16.msra.mxu0 %v518
      %534 = vmatmul.bf16.gmra.mxu0 %v515
      %v535 = vpop.f32.mrf.mxu0
      %v536 = vadd.f32 0.0, %v535
      %v537 = vpop.f32.mrf.mxu0
      %v538 = vadd.f32 0.0, %v537
      %539 = vdwg.mxu0
      %540 = vmatpush.bf16.msra.mxu0 0
      %541 = vmatpush.bf16.msra.mxu0 0
      %542 = vmatpush.bf16.msra.mxu0 0
      %543 = vmatpush.bf16.msra.mxu0 0
      %544 = vmatpush.bf16.msra.mxu0 0
      %545 = vmatpush.bf16.msra.mxu0 0
      %546 = vmatpush.bf16.msra.mxu0 0
      %547 = vmatpush.bf16.msra.mxu0 %v521
      %548 = vmatmul.bf16.gmra.mxu0 %v515
      %v549 = vpop.f32.mrf.mxu0
      %v550 = vadd.f32 0.0, %v549
      %v551 = vpop.f32.mrf.mxu0
      %v552 = vadd.f32 0.0, %v551
      %553 = vdwg.mxu0
      %554 = vmatpush.bf16.msra.mxu0 0
      %555 = vmatpush.bf16.msra.mxu0 0
      %556 = vmatpush.bf16.msra.mxu0 0
      %557 = vmatpush.bf16.msra.mxu0 0
      %558 = vmatpush.bf16.msra.mxu0 0
      %559 = vmatpush.bf16.msra.mxu0 0
      %560 = vmatpush.bf16.msra.mxu0 0
      %561 = vmatpush.bf16.msra.mxu0 %v524
      %562 = vmatmul.bf16.gmra.mxu0 %v515
      %v563 = vpop.f32.mrf.mxu0
      %v564 = vadd.f32 0.0, %v563
      %v565 = vpop.f32.mrf.mxu0
      %v566 = vadd.f32 0.0, %v565
      %567 = vdwg.mxu0
      %v568 = vadd.f32 %v491, %v536
      %v569 = vadd.f32 %v492, %v550
      %v570 = vadd.f32 %v493, %v564
      %v571 = vadd.f32 %v494, %v538
      %v572 = vadd.f32 %v495, %v552
      %v573 = vadd.f32 %v496, %v566
      %s574 = scalar_lea.vmem %s1, 40
      %v575 = vld [vmem:[%s574] sm:$0xf]
      %v576 = vld [vmem:[%s574 + $0x4] sm:$0xf]
      %v579 = vunpack.c.l.b16 %v575
      %v580 = vunpack.c.l.b16 %v576
      %v581 = vpack.c.b16 %v580, %v579
      %582 = vrot.lane.b32.xlu0 %v216, 108
      %v583 = vpop.permute.xlu0 %582
      %584 = vrot.lane.b32.xlu0 %v217, 108
      %v585 = vpop.permute.xlu0 %584
      %586 = vrot.lane.b32.xlu0 %v218, 108
      %v587 = vpop.permute.xlu0 %586
      %vm588 = vcmask 883712
      %v589 = vsel %vm588, %v583, %v585
      %v590 = vsel %vm588, %v585, %v587
      %v592 = vsel %vm228, %v581, 0
      %v595 = vsel %vm232, %v589, 0
      %v598 = vsel %vm232, %v590, 0
      %v601 = vsel %vm232, %v587, 0
      %603 = vmatpush.bf16.msra.mxu0 0
      %604 = vmatpush.bf16.msra.mxu0 0
      %605 = vmatpush.bf16.msra.mxu0 0
      %606 = vmatpush.bf16.msra.mxu0 0
      %607 = vmatpush.bf16.msra.mxu0 0
      %608 = vmatpush.bf16.msra.mxu0 0
      %609 = vmatpush.bf16.msra.mxu0 0
      %610 = vmatpush.bf16.msra.mxu0 %v595
      %611 = vmatmul.bf16.gmra.mxu0 %v592
      %v612 = vpop.f32.mrf.mxu0
      %v613 = vadd.f32 0.0, %v612
      %v614 = vpop.f32.mrf.mxu0
      %v615 = vadd.f32 0.0, %v614
      %616 = vdwg.mxu0
      %617 = vmatpush.bf16.msra.mxu0 0
      %618 = vmatpush.bf16.msra.mxu0 0
      %619 = vmatpush.bf16.msra.mxu0 0
      %620 = vmatpush.bf16.msra.mxu0 0
      %621 = vmatpush.bf16.msra.mxu0 0
      %622 = vmatpush.bf16.msra.mxu0 0
      %623 = vmatpush.bf16.msra.mxu0 0
      %624 = vmatpush.bf16.msra.mxu0 %v598
      %625 = vmatmul.bf16.gmra.mxu0 %v592
      %v626 = vpop.f32.mrf.mxu0
      %v627 = vadd.f32 0.0, %v626
      %v628 = vpop.f32.mrf.mxu0
      %v629 = vadd.f32 0.0, %v628
      %630 = vdwg.mxu0
      %631 = vmatpush.bf16.msra.mxu0 0
      %632 = vmatpush.bf16.msra.mxu0 0
      %633 = vmatpush.bf16.msra.mxu0 0
      %634 = vmatpush.bf16.msra.mxu0 0
      %635 = vmatpush.bf16.msra.mxu0 0
      %636 = vmatpush.bf16.msra.mxu0 0
      %637 = vmatpush.bf16.msra.mxu0 0
      %638 = vmatpush.bf16.msra.mxu0 %v601
      %639 = vmatmul.bf16.gmra.mxu0 %v592
      %v640 = vpop.f32.mrf.mxu0
      %v641 = vadd.f32 0.0, %v640
      %v642 = vpop.f32.mrf.mxu0
      %v643 = vadd.f32 0.0, %v642
      %644 = vdwg.mxu0
      %v645 = vadd.f32 %v568, %v613
      %v646 = vadd.f32 %v569, %v627
      %v647 = vadd.f32 %v570, %v641
      %v648 = vadd.f32 %v571, %v615
      %v649 = vadd.f32 %v572, %v629
      %v650 = vadd.f32 %v573, %v643
      %s651 = scalar_lea.vmem %s1, 48
      %v652 = vld [vmem:[%s651] sm:$0xf]
      %v653 = vld [vmem:[%s651 + $0x4] sm:$0xf]
      %v656 = vunpack.c.l.b16 %v652
      %v657 = vunpack.c.l.b16 %v653
      %v658 = vpack.c.b16 %v657, %v656
      %659 = vrot.lane.b32.xlu0 %v216, 92
      %v660 = vpop.permute.xlu0 %659
      %661 = vrot.lane.b32.xlu0 %v217, 92
      %v662 = vpop.permute.xlu0 %661
      %663 = vrot.lane.b32.xlu0 %v218, 92
      %v664 = vpop.permute.xlu0 %663
      %vm665 = vcmask 752640
      %v666 = vsel %vm665, %v660, %v662
      %v667 = vsel %vm665, %v662, %v664
      %v669 = vsel %vm228, %v658, 0
      %v672 = vsel %vm232, %v666, 0
      %v675 = vsel %vm232, %v667, 0
      %v678 = vsel %vm232, %v664, 0
      %680 = vmatpush.bf16.msra.mxu0 0
      %681 = vmatpush.bf16.msra.mxu0 0
      %682 = vmatpush.bf16.msra.mxu0 0
      %683 = vmatpush.bf16.msra.mxu0 0
      %684 = vmatpush.bf16.msra.mxu0 0
      %685 = vmatpush.bf16.msra.mxu0 0
      %686 = vmatpush.bf16.msra.mxu0 0
      %687 = vmatpush.bf16.msra.mxu0 %v672
      %688 = vmatmul.bf16.gmra.mxu0 %v669
      %v689 = vpop.f32.mrf.mxu0
      %v690 = vadd.f32 0.0, %v689
      %v691 = vpop.f32.mrf.mxu0
      %v692 = vadd.f32 0.0, %v691
      %693 = vdwg.mxu0
      %694 = vmatpush.bf16.msra.mxu0 0
      %695 = vmatpush.bf16.msra.mxu0 0
      %696 = vmatpush.bf16.msra.mxu0 0
      %697 = vmatpush.bf16.msra.mxu0 0
      %698 = vmatpush.bf16.msra.mxu0 0
      %699 = vmatpush.bf16.msra.mxu0 0
      %700 = vmatpush.bf16.msra.mxu0 0
      %701 = vmatpush.bf16.msra.mxu0 %v675
      %702 = vmatmul.bf16.gmra.mxu0 %v669
      %v703 = vpop.f32.mrf.mxu0
      %v704 = vadd.f32 0.0, %v703
      %v705 = vpop.f32.mrf.mxu0
      %v706 = vadd.f32 0.0, %v705
      %707 = vdwg.mxu0
      %708 = vmatpush.bf16.msra.mxu0 0
      %709 = vmatpush.bf16.msra.mxu0 0
      %710 = vmatpush.bf16.msra.mxu0 0
      %711 = vmatpush.bf16.msra.mxu0 0
      %712 = vmatpush.bf16.msra.mxu0 0
      %713 = vmatpush.bf16.msra.mxu0 0
      %714 = vmatpush.bf16.msra.mxu0 0
      %715 = vmatpush.bf16.msra.mxu0 %v678
      %716 = vmatmul.bf16.gmra.mxu0 %v669
      %v717 = vpop.f32.mrf.mxu0
      %v718 = vadd.f32 0.0, %v717
      %v719 = vpop.f32.mrf.mxu0
      %v720 = vadd.f32 0.0, %v719
      %721 = vdwg.mxu0
      %v722 = vadd.f32 %v645, %v690
      %v723 = vadd.f32 %v646, %v704
      %v724 = vadd.f32 %v647, %v718
      %v725 = vadd.f32 %v648, %v692
      %v726 = vadd.f32 %v649, %v706
      %v727 = vadd.f32 %v650, %v720
      %s728 = scalar_lea.vmem %s1, 56
      %v729 = vld [vmem:[%s728] sm:$0xf]
      %v730 = vld [vmem:[%s728 + $0x4] sm:$0xf]
      %v733 = vunpack.c.l.b16 %v729
      %v734 = vunpack.c.l.b16 %v730
      %v735 = vpack.c.b16 %v734, %v733
      %736 = vrot.lane.b32.xlu0 %v216, 91
      %v737 = vpop.permute.xlu0 %736
      %738 = vrot.lane.b32.xlu0 %v217, 91
      %v739 = vpop.permute.xlu0 %738
      %740 = vrot.lane.b32.xlu0 %v218, 91
      %v741 = vpop.permute.xlu0 %740
      %vm742 = vcmask 744448
      %v743 = vsel %vm742, %v737, %v739
      %v744 = vsel %vm742, %v739, %v741
      %v746 = vsel %vm228, %v735, 0
      %v749 = vsel %vm232, %v743, 0
      %v752 = vsel %vm232, %v744, 0
      %v755 = vsel %vm232, %v741, 0
      %757 = vmatpush.bf16.msra.mxu0 0
      %758 = vmatpush.bf16.msra.mxu0 0
      %759 = vmatpush.bf16.msra.mxu0 0
      %760 = vmatpush.bf16.msra.mxu0 0
      %761 = vmatpush.bf16.msra.mxu0 0
      %762 = vmatpush.bf16.msra.mxu0 0
      %763 = vmatpush.bf16.msra.mxu0 0
      %764 = vmatpush.bf16.msra.mxu0 %v749
      %765 = vmatmul.bf16.gmra.mxu0 %v746
      %v766 = vpop.f32.mrf.mxu0
      %v767 = vadd.f32 0.0, %v766
      %v768 = vpop.f32.mrf.mxu0
      %v769 = vadd.f32 0.0, %v768
      %770 = vdwg.mxu0
      %771 = vmatpush.bf16.msra.mxu0 0
      %772 = vmatpush.bf16.msra.mxu0 0
      %773 = vmatpush.bf16.msra.mxu0 0
      %774 = vmatpush.bf16.msra.mxu0 0
      %775 = vmatpush.bf16.msra.mxu0 0
      %776 = vmatpush.bf16.msra.mxu0 0
      %777 = vmatpush.bf16.msra.mxu0 0
      %778 = vmatpush.bf16.msra.mxu0 %v752
      %779 = vmatmul.bf16.gmra.mxu0 %v746
      %v780 = vpop.f32.mrf.mxu0
      %v781 = vadd.f32 0.0, %v780
      %v782 = vpop.f32.mrf.mxu0
      %v783 = vadd.f32 0.0, %v782
      %784 = vdwg.mxu0
      %785 = vmatpush.bf16.msra.mxu0 0
      %786 = vmatpush.bf16.msra.mxu0 0
      %787 = vmatpush.bf16.msra.mxu0 0
      %788 = vmatpush.bf16.msra.mxu0 0
      %789 = vmatpush.bf16.msra.mxu0 0
      %790 = vmatpush.bf16.msra.mxu0 0
      %791 = vmatpush.bf16.msra.mxu0 0
      %792 = vmatpush.bf16.msra.mxu0 %v755
      %793 = vmatmul.bf16.gmra.mxu0 %v746
      %v794 = vpop.f32.mrf.mxu0
      %v795 = vadd.f32 0.0, %v794
      %v796 = vpop.f32.mrf.mxu0
      %v797 = vadd.f32 0.0, %v796
      %798 = vdwg.mxu0
      %v799 = vadd.f32 %v722, %v767
      %v800 = vadd.f32 %v723, %v781
      %v801 = vadd.f32 %v724, %v795
      %v802 = vadd.f32 %v725, %v769
      %v803 = vadd.f32 %v726, %v783
      %v804 = vadd.f32 %v727, %v797
      %s805 = scalar_lea.vmem %s1, 64
      %v806 = vld [vmem:[%s805] sm:$0xf]
      %v807 = vld [vmem:[%s805 + $0x4] sm:$0xf]
      %v810 = vunpack.c.l.b16 %v806
      %v811 = vunpack.c.l.b16 %v807
      %v812 = vpack.c.b16 %v811, %v810
      %813 = vrot.lane.b32.xlu0 %v216, 90
      %v814 = vpop.permute.xlu0 %813
      %815 = vrot.lane.b32.xlu0 %v217, 90
      %v816 = vpop.permute.xlu0 %815
      %817 = vrot.lane.b32.xlu0 %v218, 90
      %v818 = vpop.permute.xlu0 %817
      %vm819 = vcmask 736256
      %v820 = vsel %vm819, %v814, %v816
      %v821 = vsel %vm819, %v816, %v818
      %v823 = vsel %vm228, %v812, 0
      %v826 = vsel %vm232, %v820, 0
      %v829 = vsel %vm232, %v821, 0
      %v832 = vsel %vm232, %v818, 0
      %834 = vmatpush.bf16.msra.mxu0 0
      %835 = vmatpush.bf16.msra.mxu0 0
      %836 = vmatpush.bf16.msra.mxu0 0
      %837 = vmatpush.bf16.msra.mxu0 0
      %838 = vmatpush.bf16.msra.mxu0 0
      %839 = vmatpush.bf16.msra.mxu0 0
      %840 = vmatpush.bf16.msra.mxu0 0
      %841 = vmatpush.bf16.msra.mxu0 %v826
      %842 = vmatmul.bf16.gmra.mxu0 %v823
      %v843 = vpop.f32.mrf.mxu0
      %v844 = vadd.f32 0.0, %v843
      %v845 = vpop.f32.mrf.mxu0
      %v846 = vadd.f32 0.0, %v845
      %847 = vdwg.mxu0
      %848 = vmatpush.bf16.msra.mxu0 0
      %849 = vmatpush.bf16.msra.mxu0 0
      %850 = vmatpush.bf16.msra.mxu0 0
      %851 = vmatpush.bf16.msra.mxu0 0
      %852 = vmatpush.bf16.msra.mxu0 0
      %853 = vmatpush.bf16.msra.mxu0 0
      %854 = vmatpush.bf16.msra.mxu0 0
      %855 = vmatpush.bf16.msra.mxu0 %v829
      %856 = vmatmul.bf16.gmra.mxu0 %v823
      %v857 = vpop.f32.mrf.mxu0
      %v858 = vadd.f32 0.0, %v857
      %v859 = vpop.f32.mrf.mxu0
      %v860 = vadd.f32 0.0, %v859
      %861 = vdwg.mxu0
      %862 = vmatpush.bf16.msra.mxu0 0
      %863 = vmatpush.bf16.msra.mxu0 0
      %864 = vmatpush.bf16.msra.mxu0 0
      %865 = vmatpush.bf16.msra.mxu0 0
      %866 = vmatpush.bf16.msra.mxu0 0
      %867 = vmatpush.bf16.msra.mxu0 0
      %868 = vmatpush.bf16.msra.mxu0 0
      %869 = vmatpush.bf16.msra.mxu0 %v832
      %870 = vmatmul.bf16.gmra.mxu0 %v823
      %v871 = vpop.f32.mrf.mxu0
      %v872 = vadd.f32 0.0, %v871
      %v873 = vpop.f32.mrf.mxu0
      %v874 = vadd.f32 0.0, %v873
      %875 = vdwg.mxu0
      %v876 = vadd.f32 %v799, %v844
      %v877 = vadd.f32 %v800, %v858
      %v878 = vadd.f32 %v801, %v872
      %v879 = vadd.f32 %v802, %v846
      %v880 = vadd.f32 %v803, %v860
      %v881 = vadd.f32 %v804, %v874
      %v882 = vld [vmem:[%s2] sm:$0xff]
      %v883 = vld [vmem:[%s2 + $0x8] sm:$0xff]
      %885 = vset.pattern.permute.xlu0 0
      %886 = vperm.xlu0 %885, %v882
      %v887 = vpop.permute.xlu0 %886
      %890 = vset.pattern.permute.xlu0 0
      %891 = vperm.xlu0 %890, %v883
      %v892 = vpop.permute.xlu0 %891
      %v894 = vmul.f32 %v876, %v887
      %v895 = vmul.f32 %v877, %v887
      %v896 = vmul.f32 %v878, %v887
      %v897 = vmul.f32 %v879, %v892
      %v898 = vmul.f32 %v880, %v892
      %v899 = vmul.f32 %v881, %v892
      %v900 = vld [vmem:[%s3] sm:$0xff]
      %v901 = vld [vmem:[%s3 + $0x8] sm:$0xff]
      %903 = vset.pattern.permute.xlu0 0
      %904 = vperm.xlu0 %903, %v900
      %v905 = vpop.permute.xlu0 %904
      %908 = vset.pattern.permute.xlu0 0
      %909 = vperm.xlu0 %908, %v901
      %v910 = vpop.permute.xlu0 %909
      %v912 = vadd.f32 %v894, %v905
      %v913 = vadd.f32 %v895, %v905
      %v914 = vadd.f32 %v896, %v905
      %v915 = vadd.f32 %v897, %v910
      %v916 = vadd.f32 %v898, %v910
      %v917 = vadd.f32 %v899, %v910
      %v918 = vmax.f32 %v912, 0.0
      %v919 = vmax.f32 %v913, 0.0
      %v920 = vmax.f32 %v914, 0.0
      %v921 = vmax.f32 %v915, 0.0
      %v922 = vmax.f32 %v916, 0.0
      %v923 = vmax.f32 %v917, 0.0
      %924 = vst [vmem:[%s197] sm:$0xff] %v918
      %925 = vst [vmem:[%s197 + $0x8] sm:$0xff] %v919
      %vm926 = vcmask 261120
      %927 = vst.msk [vmem:[%s197 + $0x10] sm:$0xff] %vm926, %v920
      %928 = vst [vmem:[%s197 + $0x18] sm:$0xff] %v921
      %929 = vst [vmem:[%s197 + $0x20] sm:$0xff] %v922
      %930 = vst.msk [vmem:[%s197 + $0x28] sm:$0xff] %vm926, %v923
      %p931 = scmp.lt.s32.totalorder %s15, 1
      %s932 = scalar_select %p931, %s15, 1
      %s933 = smul.addr %s932, 6
      %s934 = smul.addr %s933, 8
      %s935 = scalar_lea.vmem %s4, %s934
      // Predicated region
      $region37: #{_lambda_.9} parent=35 // pred_check
        %p936 = pneg %p122
      $region38: #{_lambda_.9} parent=35 // pred_check_branch
        %938 = sbr.rel (%p936) target = $region40
      $region39: #{_lambda_.9} parent=35 // pred_region
        _
      $region40: #{_lambda_.9} parent=35 // pred_fallthru
        _
    $region36: #{_lambda_.9} parent=5 // pred_fallthru
      _
    %p939 = scmp.le.s32.totalorder 2, %s10
    // Predicated region
    $region41: #{_lambda_.9} parent=5 // pred_check
      %p940 = pneg %p939
    $region42: #{_lambda_.9} parent=5 // pred_check_branch
      %942 = sbr.rel (%p940) target = $region44
    $region43: #{_lambda_.9} parent=5 // pred_region
      %s943 = ssub.s32 %s10, 2
      // Predicated region
      $region45: #{_lambda_.9} parent=43 // pred_check
        %p944 = pneg %p128
      $region46: #{_lambda_.9} parent=43 // pred_check_branch
        %946 = sbr.rel (%p944) target = $region48
      $region47: #{_lambda_.9} parent=43 // pred_region
        %p947 = scmp.lt.s32.totalorder %s16, 1
        %s948 = scalar_select %p947, %s16, 1
        %s949 = smul.addr %s948, 6
        %s950 = smul.addr %s949, 8
        %s951 = scalar_lea.vmem %s4, %s950
      $region48: #{_lambda_.9} parent=43 // pred_fallthru
        _
    $region44: #{_lambda_.9} parent=5 // pred_fallthru
      _
  $region6: #{_lambda_.9} parent=0 // loop_footer
    %s14 = sadd.s32 1, %s10
  $region7: #{_lambda_.9} parent=0 // loop_footer_branch
    %9 = sbr.rel target = $region3
  $region8: #{_lambda_.9} parent=0 // loop_exit
    _

// kernel: _lambda_.13
$region0: #{_lambda_.13}
  #allocation0 [shape = 'u32[]', space=smem, size = 0x4, offset = 0x4, fixed_abs, tag = 'smem constant byte address 0x4 - core index']
  #allocation1 [shape = 'u32[72,128]{1,0:T(1,128)}', space=vmem, size = 0x9000, scoped, tag = 'internal scratch']
  %s0 = inlined_call_operand.vmem [shape: bf16[2,16,326], index: 0, kind: input, shape index: {}]
  %s1 = inlined_call_operand.vmem [shape: bf16[9,16,16], index: 1, kind: input, shape index: {}]
  %s2 = inlined_call_operand.vmem [shape: f32[16,1], index: 2, kind: input, shape index: {}]
  %s3 = inlined_call_operand.vmem [shape: f32[16,1], index: 3, kind: input, shape index: {}]
  %s4 = inlined_call_operand.vmem [shape: f32[2,16,288], index: 4, kind: output, shape index: {}]
  %s5 = sld [smem:[#allocation0]]
  $region49: #{_lambda_.13} parent=0
    _
  %s7 = ssub.s32 1, %s5
  %s8 = scalar_select 0, %s7, %s5
  loop: start=0, step=1, limit=4
  $region2: #{_lambda_.13} parent=0 // loop_pre_header
    _
  $region3: #{_lambda_.13} parent=0 // loop_header
    %s10 = sphi 0, %s14
    %p11 = scmp.ge.s32.totalorder %s10, 4
    %s20 = sphi 0, %s22
    %s23 = sphi 0, %s20
    %s24 = sphi 0, %s23
    %s40 = sphi 0, %s24
    %s44 = sphi 0, %s44
    %s46 = sphi 0, %s44
    %s47 = sphi 0, %s46
    %s61 = sphi 0, %s47
    %s65 = sphi 0, %s65
    %s67 = sphi 0, %s65
    %s68 = sphi 0, %s67
    %s82 = sphi 0, %s68
    %s86 = sphi 0, %s86
    %s88 = sphi 0, %s86
    %s89 = sphi 0, %s88
    %s103 = sphi 0, %s89
    %s109 = sphi 0, %s111
    %s112 = sphi 0, %s109
    %s113 = sphi 0, %s112
    %s129 = sphi 0, %s113
  $region4: #{_lambda_.13} parent=0 // loop_header_branch
    %13 = sbr.rel (%p11) target = $region8
  $region5: #{_lambda_.13} parent=0 // loop_body
    %s15 = ssub.s32 %s10, 1
    %s16 = ssub.s32 %s10, 2
    %s17 = sadd.s32 %s10, 1
    %s18 = ssub.s32 %s10, %s17
    %p19 = scmp.eq.s32.totalorder %s18, 0
    %s21 = sadd.s32 %s20, 1
    %s22 = scalar_select %p19, %s20, %s21
    %p25 = pneg %p19
    %p26 = scmp.eq.s32.totalorder %s10, 1
    %p27 = por %p25, %p26
    %p28 = scmp.ne.s32.totalorder %s20, %s23
    %p29 = scmp.eq.s32.totalorder %s10, 0
    %p30 = por %p28, %p29
    %p31 = scmp.ne.s32.totalorder %s20, %s23
    %p32 = scmp.eq.s32.totalorder %s15, 1
    %p33 = por %p31, %p32
    %p34 = scmp.ne.s32.totalorder %s23, %s24
    %p35 = scmp.eq.s32.totalorder %s15, 0
    %p36 = por %p34, %p35
    %p37 = scmp.ne.s32.totalorder %s23, %s24
    %p38 = scmp.eq.s32.totalorder %s16, 1
    %p39 = por %p37, %p38
    %p41 = scmp.ne.s32.totalorder %s24, %s40
    %p42 = scmp.eq.s32.totalorder %s16, 0
    %p43 = por %p41, %p42
    %s45 = sadd.s32 %s44, 1
    %p48 = scmp.eq.s32.totalorder %s10, 1
    %p49 = scmp.ne.s32.totalorder %s44, %s46
    %p50 = scmp.eq.s32.totalorder %s10, 0
    %p51 = por %p49, %p50
    %p52 = scmp.ne.s32.totalorder %s44, %s46
    %p53 = scmp.eq.s32.totalorder %s15, 1
    %p54 = por %p52, %p53
    %p55 = scmp.ne.s32.totalorder %s46, %s47
    %p56 = scmp.eq.s32.totalorder %s15, 0
    %p57 = por %p55, %p56
    %p58 = scmp.ne.s32.totalorder %s46, %s47
    %p59 = scmp.eq.s32.totalorder %s16, 1
    %p60 = por %p58, %p59
    %p62 = scmp.ne.s32.totalorder %s47, %s61
    %p63 = scmp.eq.s32.totalorder %s16, 0
    %p64 = por %p62, %p63
    %s66 = sadd.s32 %s65, 1
    %p69 = scmp.eq.s32.totalorder %s10, 1
    %p70 = scmp.ne.s32.totalorder %s65, %s67
    %p71 = scmp.eq.s32.totalorder %s10, 0
    %p72 = por %p70, %p71
    %p73 = scmp.ne.s32.totalorder %s65, %s67
    %p74 = scmp.eq.s32.totalorder %s15, 1
    %p75 = por %p73, %p74
    %p76 = scmp.ne.s32.totalorder %s67, %s68
    %p77 = scmp.eq.s32.totalorder %s15, 0
    %p78 = por %p76, %p77
    %p79 = scmp.ne.s32.totalorder %s67, %s68
    %p80 = scmp.eq.s32.totalorder %s16, 1
    %p81 = por %p79, %p80
    %p83 = scmp.ne.s32.totalorder %s68, %s82
    %p84 = scmp.eq.s32.totalorder %s16, 0
    %p85 = por %p83, %p84
    %s87 = sadd.s32 %s86, 1
    %p90 = scmp.eq.s32.totalorder %s10, 1
    %p91 = scmp.ne.s32.totalorder %s86, %s88
    %p92 = scmp.eq.s32.totalorder %s10, 0
    %p93 = por %p91, %p92
    %p94 = scmp.ne.s32.totalorder %s86, %s88
    %p95 = scmp.eq.s32.totalorder %s15, 1
    %p96 = por %p94, %p95
    %p97 = scmp.ne.s32.totalorder %s88, %s89
    %p98 = scmp.eq.s32.totalorder %s15, 0
    %p99 = por %p97, %p98
    %p100 = scmp.ne.s32.totalorder %s88, %s89
    %p101 = scmp.eq.s32.totalorder %s16, 1
    %p102 = por %p100, %p101
    %p104 = scmp.ne.s32.totalorder %s89, %s103
    %p105 = scmp.eq.s32.totalorder %s16, 0
    %p106 = por %p104, %p105
    %s107 = ssub.s32 %s10, %s17
    %p108 = scmp.eq.s32.totalorder %s107, 0
    %s110 = sadd.s32 %s109, 1
    %s111 = scalar_select %p108, %s109, %s110
    %p114 = pneg %p108
    %p115 = scmp.eq.s32.totalorder %s10, 1
    %p116 = por %p114, %p115
    %p117 = scmp.ne.s32.totalorder %s109, %s112
    %p118 = scmp.eq.s32.totalorder %s10, 0
    %p119 = por %p117, %p118
    %p120 = scmp.ne.s32.totalorder %s109, %s112
    %p121 = scmp.eq.s32.totalorder %s15, 1
    %p122 = por %p120, %p121
    %p123 = scmp.ne.s32.totalorder %s112, %s113
    %p124 = scmp.eq.s32.totalorder %s15, 0
    %p125 = por %p123, %p124
    %p126 = scmp.ne.s32.totalorder %s112, %s113
    %p127 = scmp.eq.s32.totalorder %s16, 1
    %p128 = por %p126, %p127
    %p130 = scmp.ne.s32.totalorder %s113, %s129
    %p131 = scmp.eq.s32.totalorder %s16, 0
    %p132 = por %p130, %p131
    %p133 = scmp.le.s32.totalorder 1, %s10
    %p134 = scmp.lt.s32.totalorder %s10, 3
    %p135 = pnand %p133, %p134
    %p136 = pneg %p135
    // Predicated region
    $region9: #{_lambda_.13} parent=5 // pred_check
      _
    $region10: #{_lambda_.13} parent=5 // pred_check_branch
      %138 = sbr.rel (%p135) target = $region12
    $region11: #{_lambda_.13} parent=5 // pred_region
      %s139 = ssub.s32 %s10, 1
      // Predicated region
      $region13: #{_lambda_.13} parent=11 // pred_check
        %p140 = pneg %p57
      $region14: #{_lambda_.13} parent=11 // pred_check_branch
        %142 = sbr.rel (%p140) target = $region16
      $region15: #{_lambda_.13} parent=11 // pred_region
        _
      $region16: #{_lambda_.13} parent=11 // pred_fallthru
        _
      // Predicated region
      $region17: #{_lambda_.13} parent=11 // pred_check
        %p143 = pneg %p78
      $region18: #{_lambda_.13} parent=11 // pred_check_branch
        %145 = sbr.rel (%p143) target = $region20
      $region19: #{_lambda_.13} parent=11 // pred_region
        _
      $region20: #{_lambda_.13} parent=11 // pred_fallthru
        _
      // Predicated region
      $region21: #{_lambda_.13} parent=11 // pred_check
        %p146 = pneg %p99
      $region22: #{_lambda_.13} parent=11 // pred_check_branch
        %148 = sbr.rel (%p146) target = $region24
      $region23: #{_lambda_.13} parent=11 // pred_region
        _
      $region24: #{_lambda_.13} parent=11 // pred_fallthru
        _
    $region12: #{_lambda_.13} parent=5 // pred_fallthru
      _
    %p149 = scmp.lt.s32.totalorder %s10, 2
    // Predicated region
    $region25: #{_lambda_.13} parent=5 // pred_check
      %p150 = pneg %p149
    $region26: #{_lambda_.13} parent=5 // pred_check_branch
      %152 = sbr.rel (%p150) target = $region28
    $region27: #{_lambda_.13} parent=5 // pred_region
      // Predicated region
      $region29: #{_lambda_.13} parent=27 // pred_check
        %p153 = pneg %p30
      $region30: #{_lambda_.13} parent=27 // pred_check_branch
        %155 = sbr.rel (%p153) target = $region32
      $region31: #{_lambda_.13} parent=27 // pred_region
        %p156 = scmp.lt.s32.totalorder %s10, 1
        %s157 = scalar_select %p156, %s10, 1
        %s158 = smul.addr %s157, 6
        %s159 = smul.addr %s158, 4
        %s160 = scalar_lea.vmem %s0, %s159
      $region32: #{_lambda_.13} parent=27 // pred_fallthru
        _
    $region28: #{_lambda_.13} parent=5 // pred_fallthru
      _
    %p161 = scmp.le.s32.totalorder 1, %s10
    %p162 = scmp.lt.s32.totalorder %s10, 3
    %p163 = pnand %p161, %p162
    %p164 = pneg %p163
    // Predicated region
    $region33: #{_lambda_.13} parent=5 // pred_check
      _
    $region34: #{_lambda_.13} parent=5 // pred_check_branch
      %166 = sbr.rel (%p163) target = $region36
    $region35: #{_lambda_.13} parent=5 // pred_region
      %s167 = ssub.s32 %s10, 1
      %p168 = scmp.lt.s32.totalorder %s15, 1
      %s169 = scalar_select %p168, %s15, 1
      %s170 = smul.addr %s169, 6
      %s171 = smul.addr %s170, 4
      %s172 = scalar_lea.vmem %s0, %s171
      %p173 = pneg %p36
      %p174 = pneg %p33
      %p175 = pneg %p57
      %p176 = pneg %p54
      %p177 = pneg %p78
      %p178 = pneg %p75
      %p179 = pneg %p99
      %p180 = pneg %p96
      %p181 = pneg %p125
      %p182 = pneg %p122
      %p183 = scmp.lt.s32.totalorder %s15, 1
      %s184 = scalar_select %p183, %s15, 1
      %s185 = smul.addr %s184, 6
      %s186 = smul.addr %s185, 8
      %s187 = scalar_lea.vmem %s4, %s186
      %p188 = scmp.lt.s32.totalorder %s15, 1
      %s189 = scalar_select %p188, %s15, 1
      %s190 = smul.addr %s189, 6
      %s191 = smul.addr %s190, 4
      %s192 = scalar_lea.vmem %s0, %s191
      %p193 = scmp.lt.s32.totalorder %s15, 1
      %s194 = scalar_select %p193, %s15, 1
      %s195 = smul.addr %s194, 6
      %s196 = smul.addr %s195, 8
      %s197 = scalar_lea.vmem %s4, %s196
      %v199 = vld [vmem:[%s192] sm:$0xff]
      %v200 = vld [vmem:[%s192 + $0x8] sm:$0xf]
      %v201 = vld [vmem:[%s192 + $0xc] sm:$0xff]
      %v202 = vld [vmem:[%s192 + $0x14] sm:$0xf]
      %v203 = vld [vmem:[%s1] sm:$0xf]
      %v204 = vld [vmem:[%s1 + $0x4] sm:$0xf]
      %s205 = scalar_lea.vmem %s1, 8
      %v206 = vld [vmem:[%s205] sm:$0xf]
      %v207 = vld [vmem:[%s205 + $0x4] sm:$0xf]
      %v210 = vunpack.c.l.b16 %v206
      %v211 = vunpack.c.l.b16 %v207
      %v212 = vpack.c.b16 %v211, %v210
      %v217 = vunpack.c.l.b16 %v199
      %v218 = vunpack.c.h.b16 %v199
      %v219 = vunpack.c.l.b16 %v200
      %v220 = vunpack.c.l.b16 %v201
      %v221 = vunpack.c.h.b16 %v201
      %v222 = vunpack.c.l.b16 %v202
      %v223 = vpack.c.b16 %v220, %v217
      %v224 = vpack.c.b16 %v221, %v218
      %v225 = vpack.c.b16 %v222, %v219
      %226 = vrot.lane.b32.xlu0 %v223, 127
      %v227 = vpop.permute.xlu0 %226
      %228 = vrot.lane.b32.xlu0 %v224, 127
      %v229 = vpop.permute.xlu0 %228
      %230 = vrot.lane.b32.xlu0 %v225, 127
      %v231 = vpop.permute.xlu0 %230
      %vm232 = vcmask 1039360
      %v233 = vsel %vm232, %v227, %v229
      %v234 = vsel %vm232, %v229, %v231
      %vm238 = vcmask 130048
      %v240 = vsel %vm238, %v212, 0
      %242 = vmatpush.bf16.msra.mxu0 0
      %243 = vmatpush.bf16.msra.mxu0 0
      %244 = vmatpush.bf16.msra.mxu0 0
      %245 = vmatpush.bf16.msra.mxu0 0
      %246 = vmatpush.bf16.msra.mxu0 0
      %247 = vmatpush.bf16.msra.mxu0 0
      %248 = vmatpush.bf16.msra.mxu0 0
      %249 = vmatpush.bf16.msra.mxu0 %v233
      %250 = vmatmul.bf16.gmra.mxu0 %v240
      %v251 = vpop.f32.mrf.mxu0
      %v252 = vadd.f32 0.0, %v251
      %v253 = vpop.f32.mrf.mxu0
      %v254 = vadd.f32 0.0, %v253
      %255 = vdwg.mxu0
      %256 = vmatpush.bf16.msra.mxu0 0
      %257 = vmatpush.bf16.msra.mxu0 0
      %258 = vmatpush.bf16.msra.mxu0 0
      %259 = vmatpush.bf16.msra.mxu0 0
      %260 = vmatpush.bf16.msra.mxu0 0
      %261 = vmatpush.bf16.msra.mxu0 0
      %262 = vmatpush.bf16.msra.mxu0 0
      %263 = vmatpush.bf16.msra.mxu0 %v234
      %264 = vmatmul.bf16.gmra.mxu0 %v240
      %v265 = vpop.f32.mrf.mxu0
      %v266 = vadd.f32 0.0, %v265
      %v267 = vpop.f32.mrf.mxu0
      %v268 = vadd.f32 0.0, %v267
      %269 = vdwg.mxu0
      %270 = vmatpush.bf16.msra.mxu0 0
      %271 = vmatpush.bf16.msra.mxu0 0
      %272 = vmatpush.bf16.msra.mxu0 0
      %273 = vmatpush.bf16.msra.mxu0 0
      %274 = vmatpush.bf16.msra.mxu0 0
      %275 = vmatpush.bf16.msra.mxu0 0
      %276 = vmatpush.bf16.msra.mxu0 0
      %277 = vmatpush.bf16.msra.mxu0 %v231
      %278 = vmatmul.bf16.gmra.mxu0 %v240
      %v279 = vpop.f32.mrf.mxu0
      %v280 = vadd.f32 0.0, %v279
      %v281 = vpop.f32.mrf.mxu0
      %v282 = vadd.f32 0.0, %v281
      %283 = vdwg.mxu0
      %v286 = vunpack.c.l.b16 %v203
      %v287 = vunpack.c.l.b16 %v204
      %v288 = vpack.c.b16 %v287, %v286
      %v293 = vsel %vm238, %v288, 0
      %295 = vmatpush.bf16.msra.mxu0 0
      %296 = vmatpush.bf16.msra.mxu0 0
      %297 = vmatpush.bf16.msra.mxu0 0
      %298 = vmatpush.bf16.msra.mxu0 0
      %299 = vmatpush.bf16.msra.mxu0 0
      %300 = vmatpush.bf16.msra.mxu0 0
      %301 = vmatpush.bf16.msra.mxu0 0
      %302 = vmatpush.bf16.msra.mxu0 %v223
      %303 = vmatmul.bf16.gmra.mxu0 %v293
      %v304 = vpop.f32.mrf.mxu0
      %v305 = vadd.f32 %v252, %v304
      %v306 = vpop.f32.mrf.mxu0
      %v307 = vadd.f32 %v254, %v306
      %308 = vdwg.mxu0
      %309 = vmatpush.bf16.msra.mxu0 0
      %310 = vmatpush.bf16.msra.mxu0 0
      %311 = vmatpush.bf16.msra.mxu0 0
      %312 = vmatpush.bf16.msra.mxu0 0
      %313 = vmatpush.bf16.msra.mxu0 0
      %314 = vmatpush.bf16.msra.mxu0 0
      %315 = vmatpush.bf16.msra.mxu0 0
      %316 = vmatpush.bf16.msra.mxu0 %v224
      %317 = vmatmul.bf16.gmra.mxu0 %v293
      %v318 = vpop.f32.mrf.mxu0
      %v319 = vadd.f32 %v266, %v318
      %v320 = vpop.f32.mrf.mxu0
      %v321 = vadd.f32 %v268, %v320
      %322 = vdwg.mxu0
      %323 = vmatpush.bf16.msra.mxu0 0
      %324 = vmatpush.bf16.msra.mxu0 0
      %325 = vmatpush.bf16.msra.mxu0 0
      %326 = vmatpush.bf16.msra.mxu0 0
      %327 = vmatpush.bf16.msra.mxu0 0
      %328 = vmatpush.bf16.msra.mxu0 0
      %329 = vmatpush.bf16.msra.mxu0 0
      %330 = vmatpush.bf16.msra.mxu0 %v225
      %331 = vmatmul.bf16.gmra.mxu0 %v293
      %v332 = vpop.f32.mrf.mxu0
      %v333 = vadd.f32 %v280, %v332
      %v334 = vpop.f32.mrf.mxu0
      %v335 = vadd.f32 %v282, %v334
      %336 = vdwg.mxu0
      %s337 = scalar_lea.vmem %s1, 16
      %v338 = vld [vmem:[%s337] sm:$0xf]
      %v339 = vld [vmem:[%s337 + $0x4] sm:$0xf]
      %v342 = vunpack.c.l.b16 %v338
      %v343 = vunpack.c.l.b16 %v339
      %v344 = vpack.c.b16 %v343, %v342
      %345 = vrot.lane.b32.xlu0 %v223, 126
      %v346 = vpop.permute.xlu0 %345
      %347 = vrot.lane.b32.xlu0 %v224, 126
      %v348 = vpop.permute.xlu0 %347
      %349 = vrot.lane.b32.xlu0 %v225, 126
      %v350 = vpop.permute.xlu0 %349
      %vm351 = vcmask 1031168
      %v352 = vsel %vm351, %v346, %v348
      %v353 = vsel %vm351, %v348, %v350
      %v358 = vsel %vm238, %v344, 0
      %360 = vmatpush.bf16.msra.mxu0 0
      %361 = vmatpush.bf16.msra.mxu0 0
      %362 = vmatpush.bf16.msra.mxu0 0
      %363 = vmatpush.bf16.msra.mxu0 0
      %364 = vmatpush.bf16.msra.mxu0 0
      %365 = vmatpush.bf16.msra.mxu0 0
      %366 = vmatpush.bf16.msra.mxu0 0
      %367 = vmatpush.bf16.msra.mxu0 %v352
      %368 = vmatmul.bf16.gmra.mxu0 %v358
      %v369 = vpop.f32.mrf.mxu0
      %v370 = vadd.f32 0.0, %v369
      %v371 = vpop.f32.mrf.mxu0
      %v372 = vadd.f32 0.0, %v371
      %373 = vdwg.mxu0
      %374 = vmatpush.bf16.msra.mxu0 0
      %375 = vmatpush.bf16.msra.mxu0 0
      %376 = vmatpush.bf16.msra.mxu0 0
      %377 = vmatpush.bf16.msra.mxu0 0
      %378 = vmatpush.bf16.msra.mxu0 0
      %379 = vmatpush.bf16.msra.mxu0 0
      %380 = vmatpush.bf16.msra.mxu0 0
      %381 = vmatpush.bf16.msra.mxu0 %v353
      %382 = vmatmul.bf16.gmra.mxu0 %v358
      %v383 = vpop.f32.mrf.mxu0
      %v384 = vadd.f32 0.0, %v383
      %v385 = vpop.f32.mrf.mxu0
      %v386 = vadd.f32 0.0, %v385
      %387 = vdwg.mxu0
      %388 = vmatpush.bf16.msra.mxu0 0
      %389 = vmatpush.bf16.msra.mxu0 0
      %390 = vmatpush.bf16.msra.mxu0 0
      %391 = vmatpush.bf16.msra.mxu0 0
      %392 = vmatpush.bf16.msra.mxu0 0
      %393 = vmatpush.bf16.msra.mxu0 0
      %394 = vmatpush.bf16.msra.mxu0 0
      %395 = vmatpush.bf16.msra.mxu0 %v350
      %396 = vmatmul.bf16.gmra.mxu0 %v358
      %v397 = vpop.f32.mrf.mxu0
      %v398 = vadd.f32 0.0, %v397
      %v399 = vpop.f32.mrf.mxu0
      %v400 = vadd.f32 0.0, %v399
      %401 = vdwg.mxu0
      %v402 = vadd.f32 %v305, %v370
      %v403 = vadd.f32 %v319, %v384
      %v404 = vadd.f32 %v333, %v398
      %v405 = vadd.f32 %v307, %v372
      %v406 = vadd.f32 %v321, %v386
      %v407 = vadd.f32 %v335, %v400
      %s408 = scalar_lea.vmem %s1, 24
      %v409 = vld [vmem:[%s408] sm:$0xf]
      %v410 = vld [vmem:[%s408 + $0x4] sm:$0xf]
      %v413 = vunpack.c.l.b16 %v409
      %v414 = vunpack.c.l.b16 %v410
      %v415 = vpack.c.b16 %v414, %v413
      %416 = vrot.lane.b32.xlu0 %v223, 110
      %v417 = vpop.permute.xlu0 %416
      %418 = vrot.lane.b32.xlu0 %v224, 110
      %v419 = vpop.permute.xlu0 %418
      %420 = vrot.lane.b32.xlu0 %v225, 110
      %v421 = vpop.permute.xlu0 %420
      %vm422 = vcmask 900096
      %v423 = vsel %vm422, %v417, %v419
      %v424 = vsel %vm422, %v419, %v421
      %v429 = vsel %vm238, %v415, 0
      %431 = vmatpush.bf16.msra.mxu0 0
      %432 = vmatpush.bf16.msra.mxu0 0
      %433 = vmatpush.bf16.msra.mxu0 0
      %434 = vmatpush.bf16.msra.mxu0 0
      %435 = vmatpush.bf16.msra.mxu0 0
      %436 = vmatpush.bf16.msra.mxu0 0
      %437 = vmatpush.bf16.msra.mxu0 0
      %438 = vmatpush.bf16.msra.mxu0 %v423
      %439 = vmatmul.bf16.gmra.mxu0 %v429
      %v440 = vpop.f32.mrf.mxu0
      %v441 = vadd.f32 0.0, %v440
      %v442 = vpop.f32.mrf.mxu0
      %v443 = vadd.f32 0.0, %v442
      %444 = vdwg.mxu0
      %445 = vmatpush.bf16.msra.mxu0 0
      %446 = vmatpush.bf16.msra.mxu0 0
      %447 = vmatpush.bf16.msra.mxu0 0
      %448 = vmatpush.bf16.msra.mxu0 0
      %449 = vmatpush.bf16.msra.mxu0 0
      %450 = vmatpush.bf16.msra.mxu0 0
      %451 = vmatpush.bf16.msra.mxu0 0
      %452 = vmatpush.bf16.msra.mxu0 %v424
      %453 = vmatmul.bf16.gmra.mxu0 %v429
      %v454 = vpop.f32.mrf.mxu0
      %v455 = vadd.f32 0.0, %v454
      %v456 = vpop.f32.mrf.mxu0
      %v457 = vadd.f32 0.0, %v456
      %458 = vdwg.mxu0
      %459 = vmatpush.bf16.msra.mxu0 0
      %460 = vmatpush.bf16.msra.mxu0 0
      %461 = vmatpush.bf16.msra.mxu0 0
      %462 = vmatpush.bf16.msra.mxu0 0
      %463 = vmatpush.bf16.msra.mxu0 0
      %464 = vmatpush.bf16.msra.mxu0 0
      %465 = vmatpush.bf16.msra.mxu0 0
      %466 = vmatpush.bf16.msra.mxu0 %v421
      %467 = vmatmul.bf16.gmra.mxu0 %v429
      %v468 = vpop.f32.mrf.mxu0
      %v469 = vadd.f32 0.0, %v468
      %v470 = vpop.f32.mrf.mxu0
      %v471 = vadd.f32 0.0, %v470
      %472 = vdwg.mxu0
      %v473 = vadd.f32 %v402, %v441
      %v474 = vadd.f32 %v403, %v455
      %v475 = vadd.f32 %v404, %v469
      %v476 = vadd.f32 %v405, %v443
      %v477 = vadd.f32 %v406, %v457
      %v478 = vadd.f32 %v407, %v471
      %s479 = scalar_lea.vmem %s1, 32
      %v480 = vld [vmem:[%s479] sm:$0xf]
      %v481 = vld [vmem:[%s479 + $0x4] sm:$0xf]
      %v484 = vunpack.c.l.b16 %v480
      %v485 = vunpack.c.l.b16 %v481
      %v486 = vpack.c.b16 %v485, %v484
      %487 = vrot.lane.b32.xlu0 %v223, 109
      %v488 = vpop.permute.xlu0 %487
      %489 = vrot.lane.b32.xlu0 %v224, 109
      %v490 = vpop.permute.xlu0 %489
      %491 = vrot.lane.b32.xlu0 %v225, 109
      %v492 = vpop.permute.xlu0 %491
      %vm493 = vcmask 891904
      %v494 = vsel %vm493, %v488, %v490
      %v495 = vsel %vm493, %v490, %v492
      %v500 = vsel %vm238, %v486, 0
      %502 = vmatpush.bf16.msra.mxu0 0
      %503 = vmatpush.bf16.msra.mxu0 0
      %504 = vmatpush.bf16.msra.mxu0 0
      %505 = vmatpush.bf16.msra.mxu0 0
      %506 = vmatpush.bf16.msra.mxu0 0
      %507 = vmatpush.bf16.msra.mxu0 0
      %508 = vmatpush.bf16.msra.mxu0 0
      %509 = vmatpush.bf16.msra.mxu0 %v494
      %510 = vmatmul.bf16.gmra.mxu0 %v500
      %v511 = vpop.f32.mrf.mxu0
      %v512 = vadd.f32 0.0, %v511
      %v513 = vpop.f32.mrf.mxu0
      %v514 = vadd.f32 0.0, %v513
      %515 = vdwg.mxu0
      %516 = vmatpush.bf16.msra.mxu0 0
      %517 = vmatpush.bf16.msra.mxu0 0
      %518 = vmatpush.bf16.msra.mxu0 0
      %519 = vmatpush.bf16.msra.mxu0 0
      %520 = vmatpush.bf16.msra.mxu0 0
      %521 = vmatpush.bf16.msra.mxu0 0
      %522 = vmatpush.bf16.msra.mxu0 0
      %523 = vmatpush.bf16.msra.mxu0 %v495
      %524 = vmatmul.bf16.gmra.mxu0 %v500
      %v525 = vpop.f32.mrf.mxu0
      %v526 = vadd.f32 0.0, %v525
      %v527 = vpop.f32.mrf.mxu0
      %v528 = vadd.f32 0.0, %v527
      %529 = vdwg.mxu0
      %530 = vmatpush.bf16.msra.mxu0 0
      %531 = vmatpush.bf16.msra.mxu0 0
      %532 = vmatpush.bf16.msra.mxu0 0
      %533 = vmatpush.bf16.msra.mxu0 0
      %534 = vmatpush.bf16.msra.mxu0 0
      %535 = vmatpush.bf16.msra.mxu0 0
      %536 = vmatpush.bf16.msra.mxu0 0
      %537 = vmatpush.bf16.msra.mxu0 %v492
      %538 = vmatmul.bf16.gmra.mxu0 %v500
      %v539 = vpop.f32.mrf.mxu0
      %v540 = vadd.f32 0.0, %v539
      %v541 = vpop.f32.mrf.mxu0
      %v542 = vadd.f32 0.0, %v541
      %543 = vdwg.mxu0
      %v544 = vadd.f32 %v473, %v512
      %v545 = vadd.f32 %v474, %v526
      %v546 = vadd.f32 %v475, %v540
      %v547 = vadd.f32 %v476, %v514
      %v548 = vadd.f32 %v477, %v528
      %v549 = vadd.f32 %v478, %v542
      %s550 = scalar_lea.vmem %s1, 40
      %v551 = vld [vmem:[%s550] sm:$0xf]
      %v552 = vld [vmem:[%s550 + $0x4] sm:$0xf]
      %v555 = vunpack.c.l.b16 %v551
      %v556 = vunpack.c.l.b16 %v552
      %v557 = vpack.c.b16 %v556, %v555
      %558 = vrot.lane.b32.xlu0 %v223, 108
      %v559 = vpop.permute.xlu0 %558
      %560 = vrot.lane.b32.xlu0 %v224, 108
      %v561 = vpop.permute.xlu0 %560
      %562 = vrot.lane.b32.xlu0 %v225, 108
      %v563 = vpop.permute.xlu0 %562
      %vm564 = vcmask 883712
      %v565 = vsel %vm564, %v559, %v561
      %v566 = vsel %vm564, %v561, %v563
      %v571 = vsel %vm238, %v557, 0
      %573 = vmatpush.bf16.msra.mxu0 0
      %574 = vmatpush.bf16.msra.mxu0 0
      %575 = vmatpush.bf16.msra.mxu0 0
      %576 = vmatpush.bf16.msra.mxu0 0
      %577 = vmatpush.bf16.msra.mxu0 0
      %578 = vmatpush.bf16.msra.mxu0 0
      %579 = vmatpush.bf16.msra.mxu0 0
      %580 = vmatpush.bf16.msra.mxu0 %v565
      %581 = vmatmul.bf16.gmra.mxu0 %v571
      %v582 = vpop.f32.mrf.mxu0
      %v583 = vadd.f32 0.0, %v582
      %v584 = vpop.f32.mrf.mxu0
      %v585 = vadd.f32 0.0, %v584
      %586 = vdwg.mxu0
      %587 = vmatpush.bf16.msra.mxu0 0
      %588 = vmatpush.bf16.msra.mxu0 0
      %589 = vmatpush.bf16.msra.mxu0 0
      %590 = vmatpush.bf16.msra.mxu0 0
      %591 = vmatpush.bf16.msra.mxu0 0
      %592 = vmatpush.bf16.msra.mxu0 0
      %593 = vmatpush.bf16.msra.mxu0 0
      %594 = vmatpush.bf16.msra.mxu0 %v566
      %595 = vmatmul.bf16.gmra.mxu0 %v571
      %v596 = vpop.f32.mrf.mxu0
      %v597 = vadd.f32 0.0, %v596
      %v598 = vpop.f32.mrf.mxu0
      %v599 = vadd.f32 0.0, %v598
      %600 = vdwg.mxu0
      %601 = vmatpush.bf16.msra.mxu0 0
      %602 = vmatpush.bf16.msra.mxu0 0
      %603 = vmatpush.bf16.msra.mxu0 0
      %604 = vmatpush.bf16.msra.mxu0 0
      %605 = vmatpush.bf16.msra.mxu0 0
      %606 = vmatpush.bf16.msra.mxu0 0
      %607 = vmatpush.bf16.msra.mxu0 0
      %608 = vmatpush.bf16.msra.mxu0 %v563
      %609 = vmatmul.bf16.gmra.mxu0 %v571
      %v610 = vpop.f32.mrf.mxu0
      %v611 = vadd.f32 0.0, %v610
      %v612 = vpop.f32.mrf.mxu0
      %v613 = vadd.f32 0.0, %v612
      %614 = vdwg.mxu0
      %v615 = vadd.f32 %v544, %v583
      %v616 = vadd.f32 %v545, %v597
      %v617 = vadd.f32 %v546, %v611
      %v618 = vadd.f32 %v547, %v585
      %v619 = vadd.f32 %v548, %v599
      %v620 = vadd.f32 %v549, %v613
      %s621 = scalar_lea.vmem %s1, 48
      %v622 = vld [vmem:[%s621] sm:$0xf]
      %v623 = vld [vmem:[%s621 + $0x4] sm:$0xf]
      %v626 = vunpack.c.l.b16 %v622
      %v627 = vunpack.c.l.b16 %v623
      %v628 = vpack.c.b16 %v627, %v626
      %629 = vrot.lane.b32.xlu0 %v223, 92
      %v630 = vpop.permute.xlu0 %629
      %631 = vrot.lane.b32.xlu0 %v224, 92
      %v632 = vpop.permute.xlu0 %631
      %633 = vrot.lane.b32.xlu0 %v225, 92
      %v634 = vpop.permute.xlu0 %633
      %vm635 = vcmask 752640
      %v636 = vsel %vm635, %v630, %v632
      %v637 = vsel %vm635, %v632, %v634
      %v642 = vsel %vm238, %v628, 0
      %644 = vmatpush.bf16.msra.mxu0 0
      %645 = vmatpush.bf16.msra.mxu0 0
      %646 = vmatpush.bf16.msra.mxu0 0
      %647 = vmatpush.bf16.msra.mxu0 0
      %648 = vmatpush.bf16.msra.mxu0 0
      %649 = vmatpush.bf16.msra.mxu0 0
      %650 = vmatpush.bf16.msra.mxu0 0
      %651 = vmatpush.bf16.msra.mxu0 %v636
      %652 = vmatmul.bf16.gmra.mxu0 %v642
      %v653 = vpop.f32.mrf.mxu0
      %v654 = vadd.f32 0.0, %v653
      %v655 = vpop.f32.mrf.mxu0
      %v656 = vadd.f32 0.0, %v655
      %657 = vdwg.mxu0
      %658 = vmatpush.bf16.msra.mxu0 0
      %659 = vmatpush.bf16.msra.mxu0 0
      %660 = vmatpush.bf16.msra.mxu0 0
      %661 = vmatpush.bf16.msra.mxu0 0
      %662 = vmatpush.bf16.msra.mxu0 0
      %663 = vmatpush.bf16.msra.mxu0 0
      %664 = vmatpush.bf16.msra.mxu0 0
      %665 = vmatpush.bf16.msra.mxu0 %v637
      %666 = vmatmul.bf16.gmra.mxu0 %v642
      %v667 = vpop.f32.mrf.mxu0
      %v668 = vadd.f32 0.0, %v667
      %v669 = vpop.f32.mrf.mxu0
      %v670 = vadd.f32 0.0, %v669
      %671 = vdwg.mxu0
      %672 = vmatpush.bf16.msra.mxu0 0
      %673 = vmatpush.bf16.msra.mxu0 0
      %674 = vmatpush.bf16.msra.mxu0 0
      %675 = vmatpush.bf16.msra.mxu0 0
      %676 = vmatpush.bf16.msra.mxu0 0
      %677 = vmatpush.bf16.msra.mxu0 0
      %678 = vmatpush.bf16.msra.mxu0 0
      %679 = vmatpush.bf16.msra.mxu0 %v634
      %680 = vmatmul.bf16.gmra.mxu0 %v642
      %v681 = vpop.f32.mrf.mxu0
      %v682 = vadd.f32 0.0, %v681
      %v683 = vpop.f32.mrf.mxu0
      %v684 = vadd.f32 0.0, %v683
      %685 = vdwg.mxu0
      %v686 = vadd.f32 %v615, %v654
      %v687 = vadd.f32 %v616, %v668
      %v688 = vadd.f32 %v617, %v682
      %v689 = vadd.f32 %v618, %v656
      %v690 = vadd.f32 %v619, %v670
      %v691 = vadd.f32 %v620, %v684
      %s692 = scalar_lea.vmem %s1, 56
      %v693 = vld [vmem:[%s692] sm:$0xf]
      %v694 = vld [vmem:[%s692 + $0x4] sm:$0xf]
      %v697 = vunpack.c.l.b16 %v693
      %v698 = vunpack.c.l.b16 %v694
      %v699 = vpack.c.b16 %v698, %v697
      %700 = vrot.lane.b32.xlu0 %v223, 91
      %v701 = vpop.permute.xlu0 %700
      %702 = vrot.lane.b32.xlu0 %v224, 91
      %v703 = vpop.permute.xlu0 %702
      %704 = vrot.lane.b32.xlu0 %v225, 91
      %v705 = vpop.permute.xlu0 %704
      %vm706 = vcmask 744448
      %v707 = vsel %vm706, %v701, %v703
      %v708 = vsel %vm706, %v703, %v705
      %v713 = vsel %vm238, %v699, 0
      %715 = vmatpush.bf16.msra.mxu0 0
      %716 = vmatpush.bf16.msra.mxu0 0
      %717 = vmatpush.bf16.msra.mxu0 0
      %718 = vmatpush.bf16.msra.mxu0 0
      %719 = vmatpush.bf16.msra.mxu0 0
      %720 = vmatpush.bf16.msra.mxu0 0
      %721 = vmatpush.bf16.msra.mxu0 0
      %722 = vmatpush.bf16.msra.mxu0 %v707
      %723 = vmatmul.bf16.gmra.mxu0 %v713
      %v724 = vpop.f32.mrf.mxu0
      %v725 = vadd.f32 0.0, %v724
      %v726 = vpop.f32.mrf.mxu0
      %v727 = vadd.f32 0.0, %v726
      %728 = vdwg.mxu0
      %729 = vmatpush.bf16.msra.mxu0 0
      %730 = vmatpush.bf16.msra.mxu0 0
      %731 = vmatpush.bf16.msra.mxu0 0
      %732 = vmatpush.bf16.msra.mxu0 0
      %733 = vmatpush.bf16.msra.mxu0 0
      %734 = vmatpush.bf16.msra.mxu0 0
      %735 = vmatpush.bf16.msra.mxu0 0
      %736 = vmatpush.bf16.msra.mxu0 %v708
      %737 = vmatmul.bf16.gmra.mxu0 %v713
      %v738 = vpop.f32.mrf.mxu0
      %v739 = vadd.f32 0.0, %v738
      %v740 = vpop.f32.mrf.mxu0
      %v741 = vadd.f32 0.0, %v740
      %742 = vdwg.mxu0
      %743 = vmatpush.bf16.msra.mxu0 0
      %744 = vmatpush.bf16.msra.mxu0 0
      %745 = vmatpush.bf16.msra.mxu0 0
      %746 = vmatpush.bf16.msra.mxu0 0
      %747 = vmatpush.bf16.msra.mxu0 0
      %748 = vmatpush.bf16.msra.mxu0 0
      %749 = vmatpush.bf16.msra.mxu0 0
      %750 = vmatpush.bf16.msra.mxu0 %v705
      %751 = vmatmul.bf16.gmra.mxu0 %v713
      %v752 = vpop.f32.mrf.mxu0
      %v753 = vadd.f32 0.0, %v752
      %v754 = vpop.f32.mrf.mxu0
      %v755 = vadd.f32 0.0, %v754
      %756 = vdwg.mxu0
      %v757 = vadd.f32 %v686, %v725
      %v758 = vadd.f32 %v687, %v739
      %v759 = vadd.f32 %v688, %v753
      %v760 = vadd.f32 %v689, %v727
      %v761 = vadd.f32 %v690, %v741
      %v762 = vadd.f32 %v691, %v755
      %s763 = scalar_lea.vmem %s1, 64
      %v764 = vld [vmem:[%s763] sm:$0xf]
      %v765 = vld [vmem:[%s763 + $0x4] sm:$0xf]
      %v768 = vunpack.c.l.b16 %v764
      %v769 = vunpack.c.l.b16 %v765
      %v770 = vpack.c.b16 %v769, %v768
      %771 = vrot.lane.b32.xlu0 %v223, 90
      %v772 = vpop.permute.xlu0 %771
      %773 = vrot.lane.b32.xlu0 %v224, 90
      %v774 = vpop.permute.xlu0 %773
      %775 = vrot.lane.b32.xlu0 %v225, 90
      %v776 = vpop.permute.xlu0 %775
      %vm777 = vcmask 736256
      %v778 = vsel %vm777, %v772, %v774
      %v779 = vsel %vm777, %v774, %v776
      %v784 = vsel %vm238, %v770, 0
      %786 = vmatpush.bf16.msra.mxu0 0
      %787 = vmatpush.bf16.msra.mxu0 0
      %788 = vmatpush.bf16.msra.mxu0 0
      %789 = vmatpush.bf16.msra.mxu0 0
      %790 = vmatpush.bf16.msra.mxu0 0
      %791 = vmatpush.bf16.msra.mxu0 0
      %792 = vmatpush.bf16.msra.mxu0 0
      %793 = vmatpush.bf16.msra.mxu0 %v778
      %794 = vmatmul.bf16.gmra.mxu0 %v784
      %v795 = vpop.f32.mrf.mxu0
      %v796 = vadd.f32 0.0, %v795
      %v797 = vpop.f32.mrf.mxu0
      %v798 = vadd.f32 0.0, %v797
      %799 = vdwg.mxu0
      %800 = vmatpush.bf16.msra.mxu0 0
      %801 = vmatpush.bf16.msra.mxu0 0
      %802 = vmatpush.bf16.msra.mxu0 0
      %803 = vmatpush.bf16.msra.mxu0 0
      %804 = vmatpush.bf16.msra.mxu0 0
      %805 = vmatpush.bf16.msra.mxu0 0
      %806 = vmatpush.bf16.msra.mxu0 0
      %807 = vmatpush.bf16.msra.mxu0 %v779
      %808 = vmatmul.bf16.gmra.mxu0 %v784
      %v809 = vpop.f32.mrf.mxu0
      %v810 = vadd.f32 0.0, %v809
      %v811 = vpop.f32.mrf.mxu0
      %v812 = vadd.f32 0.0, %v811
      %813 = vdwg.mxu0
      %814 = vmatpush.bf16.msra.mxu0 0
      %815 = vmatpush.bf16.msra.mxu0 0
      %816 = vmatpush.bf16.msra.mxu0 0
      %817 = vmatpush.bf16.msra.mxu0 0
      %818 = vmatpush.bf16.msra.mxu0 0
      %819 = vmatpush.bf16.msra.mxu0 0
      %820 = vmatpush.bf16.msra.mxu0 0
      %821 = vmatpush.bf16.msra.mxu0 %v776
      %822 = vmatmul.bf16.gmra.mxu0 %v784
      %v823 = vpop.f32.mrf.mxu0
      %v824 = vadd.f32 0.0, %v823
      %v825 = vpop.f32.mrf.mxu0
      %v826 = vadd.f32 0.0, %v825
      %827 = vdwg.mxu0
      %v828 = vadd.f32 %v757, %v796
      %v829 = vadd.f32 %v758, %v810
      %v830 = vadd.f32 %v759, %v824
      %v831 = vadd.f32 %v760, %v798
      %v832 = vadd.f32 %v761, %v812
      %v833 = vadd.f32 %v762, %v826
      %v834 = vld [vmem:[%s2] sm:$0xff]
      %v835 = vld [vmem:[%s2 + $0x8] sm:$0xff]
      %837 = vset.pattern.permute.xlu0 0
      %838 = vperm.xlu0 %837, %v834
      %v839 = vpop.permute.xlu0 %838
      %842 = vset.pattern.permute.xlu0 0
      %843 = vperm.xlu0 %842, %v835
      %v844 = vpop.permute.xlu0 %843
      %v846 = vmul.f32 %v828, %v839
      %v847 = vmul.f32 %v829, %v839
      %v848 = vmul.f32 %v830, %v839
      %v849 = vmul.f32 %v831, %v844
      %v850 = vmul.f32 %v832, %v844
      %v851 = vmul.f32 %v833, %v844
      %v852 = vld [vmem:[%s3] sm:$0xff]
      %v853 = vld [vmem:[%s3 + $0x8] sm:$0xff]
      %855 = vset.pattern.permute.xlu0 0
      %856 = vperm.xlu0 %855, %v852
      %v857 = vpop.permute.xlu0 %856
      %860 = vset.pattern.permute.xlu0 0
      %861 = vperm.xlu0 %860, %v853
      %v862 = vpop.permute.xlu0 %861
      %v864 = vadd.f32 %v846, %v857
      %v865 = vadd.f32 %v847, %v857
      %v866 = vadd.f32 %v848, %v857
      %v867 = vadd.f32 %v849, %v862
      %v868 = vadd.f32 %v850, %v862
      %v869 = vadd.f32 %v851, %v862
      %v870 = vmax.f32 %v864, 0.0
      %v871 = vmax.f32 %v865, 0.0
      %v872 = vmax.f32 %v866, 0.0
      %v873 = vmax.f32 %v867, 0.0
      %v874 = vmax.f32 %v868, 0.0
      %v875 = vmax.f32 %v869, 0.0
      %876 = vst [vmem:[%s197] sm:$0xff] %v870
      %877 = vst [vmem:[%s197 + $0x8] sm:$0xff] %v871
      %vm878 = vcmask 261120
      %879 = vst.msk [vmem:[%s197 + $0x10] sm:$0xff] %vm878, %v872
      %880 = vst [vmem:[%s197 + $0x18] sm:$0xff] %v873
      %881 = vst [vmem:[%s197 + $0x20] sm:$0xff] %v874
      %882 = vst.msk [vmem:[%s197 + $0x28] sm:$0xff] %vm878, %v875
      %p883 = scmp.lt.s32.totalorder %s15, 1
      %s884 = scalar_select %p883, %s15, 1
      %s885 = smul.addr %s884, 6
      %s886 = smul.addr %s885, 8
      %s887 = scalar_lea.vmem %s4, %s886
      // Predicated region
      $region37: #{_lambda_.13} parent=35 // pred_check
        %p888 = pneg %p122
      $region38: #{_lambda_.13} parent=35 // pred_check_branch
        %890 = sbr.rel (%p888) target = $region40
      $region39: #{_lambda_.13} parent=35 // pred_region
        _
      $region40: #{_lambda_.13} parent=35 // pred_fallthru
        _
    $region36: #{_lambda_.13} parent=5 // pred_fallthru
      _
    %p891 = scmp.le.s32.totalorder 2, %s10
    // Predicated region
    $region41: #{_lambda_.13} parent=5 // pred_check
      %p892 = pneg %p891
    $region42: #{_lambda_.13} parent=5 // pred_check_branch
      %894 = sbr.rel (%p892) target = $region44
    $region43: #{_lambda_.13} parent=5 // pred_region
      %s895 = ssub.s32 %s10, 2
      // Predicated region
      $region45: #{_lambda_.13} parent=43 // pred_check
        %p896 = pneg %p128
      $region46: #{_lambda_.13} parent=43 // pred_check_branch
        %898 = sbr.rel (%p896) target = $region48
      $region47: #{_lambda_.13} parent=43 // pred_region
        %p899 = scmp.lt.s32.totalorder %s16, 1
        %s900 = scalar_select %p899, %s16, 1
        %s901 = smul.addr %s900, 6
        %s902 = smul.addr %s901, 8
        %s903 = scalar_lea.vmem %s4, %s902
      $region48: #{_lambda_.13} parent=43 // pred_fallthru
        _
    $region44: #{_lambda_.13} parent=5 // pred_fallthru
      _
  $region6: #{_lambda_.13} parent=0 // loop_footer
    %s14 = sadd.s32 1, %s10
  $region7: #{_lambda_.13} parent=0 // loop_footer_branch
    %9 = sbr.rel target = $region3
  $region8: #{_lambda_.13} parent=0 // loop_exit
    _

</llo_original>
